<compile_context>
chip_gen: v5e
topology: v5e:2x2
jax: 0.10.0
libtpu: 0.0.40
codegen_flags: <defaults>
</compile_context>

<pallas_src>
import functools

import jax
import jax.numpy as jnp
from jax.experimental import pallas as pl
from jax.experimental.pallas import tpu as pltpu

_SUBLANE = 8
_LANE = 128

# Per-grid-step batch rows.  8 keeps the per-step VMEM footprint well under the
# 32 MiB scoped limit even for 84x84 Atari inputs (and under v7x's 64 MiB
# physical VMEM); bump to 32-64 on 128 MiB parts (v5e/v6e) at training batches.
_BATCH_TILE = 8

# Flip to jnp.bfloat16 once the batch is large enough to be compute-bound
# (>= ~64): bf16 is the native MXU operand format (~2x on v5e/v6e/v7x) and
# halves the VMEM footprint of every tap slice; accumulation stays f32 either
# way.  At the demo batch (2) the kernel is latency bound and f32 keeps
# bit-accuracy against the reference for free.
_COMPUTE_DTYPE = jnp.float32


def _const_spec(shape):
    """Full-array block whose index_map is constant -> fetched once, resident."""
    rank = len(shape)
    return pl.BlockSpec(tuple(shape), lambda *_, _r=rank: (0,) * _r)


# ------------------------------ fused kernel ------------------------------- #
def _dqn_fused_kernel(y1_ref, w1_ref, b1_ref, w2_ref, b2_ref, w3_ref, b3_ref,
                      wf1_ref, bf1_ref, wf2_ref, bf2_ref, out_ref, *, dims):
    bt, oh1, ow1, oh2, ow2, oh3, ow3 = dims
    k1 = y1_ref.shape[-1]                      # 16 * C

    def mm(a, b):
        return jnp.dot(a.astype(_COMPUTE_DTYPE), b.astype(_COMPUTE_DTYPE),
                       preferred_element_type=jnp.float32)

    # conv1: the 8x8 stride-4 conv is a 2x2 stride-1 conv over the s2d(4)
    # input; its 4 taps are fused along K (one im2col concat -> ONE matmul,
    # K = 4*16*C) instead of 4 small matmuls.
    m1 = bt * oh1 * ow1
    lhs1 = jnp.concatenate(
        [y1_ref[:, a:a + oh1, b:b + ow1, :].reshape(m1, k1)
         for a in range(2) for b in range(2)], axis=-1)           # (m1, 4*k1)
    h1 = jnp.maximum(mm(lhs1, w1_ref[...]) + b1_ref[...], 0.0)    # (m1, 32)

    # Parity-pack conv1's output: (b, 2p+u, 2q+v, c) -> (b, p, q, [u,v,c]=128)
    # so every conv2 tap below is a lane-dense K=128 contiguous slice.
    h1 = h1.reshape(bt, oh1 // 2, 2, ow1 // 2, 2, 32)
    h1p = jnp.concatenate(
        [h1[:, :, u, :, v, :] for u in range(2) for v in range(2)], axis=-1)

    # conv2: 4x4 stride-2 conv == 2x2 stride-1 conv over h1p -> 4 matmuls of
    # (m2, 128) x (128, 64)  (was 16 matmuls at K=32).
    m2 = bt * oh2 * ow2
    acc = jnp.zeros((m2, 64), jnp.float32)
    for a in range(2):
        for b in range(2):
            xt = h1p[:, a:a + oh2, b:b + ow2, :].reshape(m2, 128)
            acc = acc + mm(xt, w2_ref[a, b])
    h2 = jnp.maximum(acc + b2_ref[...], 0.0).reshape(bt, oh2, ow2, 64)

    # conv3: 3x3 stride-1 conv, 9 taps fused along K (one concat -> ONE matmul
    # of K = 576).
    m3 = bt * oh3 * ow3
    lhs3 = jnp.concatenate(
        [h2[:, di:di + oh3, dj:dj + ow3, :].reshape(m3, 64)
         for di in range(3) for dj in range(3)], axis=-1)         # (m3, 576)
    h3 = jnp.maximum(mm(lhs3, w3_ref[...]) + b3_ref[...], 0.0)    # (m3, 64)

    # fc1: single matmul; the torch CHW flatten is folded into wf1's
    # (spatial, chan) K ordering, and h3's (b, spatial, chan) row order makes
    # the reshape below contiguous (no copy).
    h4 = jnp.maximum(
        mm(h3.reshape(bt, oh3 * ow3 * 64), wf1_ref[...]) + bf1_ref[...], 0.0)

    # fc2: output channels zero-padded to 128 lanes -> dense, unmasked store.
    out_ref[...] = (mm(h4, wf2_ref[...]) + bf2_ref[...]).astype(out_ref.dtype)


# --------------------------- parameter preparation ------------------------- #
def prepare_params(params):
    """One-time repack of PyTorch-layout params into the fused-kernel layout."""
    oc1, c, _, _ = params["conv1_w"].shape                  # (32, C, 8, 8)
    s3 = params["fc1_w"].shape[0] // 64
    num_actions = params["fc2_w"].shape[1]
    na_pad = -(-num_actions // _LANE) * _LANE

    # conv1: 2x2-stride-1-equivalent taps over the s2d(4) input, fused along K
    # in (a, b) tap order to match the kernel's im2col concat -> (64*C, 32).
    w1 = params["conv1_w"].reshape(oc1, c, 2, 4, 2, 4)      # (O, C, a, r4, b, c4)
    w1 = w1.transpose(2, 4, 3, 5, 1, 0).reshape(4 * 16 * c, oc1)
    # conv2: parity-packed taps -> (a, b, [u, v, Ci] = 128, O).
    w2 = params["conv2_w"].reshape(64, 32, 2, 2, 2, 2)      # (O, Ci, a, u, b, v)
    w2 = w2.transpose(2, 4, 3, 5, 1, 0).reshape(2, 2, 128, 64)
    # conv3: 9 taps fused along K in (di, dj, Ci) order -> (576, 64).
    w3 = params["conv3_w"].transpose(2, 3, 1, 0).reshape(9 * 64, 64)
    # fc1: fold the CHW flatten into a (spatial, chan) K ordering -> (s3*64, 512).
    wf1 = (params["fc1_w"].reshape(64, s3, 512)
           .transpose(1, 0, 2).reshape(s3 * 64, 512))
    # fc2: zero-pad the output dim to a multiple of 128 lanes.
    wf2 = jnp.pad(params["fc2_w"], ((0, 0), (0, na_pad - num_actions)))
    bf2 = jnp.pad(params["fc2_b"], (0, na_pad - num_actions))

    return {
        "w1": w1, "b1": params["conv1_b"].reshape(1, -1),
        "w2": w2, "b2": params["conv2_b"].reshape(1, -1),
        "w3": w3, "b3": params["conv3_b"].reshape(1, -1),
        "wf1": wf1, "bf1": params["fc1_b"].reshape(1, -1),
        "wf2": wf2, "bf2": bf2.reshape(1, -1),
    }


# --------------------------------- forward --------------------------------- #
def dqn_forward(kp, x, *, num_actions):
    B, C, H, W = x.shape
    oh1, ow1 = (H - 8) // 4 + 1, (W - 8) // 4 + 1
    oh2, ow2 = (oh1 - 4) // 2 + 1, (ow1 - 4) // 2 + 1
    oh3, ow3 = oh2 - 2, ow2 - 2
    assert oh3 >= 1 and ow3 >= 1, "input too small for the three convs"
    assert oh1 % 2 == 0 and ow1 % 2 == 0, \
        "conv1 output must be even (true for e.g. 36x36 / 84x84 inputs)"
    assert kp["wf1"].shape[0] == oh3 * ow3 * 64, "params/input shape mismatch"

    # Batch is tiled along a 1-D "parallel" grid: bounds per-step VMEM at
    # training batch sizes, engages v7x's 2nd TensorCore, keeps every matmul
    # M-dim and the final store sublane-aligned.  Padding is dropped at the end.
    bt = max(_SUBLANE, min(_BATCH_TILE, -(-B // _SUBLANE) * _SUBLANE))
    bp = -(-B // bt) * bt
    xb = jnp.pad(x, ((0, bp - B), (0, 0), (0, 0), (0, 0)))

    # NCHW -> NHWC and space-to-depth(4) of the network input: the 8x8 stride-4
    # conv1 becomes a 2x2 stride-1 conv over 16*C channels.  This is the only
    # layout op outside the kernel; activations never leave VMEM afterwards.
    # TODO(synk): fold this shuffle into the kernel input (allow_input_fusion /
    # index_map) to drop one HBM round-trip of activations at training batch.
    hp, wp = -(-H // 4) * 4, -(-W // 4) * 4
    xh = jnp.transpose(xb, (0, 2, 3, 1))
    xh = jnp.pad(xh, ((0, 0), (0, hp - H), (0, wp - W), (0, 0)))
    xh = xh.reshape(bp, hp // 4, 4, wp // 4, 4, C)
    y1 = xh.transpose(0, 1, 3, 2, 4, 5).reshape(bp, hp // 4, wp // 4, 16 * C)

    na_pad = kp["wf2"].shape[1]
    dims = (bt, oh1, ow1, oh2, ow2, oh3, ow3)
    weights = (kp["w1"], kp["b1"], kp["w2"], kp["b2"], kp["w3"], kp["b3"],
               kp["wf1"], kp["bf1"], kp["wf2"], kp["bf2"])

    m1, m2, m3 = bp * oh1 * ow1, bp * oh2 * ow2, bp * oh3 * ow3
    flops = int(2 * (m1 * (64 * C) * 32 + 4 * m2 * 128 * 64 + m3 * 576 * 64
                     + bp * (oh3 * ow3 * 64) * 512 + bp * 512 * na_pad))
    bytes_accessed = int(y1.size * y1.dtype.itemsize
                         + sum(w.size * w.dtype.itemsize for w in weights)
                         + bp * na_pad * 4)

    in_specs = ([pl.BlockSpec((bt,) + tuple(y1.shape[1:]),
                              lambda i: (i, 0, 0, 0))]
                + [_const_spec(w.shape) for w in weights])

    out = pl.pallas_call(
        functools.partial(_dqn_fused_kernel, dims=dims),
        out_shape=jax.ShapeDtypeStruct((bp, na_pad), jnp.float32),
        grid=(bp // bt,),
        in_specs=in_specs,
        out_specs=pl.BlockSpec((bt, na_pad), lambda i: (i, 0)),
        compiler_params=pltpu.CompilerParams(
            dimension_semantics=("parallel",),
            # 32 MiB is the known-safe scoped limit on every generation; the
            # bt=8 tile keeps the per-step footprint well below it even for
            # 84x84 inputs.  Re-derive (larger tiles / limit) for 128 MiB parts.
            vmem_limit_bytes=32 * 1024 * 1024),
        cost_estimate=pl.CostEstimate(flops=flops, transcendentals=0,
                                      bytes_accessed=bytes_accessed),
    )(y1, *weights)

    return out[:B, :num_actions]


# -------------------------- parameter construction ------------------------- #
def init_params(key, input_shape, num_actions):
    c, h, w = input_shape
    co = lambda s, k, st: (s - k) // st + 1
    h1, w1 = co(h, 8, 4), co(w, 8, 4)
    h2, w2 = co(h1, 4, 2), co(w1, 4, 2)
    h3, w3 = co(h2, 3, 1), co(w2, 3, 1)
    n_features = 64 * h3 * w3

    keys = jax.random.split(key, 10)

    def uni(k, shape, fan_in):
        bound = 1.0 / float(fan_in) ** 0.5
        return jax.random.uniform(k, shape, jnp.float32, -bound, bound)

    params = {
        "conv1_w": uni(keys[0], (32, c, 8, 8), c * 8 * 8),
        "conv1_b": uni(keys[1], (32,), c * 8 * 8),
        "conv2_w": uni(keys[2], (64, 32, 4, 4), 32 * 4 * 4),
        "conv2_b": uni(keys[3], (64,), 32 * 4 * 4),
        "conv3_w": uni(keys[4], (64, 64, 3, 3), 64 * 3 * 3),
        "conv3_b": uni(keys[5], (64,), 64 * 3 * 3),
        "fc1_w": uni(keys[6], (n_features, 512), n_features),   # stored (in, out)
        "fc1_b": uni(keys[7], (512,), n_features),
        "fc2_w": uni(keys[8], (512, num_actions), 512),
        "fc2_b": uni(keys[9], (num_actions,), 512),
    }
    return params, n_features


# --------------------------------- reference ------------------------------- #
def dqn_reference(params, x):
    def conv(x, w, b, s):
        y = jax.lax.conv_general_dilated(
            x, w, (s, s), "VALID",
            dimension_numbers=("NCHW", "OIHW", "NCHW"),
            precision=jax.lax.Precision.HIGHEST)
        return jax.nn.relu(y + b[None, :, None, None])

    x = conv(x, params["conv1_w"], params["conv1_b"], 4)
    x = conv(x, params["conv2_w"], params["conv2_b"], 2)
    x = conv(x, params["conv3_w"], params["conv3_b"], 1)
    x = x.reshape(x.shape[0], -1)
    x = jax.nn.relu(
        jnp.dot(x, params["fc1_w"], precision=jax.lax.Precision.HIGHEST)
        + params["fc1_b"])
    return (jnp.dot(x, params["fc2_w"], precision=jax.lax.Precision.HIGHEST)
            + params["fc2_b"])


# ----------------------------------- main ----------------------------------- #
if __name__ == "__main__":
    key = jax.random.PRNGKey(0)
    k_param, k_x = jax.random.split(key)

    # Small shapes consistent with the module: (c, h, w) = (4, 36, 36)
    #   conv1 -> 8x8, conv2 -> 3x3, conv3 -> 1x1, n_features = 64
    input_shape = (4, 36, 36)
    num_actions = 6
    batch = 2

    params, n_features = init_params(k_param, input_shape, num_actions)
    x = jax.random.normal(k_x, (batch,) + input_shape, jnp.float32)

    kparams = prepare_params(params)                     # one-time repack
    fwd = jax.jit(functools.partial(dqn_forward, num_actions=num_actions))
    out = jax.block_until_ready(fwd(kparams, x))
    assert out.shape == (batch, num_actions), out.shape

    ref = dqn_reference(params, x)
    err = float(jnp.max(jnp.abs(out - ref)))
    assert jnp.allclose(out, ref, rtol=2e-2, atol=2e-2), err

    print("KERNEL_OK")
</pallas_src>

<mosaic_0001>
module attributes {stable_mosaic.version = 11 : i64} {
  func.func @_dqn_fused_kernel(%arg0: i32, %arg1: memref<8x9x9x64xf32, #tpu.memory_space<vmem>>, %arg2: memref<256x32xf32, #tpu.memory_space<vmem>>, %arg3: memref<1x32xf32, #tpu.memory_space<vmem>>, %arg4: memref<2x2x128x64xf32, #tpu.memory_space<vmem>>, %arg5: memref<1x64xf32, #tpu.memory_space<vmem>>, %arg6: memref<576x64xf32, #tpu.memory_space<vmem>>, %arg7: memref<1x64xf32, #tpu.memory_space<vmem>>, %arg8: memref<64x512xf32, #tpu.memory_space<vmem>>, %arg9: memref<1x512xf32, #tpu.memory_space<vmem>>, %arg10: memref<512x128xf32, #tpu.memory_space<vmem>>, %arg11: memref<1x128xf32, #tpu.memory_space<vmem>>, %arg12: memref<8x128xf32, #tpu.memory_space<vmem>>) attributes {dimension_semantics = [#tpu.dimension_semantics<parallel>], iteration_bounds = array<i64: 1>, scalar_prefetch = 0 : i64, scratch_operands = 0 : i64, tpu.core_type = #tpu.core_type<tc>, window_params = [{transform_indices = @transform_0, window_bounds = array<i64: 8, 9, 9, 64>}, {pipeline_mode = #tpu.pipeline_mode<synchronous>, transform_indices = @transform_1, window_bounds = array<i64: 256, 32>}, {pipeline_mode = #tpu.pipeline_mode<synchronous>, transform_indices = @transform_2, window_bounds = array<i64: 1, 32>}, {pipeline_mode = #tpu.pipeline_mode<synchronous>, transform_indices = @transform_3, window_bounds = array<i64: 2, 2, 128, 64>}, {pipeline_mode = #tpu.pipeline_mode<synchronous>, transform_indices = @transform_4, window_bounds = array<i64: 1, 64>}, {pipeline_mode = #tpu.pipeline_mode<synchronous>, transform_indices = @transform_5, window_bounds = array<i64: 576, 64>}, {pipeline_mode = #tpu.pipeline_mode<synchronous>, transform_indices = @transform_6, window_bounds = array<i64: 1, 64>}, {pipeline_mode = #tpu.pipeline_mode<synchronous>, transform_indices = @transform_7, window_bounds = array<i64: 64, 512>}, {pipeline_mode = #tpu.pipeline_mode<synchronous>, transform_indices = @transform_8, window_bounds = array<i64: 1, 512>}, {pipeline_mode = #tpu.pipeline_mode<synchronous>, transform_indices = @transform_9, window_bounds = array<i64: 512, 128>}, {pipeline_mode = #tpu.pipeline_mode<synchronous>, transform_indices = @transform_10, window_bounds = array<i64: 1, 128>}, {transform_indices = @transform_11, window_bounds = array<i64: 8, 128>}]} {
    %c0 = arith.constant 0 : index
    %c0_0 = arith.constant 0 : index
    %c0_1 = arith.constant 0 : index
    %c0_2 = arith.constant 0 : index
    %0 = vector.load %arg1[%c0, %c0_0, %c0_1, %c0_2] : memref<8x9x9x64xf32, #tpu.memory_space<vmem>>, vector<8x8x8x64xf32>
    %1 = vector.shape_cast %0 : vector<8x8x8x64xf32> to vector<512x64xf32>
    %c0_3 = arith.constant 0 : index
    %c0_4 = arith.constant 0 : index
    %c1 = arith.constant 1 : index
    %c0_5 = arith.constant 0 : index
    %2 = vector.load %arg1[%c0_3, %c0_4, %c1, %c0_5] : memref<8x9x9x64xf32, #tpu.memory_space<vmem>>, vector<8x8x8x64xf32>
    %3 = vector.shape_cast %2 : vector<8x8x8x64xf32> to vector<512x64xf32>
    %c0_6 = arith.constant 0 : index
    %c1_7 = arith.constant 1 : index
    %c0_8 = arith.constant 0 : index
    %c0_9 = arith.constant 0 : index
    %4 = vector.load %arg1[%c0_6, %c1_7, %c0_8, %c0_9] : memref<8x9x9x64xf32, #tpu.memory_space<vmem>>, vector<8x8x8x64xf32>
    %5 = vector.shape_cast %4 : vector<8x8x8x64xf32> to vector<512x64xf32>
    %c0_10 = arith.constant 0 : index
    %c1_11 = arith.constant 1 : index
    %c1_12 = arith.constant 1 : index
    %c0_13 = arith.constant 0 : index
    %6 = vector.load %arg1[%c0_10, %c1_11, %c1_12, %c0_13] : memref<8x9x9x64xf32, #tpu.memory_space<vmem>>, vector<8x8x8x64xf32>
    %7 = vector.shape_cast %6 : vector<8x8x8x64xf32> to vector<512x64xf32>
    %8 = tpu.concatenate %1, %3, %5, %7 in 1 : vector<512x64xf32>, vector<512x64xf32>, vector<512x64xf32>, vector<512x64xf32> -> vector<512x256xf32>
    %c0_14 = arith.constant 0 : index
    %c0_15 = arith.constant 0 : index
    %9 = vector.load %arg2[%c0_14, %c0_15] : memref<256x32xf32, #tpu.memory_space<vmem>>, vector<256x32xf32>
    %cst = arith.constant dense<0.000000e+00> : vector<512x32xf32>
    %10 = tpu.matmul %8, %9, %cst {dimension_numbers = #tpu.dot_dimension_numbers<[1], [0], [0], [1], [0, 0, 1, 1], [], []>} : vector<512x256xf32>, vector<256x32xf32>, vector<512x32xf32> -> vector<512x32xf32>
    %c0_16 = arith.constant 0 : index
    %c0_17 = arith.constant 0 : index
    %11 = vector.load %arg3[%c0_16, %c0_17] : memref<1x32xf32, #tpu.memory_space<vmem>>, vector<1x32xf32>
    %12 = vector.broadcast %11 : vector<1x32xf32> to vector<512x32xf32>
    %13 = arith.addf %10, %12 : vector<512x32xf32>
    %cst_18 = arith.constant 0.000000e+00 : f32
    %14 = vector.broadcast %cst_18 : f32 to vector<512x32xf32>
    %15 = arith.maximumf %13, %14 : vector<512x32xf32>
    %16 = vector.shape_cast %15 : vector<512x32xf32> to vector<8x4x2x4x2x32xf32>
    %17 = vector.extract_strided_slice %16 {offsets = [0, 0, 0, 0, 0, 0], sizes = [8, 4, 1, 4, 1, 32], strides = [1, 1, 1, 1, 1, 1]} : vector<8x4x2x4x2x32xf32> to vector<8x4x1x4x1x32xf32>
    %18 = vector.shape_cast %17 : vector<8x4x1x4x1x32xf32> to vector<8x4x4x32xf32>
    %19 = vector.extract_strided_slice %16 {offsets = [0, 0, 0, 0, 1, 0], sizes = [8, 4, 1, 4, 1, 32], strides = [1, 1, 1, 1, 1, 1]} : vector<8x4x2x4x2x32xf32> to vector<8x4x1x4x1x32xf32>
    %20 = vector.shape_cast %19 : vector<8x4x1x4x1x32xf32> to vector<8x4x4x32xf32>
    %21 = vector.extract_strided_slice %16 {offsets = [0, 0, 1, 0, 0, 0], sizes = [8, 4, 1, 4, 1, 32], strides = [1, 1, 1, 1, 1, 1]} : vector<8x4x2x4x2x32xf32> to vector<8x4x1x4x1x32xf32>
    %22 = vector.shape_cast %21 : vector<8x4x1x4x1x32xf32> to vector<8x4x4x32xf32>
    %23 = vector.extract_strided_slice %16 {offsets = [0, 0, 1, 0, 1, 0], sizes = [8, 4, 1, 4, 1, 32], strides = [1, 1, 1, 1, 1, 1]} : vector<8x4x2x4x2x32xf32> to vector<8x4x1x4x1x32xf32>
    %24 = vector.shape_cast %23 : vector<8x4x1x4x1x32xf32> to vector<8x4x4x32xf32>
    %25 = tpu.concatenate %18, %20, %22, %24 in 3 : vector<8x4x4x32xf32>, vector<8x4x4x32xf32>, vector<8x4x4x32xf32>, vector<8x4x4x32xf32> -> vector<8x4x4x128xf32>
    %cst_19 = arith.constant 0.000000e+00 : f32
    %26 = vector.broadcast %cst_19 : f32 to vector<72x64xf32>
    %27 = vector.extract_strided_slice %25 {offsets = [0, 0, 0, 0], sizes = [8, 3, 3, 128], strides = [1, 1, 1, 1]} : vector<8x4x4x128xf32> to vector<8x3x3x128xf32>
    %28 = vector.shape_cast %27 : vector<8x3x3x128xf32> to vector<72x128xf32>
    %c0_20 = arith.constant 0 : index
    %c0_21 = arith.constant 0 : index
    %c0_22 = arith.constant 0 : index
    %c0_23 = arith.constant 0 : index
    %29 = vector.load %arg4[%c0_20, %c0_21, %c0_22, %c0_23] : memref<2x2x128x64xf32, #tpu.memory_space<vmem>>, vector<1x1x128x64xf32>
    %30 = vector.shape_cast %29 : vector<1x1x128x64xf32> to vector<128x64xf32>
    %cst_24 = arith.constant dense<0.000000e+00> : vector<72x64xf32>
    %31 = tpu.matmul %28, %30, %cst_24 {dimension_numbers = #tpu.dot_dimension_numbers<[1], [0], [0], [1], [0, 0, 1, 1], [], []>} : vector<72x128xf32>, vector<128x64xf32>, vector<72x64xf32> -> vector<72x64xf32>
    %32 = arith.addf %26, %31 : vector<72x64xf32>
    %33 = vector.extract_strided_slice %25 {offsets = [0, 0, 1, 0], sizes = [8, 3, 3, 128], strides = [1, 1, 1, 1]} : vector<8x4x4x128xf32> to vector<8x3x3x128xf32>
    %34 = vector.shape_cast %33 : vector<8x3x3x128xf32> to vector<72x128xf32>
    %c0_25 = arith.constant 0 : index
    %c1_26 = arith.constant 1 : index
    %c0_27 = arith.constant 0 : index
    %c0_28 = arith.constant 0 : index
    %35 = vector.load %arg4[%c0_25, %c1_26, %c0_27, %c0_28] : memref<2x2x128x64xf32, #tpu.memory_space<vmem>>, vector<1x1x128x64xf32>
    %36 = vector.shape_cast %35 : vector<1x1x128x64xf32> to vector<128x64xf32>
    %cst_29 = arith.constant dense<0.000000e+00> : vector<72x64xf32>
    %37 = tpu.matmul %34, %36, %cst_29 {dimension_numbers = #tpu.dot_dimension_numbers<[1], [0], [0], [1], [0, 0, 1, 1], [], []>} : vector<72x128xf32>, vector<128x64xf32>, vector<72x64xf32> -> vector<72x64xf32>
    %38 = arith.addf %32, %37 : vector<72x64xf32>
    %39 = vector.extract_strided_slice %25 {offsets = [0, 1, 0, 0], sizes = [8, 3, 3, 128], strides = [1, 1, 1, 1]} : vector<8x4x4x128xf32> to vector<8x3x3x128xf32>
    %40 = vector.shape_cast %39 : vector<8x3x3x128xf32> to vector<72x128xf32>
    %c1_30 = arith.constant 1 : index
    %c0_31 = arith.constant 0 : index
    %c0_32 = arith.constant 0 : index
    %c0_33 = arith.constant 0 : index
    %41 = vector.load %arg4[%c1_30, %c0_31, %c0_32, %c0_33] : memref<2x2x128x64xf32, #tpu.memory_space<vmem>>, vector<1x1x128x64xf32>
    %42 = vector.shape_cast %41 : vector<1x1x128x64xf32> to vector<128x64xf32>
    %cst_34 = arith.constant dense<0.000000e+00> : vector<72x64xf32>
    %43 = tpu.matmul %40, %42, %cst_34 {dimension_numbers = #tpu.dot_dimension_numbers<[1], [0], [0], [1], [0, 0, 1, 1], [], []>} : vector<72x128xf32>, vector<128x64xf32>, vector<72x64xf32> -> vector<72x64xf32>
    %44 = arith.addf %38, %43 : vector<72x64xf32>
    %45 = vector.extract_strided_slice %25 {offsets = [0, 1, 1, 0], sizes = [8, 3, 3, 128], strides = [1, 1, 1, 1]} : vector<8x4x4x128xf32> to vector<8x3x3x128xf32>
    %46 = vector.shape_cast %45 : vector<8x3x3x128xf32> to vector<72x128xf32>
    %c1_35 = arith.constant 1 : index
    %c1_36 = arith.constant 1 : index
    %c0_37 = arith.constant 0 : index
    %c0_38 = arith.constant 0 : index
    %47 = vector.load %arg4[%c1_35, %c1_36, %c0_37, %c0_38] : memref<2x2x128x64xf32, #tpu.memory_space<vmem>>, vector<1x1x128x64xf32>
    %48 = vector.shape_cast %47 : vector<1x1x128x64xf32> to vector<128x64xf32>
    %cst_39 = arith.constant dense<0.000000e+00> : vector<72x64xf32>
    %49 = tpu.matmul %46, %48, %cst_39 {dimension_numbers = #tpu.dot_dimension_numbers<[1], [0], [0], [1], [0, 0, 1, 1], [], []>} : vector<72x128xf32>, vector<128x64xf32>, vector<72x64xf32> -> vector<72x64xf32>
    %50 = arith.addf %44, %49 : vector<72x64xf32>
    %c0_40 = arith.constant 0 : index
    %c0_41 = arith.constant 0 : index
    %51 = vector.load %arg5[%c0_40, %c0_41] : memref<1x64xf32, #tpu.memory_space<vmem>>, vector<1x64xf32>
    %52 = vector.broadcast %51 : vector<1x64xf32> to vector<72x64xf32>
    %53 = arith.addf %50, %52 : vector<72x64xf32>
    %cst_42 = arith.constant 0.000000e+00 : f32
    %54 = vector.broadcast %cst_42 : f32 to vector<72x64xf32>
    %55 = arith.maximumf %53, %54 : vector<72x64xf32>
    %56 = vector.shape_cast %55 : vector<72x64xf32> to vector<8x3x3x64xf32>
    %57 = vector.extract_strided_slice %56 {offsets = [0, 0, 0, 0], sizes = [8, 1, 1, 64], strides = [1, 1, 1, 1]} : vector<8x3x3x64xf32> to vector<8x1x1x64xf32>
    %58 = vector.shape_cast %57 : vector<8x1x1x64xf32> to vector<8x64xf32>
    %59 = vector.extract_strided_slice %56 {offsets = [0, 0, 1, 0], sizes = [8, 1, 1, 64], strides = [1, 1, 1, 1]} : vector<8x3x3x64xf32> to vector<8x1x1x64xf32>
    %60 = vector.shape_cast %59 : vector<8x1x1x64xf32> to vector<8x64xf32>
    %61 = vector.extract_strided_slice %56 {offsets = [0, 0, 2, 0], sizes = [8, 1, 1, 64], strides = [1, 1, 1, 1]} : vector<8x3x3x64xf32> to vector<8x1x1x64xf32>
    %62 = vector.shape_cast %61 : vector<8x1x1x64xf32> to vector<8x64xf32>
    %63 = vector.extract_strided_slice %56 {offsets = [0, 1, 0, 0], sizes = [8, 1, 1, 64], strides = [1, 1, 1, 1]} : vector<8x3x3x64xf32> to vector<8x1x1x64xf32>
    %64 = vector.shape_cast %63 : vector<8x1x1x64xf32> to vector<8x64xf32>
    %65 = vector.extract_strided_slice %56 {offsets = [0, 1, 1, 0], sizes = [8, 1, 1, 64], strides = [1, 1, 1, 1]} : vector<8x3x3x64xf32> to vector<8x1x1x64xf32>
    %66 = vector.shape_cast %65 : vector<8x1x1x64xf32> to vector<8x64xf32>
    %67 = vector.extract_strided_slice %56 {offsets = [0, 1, 2, 0], sizes = [8, 1, 1, 64], strides = [1, 1, 1, 1]} : vector<8x3x3x64xf32> to vector<8x1x1x64xf32>
    %68 = vector.shape_cast %67 : vector<8x1x1x64xf32> to vector<8x64xf32>
    %69 = vector.extract_strided_slice %56 {offsets = [0, 2, 0, 0], sizes = [8, 1, 1, 64], strides = [1, 1, 1, 1]} : vector<8x3x3x64xf32> to vector<8x1x1x64xf32>
    %70 = vector.shape_cast %69 : vector<8x1x1x64xf32> to vector<8x64xf32>
    %71 = vector.extract_strided_slice %56 {offsets = [0, 2, 1, 0], sizes = [8, 1, 1, 64], strides = [1, 1, 1, 1]} : vector<8x3x3x64xf32> to vector<8x1x1x64xf32>
    %72 = vector.shape_cast %71 : vector<8x1x1x64xf32> to vector<8x64xf32>
    %73 = vector.extract_strided_slice %56 {offsets = [0, 2, 2, 0], sizes = [8, 1, 1, 64], strides = [1, 1, 1, 1]} : vector<8x3x3x64xf32> to vector<8x1x1x64xf32>
    %74 = vector.shape_cast %73 : vector<8x1x1x64xf32> to vector<8x64xf32>
    %75 = tpu.concatenate %58, %60, %62, %64, %66, %68, %70, %72, %74 in 1 : vector<8x64xf32>, vector<8x64xf32>, vector<8x64xf32>, vector<8x64xf32>, vector<8x64xf32>, vector<8x64xf32>, vector<8x64xf32>, vector<8x64xf32>, vector<8x64xf32> -> vector<8x576xf32>
    %c0_43 = arith.constant 0 : index
    %c0_44 = arith.constant 0 : index
    %76 = vector.load %arg6[%c0_43, %c0_44] : memref<576x64xf32, #tpu.memory_space<vmem>>, vector<576x64xf32>
    %cst_45 = arith.constant dense<0.000000e+00> : vector<8x64xf32>
    %77 = tpu.matmul %75, %76, %cst_45 {dimension_numbers = #tpu.dot_dimension_numbers<[1], [0], [0], [1], [0, 0, 1, 1], [], []>} : vector<8x576xf32>, vector<576x64xf32>, vector<8x64xf32> -> vector<8x64xf32>
    %c0_46 = arith.constant 0 : index
    %c0_47 = arith.constant 0 : index
    %78 = vector.load %arg7[%c0_46, %c0_47] : memref<1x64xf32, #tpu.memory_space<vmem>>, vector<1x64xf32>
    %79 = vector.broadcast %78 : vector<1x64xf32> to vector<8x64xf32>
    %80 = arith.addf %77, %79 : vector<8x64xf32>
    %cst_48 = arith.constant 0.000000e+00 : f32
    %81 = vector.broadcast %cst_48 : f32 to vector<8x64xf32>
    %82 = arith.maximumf %80, %81 : vector<8x64xf32>
    %c0_49 = arith.constant 0 : index
    %c0_50 = arith.constant 0 : index
    %83 = vector.load %arg8[%c0_49, %c0_50] : memref<64x512xf32, #tpu.memory_space<vmem>>, vector<64x512xf32>
    %cst_51 = arith.constant dense<0.000000e+00> : vector<8x512xf32>
    %84 = tpu.matmul %82, %83, %cst_51 {dimension_numbers = #tpu.dot_dimension_numbers<[1], [0], [0], [1], [0, 0, 1, 1], [], []>} : vector<8x64xf32>, vector<64x512xf32>, vector<8x512xf32> -> vector<8x512xf32>
    %c0_52 = arith.constant 0 : index
    %c0_53 = arith.constant 0 : index
    %85 = vector.load %arg9[%c0_52, %c0_53] : memref<1x512xf32, #tpu.memory_space<vmem>>, vector<1x512xf32>
    %86 = vector.broadcast %85 : vector<1x512xf32> to vector<8x512xf32>
    %87 = arith.addf %84, %86 : vector<8x512xf32>
    %cst_54 = arith.constant 0.000000e+00 : f32
    %88 = vector.broadcast %cst_54 : f32 to vector<8x512xf32>
    %89 = arith.maximumf %87, %88 : vector<8x512xf32>
    %c0_55 = arith.constant 0 : index
    %c0_56 = arith.constant 0 : index
    %90 = vector.load %arg10[%c0_55, %c0_56] : memref<512x128xf32, #tpu.memory_space<vmem>>, vector<512x128xf32>
    %cst_57 = arith.constant dense<0.000000e+00> : vector<8x128xf32>
    %91 = tpu.matmul %89, %90, %cst_57 {dimension_numbers = #tpu.dot_dimension_numbers<[1], [0], [0], [1], [0, 0, 1, 1], [], []>} : vector<8x512xf32>, vector<512x128xf32>, vector<8x128xf32> -> vector<8x128xf32>
    %c0_58 = arith.constant 0 : index
    %c0_59 = arith.constant 0 : index
    %92 = vector.load %arg11[%c0_58, %c0_59] : memref<1x128xf32, #tpu.memory_space<vmem>>, vector<1x128xf32>
    %93 = vector.broadcast %92 : vector<1x128xf32> to vector<8x128xf32>
    %94 = arith.addf %91, %93 : vector<8x128xf32>
    %c0_60 = arith.constant 0 : index
    %c0_61 = arith.constant 0 : index
    %95 = vector.load %arg12[%c0_60, %c0_61] : memref<8x128xf32, #tpu.memory_space<vmem>>, vector<8x128xf32>
    tpu.vector_store %arg12[%c0_60, %c0_61], %94 {strides = array<i32>} : memref<8x128xf32, #tpu.memory_space<vmem>>, vector<8x128xf32>,
    return
  }
  func.func @transform_0(%arg0: i32) -> (i32, i32, i32, i32) {
    %c0_i32 = arith.constant 0 : i32
    %c0_i32_0 = arith.constant 0 : i32
    %c0_i32_1 = arith.constant 0 : i32
    %c0_i32_2 = arith.constant 0 : i32
    return %arg0, %c0_i32, %c0_i32_0, %c0_i32_1 : i32, i32, i32, i32
  }
  func.func @transform_1(%arg0: i32) -> (i32, i32) {
    %c0_i32 = arith.constant 0 : i32
    %c0_i32_0 = arith.constant 0 : i32
    %c0_i32_1 = arith.constant 0 : i32
    return %c0_i32, %c0_i32_0 : i32, i32
  }
  func.func @transform_2(%arg0: i32) -> (i32, i32) {
    %c0_i32 = arith.constant 0 : i32
    %c0_i32_0 = arith.constant 0 : i32
    %c0_i32_1 = arith.constant 0 : i32
    return %c0_i32, %c0_i32_0 : i32, i32
  }
  func.func @transform_3(%arg0: i32) -> (i32, i32, i32, i32) {
    %c0_i32 = arith.constant 0 : i32
    %c0_i32_0 = arith.constant 0 : i32
    %c0_i32_1 = arith.constant 0 : i32
    %c0_i32_2 = arith.constant 0 : i32
    %c0_i32_3 = arith.constant 0 : i32
    return %c0_i32, %c0_i32_0, %c0_i32_1, %c0_i32_2 : i32, i32, i32, i32
  }
  func.func @transform_4(%arg0: i32) -> (i32, i32) {
    %c0_i32 = arith.constant 0 : i32
    %c0_i32_0 = arith.constant 0 : i32
    %c0_i32_1 = arith.constant 0 : i32
    return %c0_i32, %c0_i32_0 : i32, i32
  }
  func.func @transform_5(%arg0: i32) -> (i32, i32) {
    %c0_i32 = arith.constant 0 : i32
    %c0_i32_0 = arith.constant 0 : i32
    %c0_i32_1 = arith.constant 0 : i32
    return %c0_i32, %c0_i32_0 : i32, i32
  }
  func.func @transform_6(%arg0: i32) -> (i32, i32) {
    %c0_i32 = arith.constant 0 : i32
    %c0_i32_0 = arith.constant 0 : i32
    %c0_i32_1 = arith.constant 0 : i32
    return %c0_i32, %c0_i32_0 : i32, i32
  }
  func.func @transform_7(%arg0: i32) -> (i32, i32) {
    %c0_i32 = arith.constant 0 : i32
    %c0_i32_0 = arith.constant 0 : i32
    %c0_i32_1 = arith.constant 0 : i32
    return %c0_i32, %c0_i32_0 : i32, i32
  }
  func.func @transform_8(%arg0: i32) -> (i32, i32) {
    %c0_i32 = arith.constant 0 : i32
    %c0_i32_0 = arith.constant 0 : i32
    %c0_i32_1 = arith.constant 0 : i32
    return %c0_i32, %c0_i32_0 : i32, i32
  }
  func.func @transform_9(%arg0: i32) -> (i32, i32) {
    %c0_i32 = arith.constant 0 : i32
    %c0_i32_0 = arith.constant 0 : i32
    %c0_i32_1 = arith.constant 0 : i32
    return %c0_i32, %c0_i32_0 : i32, i32
  }
  func.func @transform_10(%arg0: i32) -> (i32, i32) {
    %c0_i32 = arith.constant 0 : i32
    %c0_i32_0 = arith.constant 0 : i32
    %c0_i32_1 = arith.constant 0 : i32
    return %c0_i32, %c0_i32_0 : i32, i32
  }
  func.func @transform_11(%arg0: i32) -> (i32, i32) {
    %c0_i32 = arith.constant 0 : i32
    %c0_i32_0 = arith.constant 0 : i32
    return %arg0, %c0_i32 : i32, i32
  }
}

</mosaic_0001>

<llo_original>
// kernel: dqn_forward.1
$region0: #{dqn_forward.1}
  #allocation0 [shape = 'u32[]', space=smem, size = 0x4, offset = 0x4, fixed_abs, tag = 'smem constant byte address 0x4 - core index']
  #allocation1 [shape = 'u32[72,128]{1,0:T(1,128)}', space=vmem, size = 0x9000, scoped, tag = 'internal scratch']
  %s0 = inlined_call_operand.vmem [shape: f32[8,9,9,64], index: 0, kind: input, shape index: {}]
  %s1 = inlined_call_operand.vmem [shape: f32[256,32], index: 1, kind: input, shape index: {}]
  %s2 = inlined_call_operand.vmem [shape: f32[1,32], index: 2, kind: input, shape index: {}]
  %s3 = inlined_call_operand.vmem [shape: f32[2,2,128,64], index: 3, kind: input, shape index: {}]
  %s4 = inlined_call_operand.vmem [shape: f32[1,64], index: 4, kind: input, shape index: {}]
  %s5 = inlined_call_operand.vmem [shape: f32[576,64], index: 5, kind: input, shape index: {}]
  %s6 = inlined_call_operand.vmem [shape: f32[1,64], index: 6, kind: input, shape index: {}]
  %s7 = inlined_call_operand.vmem [shape: f32[64,512], index: 7, kind: input, shape index: {}]
  %s8 = inlined_call_operand.vmem [shape: f32[1,512], index: 8, kind: input, shape index: {}]
  %s9 = inlined_call_operand.vmem [shape: f32[512,128], index: 9, kind: input, shape index: {}]
  %s10 = inlined_call_operand.vmem [shape: f32[1,128], index: 10, kind: input, shape index: {}]
  %s11 = inlined_call_operand.vmem [shape: f32[8,128], index: 11, kind: output, shape index: {}]
  %s12 = sld [smem:[#allocation0]]
  $region54: #{dqn_forward.1} parent=0
    _
  %s14 = ssub.s32 1, %s12
  %s15 = scalar_select 0, %s14, %s12
  // Predicated region
  $region2: #{dqn_forward.1} parent=0 // pred_check
    _
  $region3: #{dqn_forward.1} parent=0 // pred_check_branch
    %17 = sbr.rel (0) target = $region5
  $region4: #{dqn_forward.1} parent=0 // pred_region
    _
  $region5: #{dqn_forward.1} parent=0 // pred_fallthru
    _
  // Predicated region
  $region6: #{dqn_forward.1} parent=0 // pred_check
    _
  $region7: #{dqn_forward.1} parent=0 // pred_check_branch
    %19 = sbr.rel (0) target = $region9
  $region8: #{dqn_forward.1} parent=0 // pred_region
    _
  $region9: #{dqn_forward.1} parent=0 // pred_fallthru
    _
  // Predicated region
  $region10: #{dqn_forward.1} parent=0 // pred_check
    _
  $region11: #{dqn_forward.1} parent=0 // pred_check_branch
    %21 = sbr.rel (0) target = $region13
  $region12: #{dqn_forward.1} parent=0 // pred_region
    _
  $region13: #{dqn_forward.1} parent=0 // pred_fallthru
    _
  // Predicated region
  $region14: #{dqn_forward.1} parent=0 // pred_check
    _
  $region15: #{dqn_forward.1} parent=0 // pred_check_branch
    %23 = sbr.rel (0) target = $region17
  $region16: #{dqn_forward.1} parent=0 // pred_region
    _
  $region17: #{dqn_forward.1} parent=0 // pred_fallthru
    _
  // Predicated region
  $region18: #{dqn_forward.1} parent=0 // pred_check
    _
  $region19: #{dqn_forward.1} parent=0 // pred_check_branch
    %25 = sbr.rel (0) target = $region21
  $region20: #{dqn_forward.1} parent=0 // pred_region
    _
  $region21: #{dqn_forward.1} parent=0 // pred_fallthru
    _
  // Predicated region
  $region22: #{dqn_forward.1} parent=0 // pred_check
    _
  $region23: #{dqn_forward.1} parent=0 // pred_check_branch
    %27 = sbr.rel (0) target = $region25
  $region24: #{dqn_forward.1} parent=0 // pred_region
    _
  $region25: #{dqn_forward.1} parent=0 // pred_fallthru
    _
  // Predicated region
  $region26: #{dqn_forward.1} parent=0 // pred_check
    _
  $region27: #{dqn_forward.1} parent=0 // pred_check_branch
    %29 = sbr.rel (0) target = $region29
  $region28: #{dqn_forward.1} parent=0 // pred_region
    _
  $region29: #{dqn_forward.1} parent=0 // pred_fallthru
    _
  // Predicated region
  $region30: #{dqn_forward.1} parent=0 // pred_check
    _
  $region31: #{dqn_forward.1} parent=0 // pred_check_branch
    %31 = sbr.rel (0) target = $region33
  $region32: #{dqn_forward.1} parent=0 // pred_region
    _
  $region33: #{dqn_forward.1} parent=0 // pred_fallthru
    _
  // Predicated region
  $region34: #{dqn_forward.1} parent=0 // pred_check
    _
  $region35: #{dqn_forward.1} parent=0 // pred_check_branch
    %33 = sbr.rel (0) target = $region37
  $region36: #{dqn_forward.1} parent=0 // pred_region
    _
  $region37: #{dqn_forward.1} parent=0 // pred_fallthru
    _
  // Predicated region
  $region38: #{dqn_forward.1} parent=0 // pred_check
    _
  $region39: #{dqn_forward.1} parent=0 // pred_check_branch
    %35 = sbr.rel (0) target = $region41
  $region40: #{dqn_forward.1} parent=0 // pred_region
    _
  $region41: #{dqn_forward.1} parent=0 // pred_fallthru
    _
  // Predicated region
  $region42: #{dqn_forward.1} parent=0 // pred_check
    _
  $region43: #{dqn_forward.1} parent=0 // pred_check_branch
    %37 = sbr.rel (0) target = $region45
  $region44: #{dqn_forward.1} parent=0 // pred_region
    _
  $region45: #{dqn_forward.1} parent=0 // pred_fallthru
    _
  %v38 = vld [vmem:[%s0] sm:$0xff]
  %v39 = vld [vmem:[%s0 + $0x10] sm:$0xff]
  %v40 = vld [vmem:[%s0 + $0x20] sm:$0xff]
  %v41 = vld [vmem:[%s0 + $0x30] sm:$0xff]
  %v42 = vld [vmem:[%s0 + $0x40] sm:$0xff]
  %v43 = vld [vmem:[%s0 + $0x50] sm:$0xff]
  %v44 = vld [vmem:[%s0 + $0x60] sm:$0xff]
  %v45 = vld [vmem:[%s0 + $0x70] sm:$0xff]
  %v46 = vld [vmem:[%s0 + $0x90] sm:$0xff]
  %v47 = vld [vmem:[%s0 + $0xa0] sm:$0xff]
  %v48 = vld [vmem:[%s0 + $0xb0] sm:$0xff]
  %v49 = vld [vmem:[%s0 + $0xc0] sm:$0xff]
  %v50 = vld [vmem:[%s0 + $0xd0] sm:$0xff]
  %v51 = vld [vmem:[%s0 + $0xe0] sm:$0xff]
  %v52 = vld [vmem:[%s0 + $0xf0] sm:$0xff]
  %v53 = vld [vmem:[%s0 + $0x100] sm:$0xff]
  %v54 = vld [vmem:[%s0 + $0x120] sm:$0xff]
  %v55 = vld [vmem:[%s0 + $0x130] sm:$0xff]
  %v56 = vld [vmem:[%s0 + $0x140] sm:$0xff]
  %v57 = vld [vmem:[%s0 + $0x150] sm:$0xff]
  %v58 = vld [vmem:[%s0 + $0x160] sm:$0xff]
  %v59 = vld [vmem:[%s0 + $0x170] sm:$0xff]
  %v60 = vld [vmem:[%s0 + $0x180] sm:$0xff]
  %v61 = vld [vmem:[%s0 + $0x190] sm:$0xff]
  %v62 = vld [vmem:[%s0 + $0x1b0] sm:$0xff]
  %v63 = vld [vmem:[%s0 + $0x1c0] sm:$0xff]
  %v64 = vld [vmem:[%s0 + $0x1d0] sm:$0xff]
  %v65 = vld [vmem:[%s0 + $0x1e0] sm:$0xff]
  %v66 = vld [vmem:[%s0 + $0x1f0] sm:$0xff]
  %v67 = vld [vmem:[%s0 + $0x200] sm:$0xff]
  %v68 = vld [vmem:[%s0 + $0x210] sm:$0xff]
  %v69 = vld [vmem:[%s0 + $0x220] sm:$0xff]
  %v70 = vld [vmem:[%s0 + $0x240] sm:$0xff]
  %v71 = vld [vmem:[%s0 + $0x250] sm:$0xff]
  %v72 = vld [vmem:[%s0 + $0x260] sm:$0xff]
  %v73 = vld [vmem:[%s0 + $0x270] sm:$0xff]
  %v74 = vld [vmem:[%s0 + $0x280] sm:$0xff]
  %v75 = vld [vmem:[%s0 + $0x290] sm:$0xff]
  %v76 = vld [vmem:[%s0 + $0x2a0] sm:$0xff]
  %v77 = vld [vmem:[%s0 + $0x2b0] sm:$0xff]
  %v78 = vld [vmem:[%s0 + $0x2d0] sm:$0xff]
  %v79 = vld [vmem:[%s0 + $0x2e0] sm:$0xff]
  %v80 = vld [vmem:[%s0 + $0x2f0] sm:$0xff]
  %v81 = vld [vmem:[%s0 + $0x300] sm:$0xff]
  %v82 = vld [vmem:[%s0 + $0x310] sm:$0xff]
  %v83 = vld [vmem:[%s0 + $0x320] sm:$0xff]
  %v84 = vld [vmem:[%s0 + $0x330] sm:$0xff]
  %v85 = vld [vmem:[%s0 + $0x340] sm:$0xff]
  %v86 = vld [vmem:[%s0 + $0x360] sm:$0xff]
  %v87 = vld [vmem:[%s0 + $0x370] sm:$0xff]
  %v88 = vld [vmem:[%s0 + $0x380] sm:$0xff]
  %v89 = vld [vmem:[%s0 + $0x390] sm:$0xff]
  %v90 = vld [vmem:[%s0 + $0x3a0] sm:$0xff]
  %v91 = vld [vmem:[%s0 + $0x3b0] sm:$0xff]
  %v92 = vld [vmem:[%s0 + $0x3c0] sm:$0xff]
  %v93 = vld [vmem:[%s0 + $0x3d0] sm:$0xff]
  %v94 = vld [vmem:[%s0 + $0x3f0] sm:$0xff]
  %v95 = vld [vmem:[%s0 + $0x400] sm:$0xff]
  %v96 = vld [vmem:[%s0 + $0x410] sm:$0xff]
  %v97 = vld [vmem:[%s0 + $0x420] sm:$0xff]
  %v98 = vld [vmem:[%s0 + $0x430] sm:$0xff]
  %v99 = vld [vmem:[%s0 + $0x440] sm:$0xff]
  %v100 = vld [vmem:[%s0 + $0x450] sm:$0xff]
  %v101 = vld [vmem:[%s0 + $0x460] sm:$0xff]
  %v102 = vld [vmem:[%s0 + $0x1] sm:$0xff]
  %v103 = vld [vmem:[%s0 + $0x11] sm:$0xff]
  %v104 = vld [vmem:[%s0 + $0x21] sm:$0xff]
  %v105 = vld [vmem:[%s0 + $0x31] sm:$0xff]
  %v106 = vld [vmem:[%s0 + $0x41] sm:$0xff]
  %v107 = vld [vmem:[%s0 + $0x51] sm:$0xff]
  %v108 = vld [vmem:[%s0 + $0x61] sm:$0xff]
  %v109 = vld [vmem:[%s0 + $0x71] sm:$0xff]
  %v110 = vld [vmem:[%s0 + $0x91] sm:$0xff]
  %v111 = vld [vmem:[%s0 + $0xa1] sm:$0xff]
  %v112 = vld [vmem:[%s0 + $0xb1] sm:$0xff]
  %v113 = vld [vmem:[%s0 + $0xc1] sm:$0xff]
  %v114 = vld [vmem:[%s0 + $0xd1] sm:$0xff]
  %v115 = vld [vmem:[%s0 + $0xe1] sm:$0xff]
  %v116 = vld [vmem:[%s0 + $0xf1] sm:$0xff]
  %v117 = vld [vmem:[%s0 + $0x101] sm:$0xff]
  %v118 = vld [vmem:[%s0 + $0x121] sm:$0xff]
  %v119 = vld [vmem:[%s0 + $0x131] sm:$0xff]
  %v120 = vld [vmem:[%s0 + $0x141] sm:$0xff]
  %v121 = vld [vmem:[%s0 + $0x151] sm:$0xff]
  %v122 = vld [vmem:[%s0 + $0x161] sm:$0xff]
  %v123 = vld [vmem:[%s0 + $0x171] sm:$0xff]
  %v124 = vld [vmem:[%s0 + $0x181] sm:$0xff]
  %v125 = vld [vmem:[%s0 + $0x191] sm:$0xff]
  %v126 = vld [vmem:[%s0 + $0x1b1] sm:$0xff]
  %v127 = vld [vmem:[%s0 + $0x1c1] sm:$0xff]
  %v128 = vld [vmem:[%s0 + $0x1d1] sm:$0xff]
  %v129 = vld [vmem:[%s0 + $0x1e1] sm:$0xff]
  %v130 = vld [vmem:[%s0 + $0x1f1] sm:$0xff]
  %v131 = vld [vmem:[%s0 + $0x201] sm:$0xff]
  %v132 = vld [vmem:[%s0 + $0x211] sm:$0xff]
  %v133 = vld [vmem:[%s0 + $0x221] sm:$0xff]
  %v134 = vld [vmem:[%s0 + $0x241] sm:$0xff]
  %v135 = vld [vmem:[%s0 + $0x251] sm:$0xff]
  %v136 = vld [vmem:[%s0 + $0x261] sm:$0xff]
  %v137 = vld [vmem:[%s0 + $0x271] sm:$0xff]
  %v138 = vld [vmem:[%s0 + $0x281] sm:$0xff]
  %v139 = vld [vmem:[%s0 + $0x291] sm:$0xff]
  %v140 = vld [vmem:[%s0 + $0x2a1] sm:$0xff]
  %v141 = vld [vmem:[%s0 + $0x2b1] sm:$0xff]
  %v142 = vld [vmem:[%s0 + $0x2d1] sm:$0xff]
  %v143 = vld [vmem:[%s0 + $0x2e1] sm:$0xff]
  %v144 = vld [vmem:[%s0 + $0x2f1] sm:$0xff]
  %v145 = vld [vmem:[%s0 + $0x301] sm:$0xff]
  %v146 = vld [vmem:[%s0 + $0x311] sm:$0xff]
  %v147 = vld [vmem:[%s0 + $0x321] sm:$0xff]
  %v148 = vld [vmem:[%s0 + $0x331] sm:$0xff]
  %v149 = vld [vmem:[%s0 + $0x341] sm:$0xff]
  %v150 = vld [vmem:[%s0 + $0x361] sm:$0xff]
  %v151 = vld [vmem:[%s0 + $0x371] sm:$0xff]
  %v152 = vld [vmem:[%s0 + $0x381] sm:$0xff]
  %v153 = vld [vmem:[%s0 + $0x391] sm:$0xff]
  %v154 = vld [vmem:[%s0 + $0x3a1] sm:$0xff]
  %v155 = vld [vmem:[%s0 + $0x3b1] sm:$0xff]
  %v156 = vld [vmem:[%s0 + $0x3c1] sm:$0xff]
  %v157 = vld [vmem:[%s0 + $0x3d1] sm:$0xff]
  %v158 = vld [vmem:[%s0 + $0x3f1] sm:$0xff]
  %v159 = vld [vmem:[%s0 + $0x401] sm:$0xff]
  %v160 = vld [vmem:[%s0 + $0x411] sm:$0xff]
  %v161 = vld [vmem:[%s0 + $0x421] sm:$0xff]
  %v162 = vld [vmem:[%s0 + $0x431] sm:$0xff]
  %v163 = vld [vmem:[%s0 + $0x441] sm:$0xff]
  %v164 = vld [vmem:[%s0 + $0x451] sm:$0xff]
  %v165 = vld [vmem:[%s0 + $0x461] sm:$0xff]
  %s166 = scalar_lea.vmem %s0, 16
  %v167 = vld [vmem:[%s166] sm:$0xff]
  %v168 = vld [vmem:[%s166 + $0x10] sm:$0xff]
  %v169 = vld [vmem:[%s166 + $0x20] sm:$0xff]
  %v170 = vld [vmem:[%s166 + $0x30] sm:$0xff]
  %v171 = vld [vmem:[%s166 + $0x40] sm:$0xff]
  %v172 = vld [vmem:[%s166 + $0x50] sm:$0xff]
  %v173 = vld [vmem:[%s166 + $0x60] sm:$0xff]
  %v174 = vld [vmem:[%s166 + $0x70] sm:$0xff]
  %v175 = vld [vmem:[%s166 + $0x90] sm:$0xff]
  %v176 = vld [vmem:[%s166 + $0xa0] sm:$0xff]
  %v177 = vld [vmem:[%s166 + $0xb0] sm:$0xff]
  %v178 = vld [vmem:[%s166 + $0xc0] sm:$0xff]
  %v179 = vld [vmem:[%s166 + $0xd0] sm:$0xff]
  %v180 = vld [vmem:[%s166 + $0xe0] sm:$0xff]
  %v181 = vld [vmem:[%s166 + $0xf0] sm:$0xff]
  %v182 = vld [vmem:[%s166 + $0x100] sm:$0xff]
  %v183 = vld [vmem:[%s166 + $0x120] sm:$0xff]
  %v184 = vld [vmem:[%s166 + $0x130] sm:$0xff]
  %v185 = vld [vmem:[%s166 + $0x140] sm:$0xff]
  %v186 = vld [vmem:[%s166 + $0x150] sm:$0xff]
  %v187 = vld [vmem:[%s166 + $0x160] sm:$0xff]
  %v188 = vld [vmem:[%s166 + $0x170] sm:$0xff]
  %v189 = vld [vmem:[%s166 + $0x180] sm:$0xff]
  %v190 = vld [vmem:[%s166 + $0x190] sm:$0xff]
  %v191 = vld [vmem:[%s166 + $0x1b0] sm:$0xff]
  %v192 = vld [vmem:[%s166 + $0x1c0] sm:$0xff]
  %v193 = vld [vmem:[%s166 + $0x1d0] sm:$0xff]
  %v194 = vld [vmem:[%s166 + $0x1e0] sm:$0xff]
  %v195 = vld [vmem:[%s166 + $0x1f0] sm:$0xff]
  %v196 = vld [vmem:[%s166 + $0x200] sm:$0xff]
  %v197 = vld [vmem:[%s166 + $0x210] sm:$0xff]
  %v198 = vld [vmem:[%s166 + $0x220] sm:$0xff]
  %v199 = vld [vmem:[%s166 + $0x240] sm:$0xff]
  %v200 = vld [vmem:[%s166 + $0x250] sm:$0xff]
  %v201 = vld [vmem:[%s166 + $0x260] sm:$0xff]
  %v202 = vld [vmem:[%s166 + $0x270] sm:$0xff]
  %v203 = vld [vmem:[%s166 + $0x280] sm:$0xff]
  %v204 = vld [vmem:[%s166 + $0x290] sm:$0xff]
  %v205 = vld [vmem:[%s166 + $0x2a0] sm:$0xff]
  %v206 = vld [vmem:[%s166 + $0x2b0] sm:$0xff]
  %v207 = vld [vmem:[%s166 + $0x2d0] sm:$0xff]
  %v208 = vld [vmem:[%s166 + $0x2e0] sm:$0xff]
  %v209 = vld [vmem:[%s166 + $0x2f0] sm:$0xff]
  %v210 = vld [vmem:[%s166 + $0x300] sm:$0xff]
  %v211 = vld [vmem:[%s166 + $0x310] sm:$0xff]
  %v212 = vld [vmem:[%s166 + $0x320] sm:$0xff]
  %v213 = vld [vmem:[%s166 + $0x330] sm:$0xff]
  %v214 = vld [vmem:[%s166 + $0x340] sm:$0xff]
  %v215 = vld [vmem:[%s166 + $0x360] sm:$0xff]
  %v216 = vld [vmem:[%s166 + $0x370] sm:$0xff]
  %v217 = vld [vmem:[%s166 + $0x380] sm:$0xff]
  %v218 = vld [vmem:[%s166 + $0x390] sm:$0xff]
  %v219 = vld [vmem:[%s166 + $0x3a0] sm:$0xff]
  %v220 = vld [vmem:[%s166 + $0x3b0] sm:$0xff]
  %v221 = vld [vmem:[%s166 + $0x3c0] sm:$0xff]
  %v222 = vld [vmem:[%s166 + $0x3d0] sm:$0xff]
  %v223 = vld [vmem:[%s166 + $0x3f0] sm:$0xff]
  %v224 = vld [vmem:[%s166 + $0x400] sm:$0xff]
  %v225 = vld [vmem:[%s166 + $0x410] sm:$0xff]
  %v226 = vld [vmem:[%s166 + $0x420] sm:$0xff]
  %v227 = vld [vmem:[%s166 + $0x430] sm:$0xff]
  %v228 = vld [vmem:[%s166 + $0x440] sm:$0xff]
  %v229 = vld [vmem:[%s166 + $0x450] sm:$0xff]
  %v230 = vld [vmem:[%s166 + $0x460] sm:$0xff]
  %v231 = vld [vmem:[%s166 + $0x1] sm:$0xff]
  %v232 = vld [vmem:[%s166 + $0x11] sm:$0xff]
  %v233 = vld [vmem:[%s166 + $0x21] sm:$0xff]
  %v234 = vld [vmem:[%s166 + $0x31] sm:$0xff]
  %v235 = vld [vmem:[%s166 + $0x41] sm:$0xff]
  %v236 = vld [vmem:[%s166 + $0x51] sm:$0xff]
  %v237 = vld [vmem:[%s166 + $0x61] sm:$0xff]
  %v238 = vld [vmem:[%s166 + $0x71] sm:$0xff]
  %v239 = vld [vmem:[%s166 + $0x91] sm:$0xff]
  %v240 = vld [vmem:[%s166 + $0xa1] sm:$0xff]
  %v241 = vld [vmem:[%s166 + $0xb1] sm:$0xff]
  %v242 = vld [vmem:[%s166 + $0xc1] sm:$0xff]
  %v243 = vld [vmem:[%s166 + $0xd1] sm:$0xff]
  %v244 = vld [vmem:[%s166 + $0xe1] sm:$0xff]
  %v245 = vld [vmem:[%s166 + $0xf1] sm:$0xff]
  %v246 = vld [vmem:[%s166 + $0x101] sm:$0xff]
  %v247 = vld [vmem:[%s166 + $0x121] sm:$0xff]
  %v248 = vld [vmem:[%s166 + $0x131] sm:$0xff]
  %v249 = vld [vmem:[%s166 + $0x141] sm:$0xff]
  %v250 = vld [vmem:[%s166 + $0x151] sm:$0xff]
  %v251 = vld [vmem:[%s166 + $0x161] sm:$0xff]
  %v252 = vld [vmem:[%s166 + $0x171] sm:$0xff]
  %v253 = vld [vmem:[%s166 + $0x181] sm:$0xff]
  %v254 = vld [vmem:[%s166 + $0x191] sm:$0xff]
  %v255 = vld [vmem:[%s166 + $0x1b1] sm:$0xff]
  %v256 = vld [vmem:[%s166 + $0x1c1] sm:$0xff]
  %v257 = vld [vmem:[%s166 + $0x1d1] sm:$0xff]
  %v258 = vld [vmem:[%s166 + $0x1e1] sm:$0xff]
  %v259 = vld [vmem:[%s166 + $0x1f1] sm:$0xff]
  %v260 = vld [vmem:[%s166 + $0x201] sm:$0xff]
  %v261 = vld [vmem:[%s166 + $0x211] sm:$0xff]
  %v262 = vld [vmem:[%s166 + $0x221] sm:$0xff]
  %v263 = vld [vmem:[%s166 + $0x241] sm:$0xff]
  %v264 = vld [vmem:[%s166 + $0x251] sm:$0xff]
  %v265 = vld [vmem:[%s166 + $0x261] sm:$0xff]
  %v266 = vld [vmem:[%s166 + $0x271] sm:$0xff]
  %v267 = vld [vmem:[%s166 + $0x281] sm:$0xff]
  %v268 = vld [vmem:[%s166 + $0x291] sm:$0xff]
  %v269 = vld [vmem:[%s166 + $0x2a1] sm:$0xff]
  %v270 = vld [vmem:[%s166 + $0x2b1] sm:$0xff]
  %v271 = vld [vmem:[%s166 + $0x2d1] sm:$0xff]
  %v272 = vld [vmem:[%s166 + $0x2e1] sm:$0xff]
  %v273 = vld [vmem:[%s166 + $0x2f1] sm:$0xff]
  %v274 = vld [vmem:[%s166 + $0x301] sm:$0xff]
  %v275 = vld [vmem:[%s166 + $0x311] sm:$0xff]
  %v276 = vld [vmem:[%s166 + $0x321] sm:$0xff]
  %v277 = vld [vmem:[%s166 + $0x331] sm:$0xff]
  %v278 = vld [vmem:[%s166 + $0x341] sm:$0xff]
  %v279 = vld [vmem:[%s166 + $0x361] sm:$0xff]
  %v280 = vld [vmem:[%s166 + $0x371] sm:$0xff]
  %v281 = vld [vmem:[%s166 + $0x381] sm:$0xff]
  %v282 = vld [vmem:[%s166 + $0x391] sm:$0xff]
  %v283 = vld [vmem:[%s166 + $0x3a1] sm:$0xff]
  %v284 = vld [vmem:[%s166 + $0x3b1] sm:$0xff]
  %v285 = vld [vmem:[%s166 + $0x3c1] sm:$0xff]
  %v286 = vld [vmem:[%s166 + $0x3d1] sm:$0xff]
  %v287 = vld [vmem:[%s166 + $0x3f1] sm:$0xff]
  %v288 = vld [vmem:[%s166 + $0x401] sm:$0xff]
  %v289 = vld [vmem:[%s166 + $0x411] sm:$0xff]
  %v290 = vld [vmem:[%s166 + $0x421] sm:$0xff]
  %v291 = vld [vmem:[%s166 + $0x431] sm:$0xff]
  %v292 = vld [vmem:[%s166 + $0x441] sm:$0xff]
  %v293 = vld [vmem:[%s166 + $0x451] sm:$0xff]
  %v294 = vld [vmem:[%s166 + $0x461] sm:$0xff]
  %359 = vrot.lane.b32.xlu0 %v102, 64
  %v360 = vpop.permute.xlu0 %359
  %361 = vrot.lane.b32.xlu0 %v103, 64
  %v362 = vpop.permute.xlu0 %361
  %363 = vrot.lane.b32.xlu0 %v104, 64
  %v364 = vpop.permute.xlu0 %363
  %365 = vrot.lane.b32.xlu0 %v105, 64
  %v366 = vpop.permute.xlu0 %365
  %367 = vrot.lane.b32.xlu0 %v106, 64
  %v368 = vpop.permute.xlu0 %367
  %369 = vrot.lane.b32.xlu0 %v107, 64
  %v370 = vpop.permute.xlu0 %369
  %371 = vrot.lane.b32.xlu0 %v108, 64
  %v372 = vpop.permute.xlu0 %371
  %373 = vrot.lane.b32.xlu0 %v109, 64
  %v374 = vpop.permute.xlu0 %373
  %375 = vrot.lane.b32.xlu0 %v110, 64
  %v376 = vpop.permute.xlu0 %375
  %377 = vrot.lane.b32.xlu0 %v111, 64
  %v378 = vpop.permute.xlu0 %377
  %379 = vrot.lane.b32.xlu0 %v112, 64
  %v380 = vpop.permute.xlu0 %379
  %381 = vrot.lane.b32.xlu0 %v113, 64
  %v382 = vpop.permute.xlu0 %381
  %383 = vrot.lane.b32.xlu0 %v114, 64
  %v384 = vpop.permute.xlu0 %383
  %385 = vrot.lane.b32.xlu0 %v115, 64
  %v386 = vpop.permute.xlu0 %385
  %387 = vrot.lane.b32.xlu0 %v116, 64
  %v388 = vpop.permute.xlu0 %387
  %389 = vrot.lane.b32.xlu0 %v117, 64
  %v390 = vpop.permute.xlu0 %389
  %391 = vrot.lane.b32.xlu0 %v118, 64
  %v392 = vpop.permute.xlu0 %391
  %393 = vrot.lane.b32.xlu0 %v119, 64
  %v394 = vpop.permute.xlu0 %393
  %395 = vrot.lane.b32.xlu0 %v120, 64
  %v396 = vpop.permute.xlu0 %395
  %397 = vrot.lane.b32.xlu0 %v121, 64
  %v398 = vpop.permute.xlu0 %397
  %399 = vrot.lane.b32.xlu0 %v122, 64
  %v400 = vpop.permute.xlu0 %399
  %401 = vrot.lane.b32.xlu0 %v123, 64
  %v402 = vpop.permute.xlu0 %401
  %403 = vrot.lane.b32.xlu0 %v124, 64
  %v404 = vpop.permute.xlu0 %403
  %405 = vrot.lane.b32.xlu0 %v125, 64
  %v406 = vpop.permute.xlu0 %405
  %407 = vrot.lane.b32.xlu0 %v126, 64
  %v408 = vpop.permute.xlu0 %407
  %409 = vrot.lane.b32.xlu0 %v127, 64
  %v410 = vpop.permute.xlu0 %409
  %411 = vrot.lane.b32.xlu0 %v128, 64
  %v412 = vpop.permute.xlu0 %411
  %413 = vrot.lane.b32.xlu0 %v129, 64
  %v414 = vpop.permute.xlu0 %413
  %415 = vrot.lane.b32.xlu0 %v130, 64
  %v416 = vpop.permute.xlu0 %415
  %417 = vrot.lane.b32.xlu0 %v131, 64
  %v418 = vpop.permute.xlu0 %417
  %419 = vrot.lane.b32.xlu0 %v132, 64
  %v420 = vpop.permute.xlu0 %419
  %421 = vrot.lane.b32.xlu0 %v133, 64
  %v422 = vpop.permute.xlu0 %421
  %423 = vrot.lane.b32.xlu0 %v134, 64
  %v424 = vpop.permute.xlu0 %423
  %425 = vrot.lane.b32.xlu0 %v135, 64
  %v426 = vpop.permute.xlu0 %425
  %427 = vrot.lane.b32.xlu0 %v136, 64
  %v428 = vpop.permute.xlu0 %427
  %429 = vrot.lane.b32.xlu0 %v137, 64
  %v430 = vpop.permute.xlu0 %429
  %431 = vrot.lane.b32.xlu0 %v138, 64
  %v432 = vpop.permute.xlu0 %431
  %433 = vrot.lane.b32.xlu0 %v139, 64
  %v434 = vpop.permute.xlu0 %433
  %435 = vrot.lane.b32.xlu0 %v140, 64
  %v436 = vpop.permute.xlu0 %435
  %437 = vrot.lane.b32.xlu0 %v141, 64
  %v438 = vpop.permute.xlu0 %437
  %439 = vrot.lane.b32.xlu0 %v142, 64
  %v440 = vpop.permute.xlu0 %439
  %441 = vrot.lane.b32.xlu0 %v143, 64
  %v442 = vpop.permute.xlu0 %441
  %443 = vrot.lane.b32.xlu0 %v144, 64
  %v444 = vpop.permute.xlu0 %443
  %445 = vrot.lane.b32.xlu0 %v145, 64
  %v446 = vpop.permute.xlu0 %445
  %447 = vrot.lane.b32.xlu0 %v146, 64
  %v448 = vpop.permute.xlu0 %447
  %449 = vrot.lane.b32.xlu0 %v147, 64
  %v450 = vpop.permute.xlu0 %449
  %451 = vrot.lane.b32.xlu0 %v148, 64
  %v452 = vpop.permute.xlu0 %451
  %453 = vrot.lane.b32.xlu0 %v149, 64
  %v454 = vpop.permute.xlu0 %453
  %455 = vrot.lane.b32.xlu0 %v150, 64
  %v456 = vpop.permute.xlu0 %455
  %457 = vrot.lane.b32.xlu0 %v151, 64
  %v458 = vpop.permute.xlu0 %457
  %459 = vrot.lane.b32.xlu0 %v152, 64
  %v460 = vpop.permute.xlu0 %459
  %461 = vrot.lane.b32.xlu0 %v153, 64
  %v462 = vpop.permute.xlu0 %461
  %463 = vrot.lane.b32.xlu0 %v154, 64
  %v464 = vpop.permute.xlu0 %463
  %465 = vrot.lane.b32.xlu0 %v155, 64
  %v466 = vpop.permute.xlu0 %465
  %467 = vrot.lane.b32.xlu0 %v156, 64
  %v468 = vpop.permute.xlu0 %467
  %469 = vrot.lane.b32.xlu0 %v157, 64
  %v470 = vpop.permute.xlu0 %469
  %471 = vrot.lane.b32.xlu0 %v158, 64
  %v472 = vpop.permute.xlu0 %471
  %473 = vrot.lane.b32.xlu0 %v159, 64
  %v474 = vpop.permute.xlu0 %473
  %475 = vrot.lane.b32.xlu0 %v160, 64
  %v476 = vpop.permute.xlu0 %475
  %477 = vrot.lane.b32.xlu0 %v161, 64
  %v478 = vpop.permute.xlu0 %477
  %479 = vrot.lane.b32.xlu0 %v162, 64
  %v480 = vpop.permute.xlu0 %479
  %481 = vrot.lane.b32.xlu0 %v163, 64
  %v482 = vpop.permute.xlu0 %481
  %483 = vrot.lane.b32.xlu0 %v164, 64
  %v484 = vpop.permute.xlu0 %483
  %485 = vrot.lane.b32.xlu0 %v165, 64
  %v486 = vpop.permute.xlu0 %485
  %615 = vrot.lane.b32.xlu0 %v231, 64
  %v616 = vpop.permute.xlu0 %615
  %617 = vrot.lane.b32.xlu0 %v232, 64
  %v618 = vpop.permute.xlu0 %617
  %619 = vrot.lane.b32.xlu0 %v233, 64
  %v620 = vpop.permute.xlu0 %619
  %621 = vrot.lane.b32.xlu0 %v234, 64
  %v622 = vpop.permute.xlu0 %621
  %623 = vrot.lane.b32.xlu0 %v235, 64
  %v624 = vpop.permute.xlu0 %623
  %625 = vrot.lane.b32.xlu0 %v236, 64
  %v626 = vpop.permute.xlu0 %625
  %627 = vrot.lane.b32.xlu0 %v237, 64
  %v628 = vpop.permute.xlu0 %627
  %629 = vrot.lane.b32.xlu0 %v238, 64
  %v630 = vpop.permute.xlu0 %629
  %631 = vrot.lane.b32.xlu0 %v239, 64
  %v632 = vpop.permute.xlu0 %631
  %633 = vrot.lane.b32.xlu0 %v240, 64
  %v634 = vpop.permute.xlu0 %633
  %635 = vrot.lane.b32.xlu0 %v241, 64
  %v636 = vpop.permute.xlu0 %635
  %637 = vrot.lane.b32.xlu0 %v242, 64
  %v638 = vpop.permute.xlu0 %637
  %639 = vrot.lane.b32.xlu0 %v243, 64
  %v640 = vpop.permute.xlu0 %639
  %641 = vrot.lane.b32.xlu0 %v244, 64
  %v642 = vpop.permute.xlu0 %641
  %643 = vrot.lane.b32.xlu0 %v245, 64
  %v644 = vpop.permute.xlu0 %643
  %645 = vrot.lane.b32.xlu0 %v246, 64
  %v646 = vpop.permute.xlu0 %645
  %647 = vrot.lane.b32.xlu0 %v247, 64
  %v648 = vpop.permute.xlu0 %647
  %649 = vrot.lane.b32.xlu0 %v248, 64
  %v650 = vpop.permute.xlu0 %649
  %651 = vrot.lane.b32.xlu0 %v249, 64
  %v652 = vpop.permute.xlu0 %651
  %653 = vrot.lane.b32.xlu0 %v250, 64
  %v654 = vpop.permute.xlu0 %653
  %655 = vrot.lane.b32.xlu0 %v251, 64
  %v656 = vpop.permute.xlu0 %655
  %657 = vrot.lane.b32.xlu0 %v252, 64
  %v658 = vpop.permute.xlu0 %657
  %659 = vrot.lane.b32.xlu0 %v253, 64
  %v660 = vpop.permute.xlu0 %659
  %661 = vrot.lane.b32.xlu0 %v254, 64
  %v662 = vpop.permute.xlu0 %661
  %663 = vrot.lane.b32.xlu0 %v255, 64
  %v664 = vpop.permute.xlu0 %663
  %665 = vrot.lane.b32.xlu0 %v256, 64
  %v666 = vpop.permute.xlu0 %665
  %667 = vrot.lane.b32.xlu0 %v257, 64
  %v668 = vpop.permute.xlu0 %667
  %669 = vrot.lane.b32.xlu0 %v258, 64
  %v670 = vpop.permute.xlu0 %669
  %671 = vrot.lane.b32.xlu0 %v259, 64
  %v672 = vpop.permute.xlu0 %671
  %673 = vrot.lane.b32.xlu0 %v260, 64
  %v674 = vpop.permute.xlu0 %673
  %675 = vrot.lane.b32.xlu0 %v261, 64
  %v676 = vpop.permute.xlu0 %675
  %677 = vrot.lane.b32.xlu0 %v262, 64
  %v678 = vpop.permute.xlu0 %677
  %679 = vrot.lane.b32.xlu0 %v263, 64
  %v680 = vpop.permute.xlu0 %679
  %681 = vrot.lane.b32.xlu0 %v264, 64
  %v682 = vpop.permute.xlu0 %681
  %683 = vrot.lane.b32.xlu0 %v265, 64
  %v684 = vpop.permute.xlu0 %683
  %685 = vrot.lane.b32.xlu0 %v266, 64
  %v686 = vpop.permute.xlu0 %685
  %687 = vrot.lane.b32.xlu0 %v267, 64
  %v688 = vpop.permute.xlu0 %687
  %689 = vrot.lane.b32.xlu0 %v268, 64
  %v690 = vpop.permute.xlu0 %689
  %691 = vrot.lane.b32.xlu0 %v269, 64
  %v692 = vpop.permute.xlu0 %691
  %693 = vrot.lane.b32.xlu0 %v270, 64
  %v694 = vpop.permute.xlu0 %693
  %695 = vrot.lane.b32.xlu0 %v271, 64
  %v696 = vpop.permute.xlu0 %695
  %697 = vrot.lane.b32.xlu0 %v272, 64
  %v698 = vpop.permute.xlu0 %697
  %699 = vrot.lane.b32.xlu0 %v273, 64
  %v700 = vpop.permute.xlu0 %699
  %701 = vrot.lane.b32.xlu0 %v274, 64
  %v702 = vpop.permute.xlu0 %701
  %703 = vrot.lane.b32.xlu0 %v275, 64
  %v704 = vpop.permute.xlu0 %703
  %705 = vrot.lane.b32.xlu0 %v276, 64
  %v706 = vpop.permute.xlu0 %705
  %707 = vrot.lane.b32.xlu0 %v277, 64
  %v708 = vpop.permute.xlu0 %707
  %709 = vrot.lane.b32.xlu0 %v278, 64
  %v710 = vpop.permute.xlu0 %709
  %711 = vrot.lane.b32.xlu0 %v279, 64
  %v712 = vpop.permute.xlu0 %711
  %713 = vrot.lane.b32.xlu0 %v280, 64
  %v714 = vpop.permute.xlu0 %713
  %715 = vrot.lane.b32.xlu0 %v281, 64
  %v716 = vpop.permute.xlu0 %715
  %717 = vrot.lane.b32.xlu0 %v282, 64
  %v718 = vpop.permute.xlu0 %717
  %719 = vrot.lane.b32.xlu0 %v283, 64
  %v720 = vpop.permute.xlu0 %719
  %721 = vrot.lane.b32.xlu0 %v284, 64
  %v722 = vpop.permute.xlu0 %721
  %723 = vrot.lane.b32.xlu0 %v285, 64
  %v724 = vpop.permute.xlu0 %723
  %725 = vrot.lane.b32.xlu0 %v286, 64
  %v726 = vpop.permute.xlu0 %725
  %727 = vrot.lane.b32.xlu0 %v287, 64
  %v728 = vpop.permute.xlu0 %727
  %729 = vrot.lane.b32.xlu0 %v288, 64
  %v730 = vpop.permute.xlu0 %729
  %731 = vrot.lane.b32.xlu0 %v289, 64
  %v732 = vpop.permute.xlu0 %731
  %733 = vrot.lane.b32.xlu0 %v290, 64
  %v734 = vpop.permute.xlu0 %733
  %735 = vrot.lane.b32.xlu0 %v291, 64
  %v736 = vpop.permute.xlu0 %735
  %737 = vrot.lane.b32.xlu0 %v292, 64
  %v738 = vpop.permute.xlu0 %737
  %739 = vrot.lane.b32.xlu0 %v293, 64
  %v740 = vpop.permute.xlu0 %739
  %741 = vrot.lane.b32.xlu0 %v294, 64
  %v742 = vpop.permute.xlu0 %741
  %vm807 = vcmask 523264
  %v808 = vsel %vm807, %v38, %v360
  %v809 = vsel %vm807, %v39, %v362
  %v810 = vsel %vm807, %v40, %v364
  %v811 = vsel %vm807, %v41, %v366
  %v812 = vsel %vm807, %v42, %v368
  %v813 = vsel %vm807, %v43, %v370
  %v814 = vsel %vm807, %v44, %v372
  %v815 = vsel %vm807, %v45, %v374
  %v816 = vsel %vm807, %v46, %v376
  %v817 = vsel %vm807, %v47, %v378
  %v818 = vsel %vm807, %v48, %v380
  %v819 = vsel %vm807, %v49, %v382
  %v820 = vsel %vm807, %v50, %v384
  %v821 = vsel %vm807, %v51, %v386
  %v822 = vsel %vm807, %v52, %v388
  %v823 = vsel %vm807, %v53, %v390
  %v824 = vsel %vm807, %v54, %v392
  %v825 = vsel %vm807, %v55, %v394
  %v826 = vsel %vm807, %v56, %v396
  %v827 = vsel %vm807, %v57, %v398
  %v828 = vsel %vm807, %v58, %v400
  %v829 = vsel %vm807, %v59, %v402
  %v830 = vsel %vm807, %v60, %v404
  %v831 = vsel %vm807, %v61, %v406
  %v832 = vsel %vm807, %v62, %v408
  %v833 = vsel %vm807, %v63, %v410
  %v834 = vsel %vm807, %v64, %v412
  %v835 = vsel %vm807, %v65, %v414
  %v836 = vsel %vm807, %v66, %v416
  %v837 = vsel %vm807, %v67, %v418
  %v838 = vsel %vm807, %v68, %v420
  %v839 = vsel %vm807, %v69, %v422
  %v840 = vsel %vm807, %v70, %v424
  %v841 = vsel %vm807, %v71, %v426
  %v842 = vsel %vm807, %v72, %v428
  %v843 = vsel %vm807, %v73, %v430
  %v844 = vsel %vm807, %v74, %v432
  %v845 = vsel %vm807, %v75, %v434
  %v846 = vsel %vm807, %v76, %v436
  %v847 = vsel %vm807, %v77, %v438
  %v848 = vsel %vm807, %v78, %v440
  %v849 = vsel %vm807, %v79, %v442
  %v850 = vsel %vm807, %v80, %v444
  %v851 = vsel %vm807, %v81, %v446
  %v852 = vsel %vm807, %v82, %v448
  %v853 = vsel %vm807, %v83, %v450
  %v854 = vsel %vm807, %v84, %v452
  %v855 = vsel %vm807, %v85, %v454
  %v856 = vsel %vm807, %v86, %v456
  %v857 = vsel %vm807, %v87, %v458
  %v858 = vsel %vm807, %v88, %v460
  %v859 = vsel %vm807, %v89, %v462
  %v860 = vsel %vm807, %v90, %v464
  %v861 = vsel %vm807, %v91, %v466
  %v862 = vsel %vm807, %v92, %v468
  %v863 = vsel %vm807, %v93, %v470
  %v864 = vsel %vm807, %v94, %v472
  %v865 = vsel %vm807, %v95, %v474
  %v866 = vsel %vm807, %v96, %v476
  %v867 = vsel %vm807, %v97, %v478
  %v868 = vsel %vm807, %v98, %v480
  %v869 = vsel %vm807, %v99, %v482
  %v870 = vsel %vm807, %v100, %v484
  %v871 = vsel %vm807, %v101, %v486
  %v872 = vsel %vm807, %v167, %v616
  %v873 = vsel %vm807, %v168, %v618
  %v874 = vsel %vm807, %v169, %v620
  %v875 = vsel %vm807, %v170, %v622
  %v876 = vsel %vm807, %v171, %v624
  %v877 = vsel %vm807, %v172, %v626
  %v878 = vsel %vm807, %v173, %v628
  %v879 = vsel %vm807, %v174, %v630
  %v880 = vsel %vm807, %v175, %v632
  %v881 = vsel %vm807, %v176, %v634
  %v882 = vsel %vm807, %v177, %v636
  %v883 = vsel %vm807, %v178, %v638
  %v884 = vsel %vm807, %v179, %v640
  %v885 = vsel %vm807, %v180, %v642
  %v886 = vsel %vm807, %v181, %v644
  %v887 = vsel %vm807, %v182, %v646
  %v888 = vsel %vm807, %v183, %v648
  %v889 = vsel %vm807, %v184, %v650
  %v890 = vsel %vm807, %v185, %v652
  %v891 = vsel %vm807, %v186, %v654
  %v892 = vsel %vm807, %v187, %v656
  %v893 = vsel %vm807, %v188, %v658
  %v894 = vsel %vm807, %v189, %v660
  %v895 = vsel %vm807, %v190, %v662
  %v896 = vsel %vm807, %v191, %v664
  %v897 = vsel %vm807, %v192, %v666
  %v898 = vsel %vm807, %v193, %v668
  %v899 = vsel %vm807, %v194, %v670
  %v900 = vsel %vm807, %v195, %v672
  %v901 = vsel %vm807, %v196, %v674
  %v902 = vsel %vm807, %v197, %v676
  %v903 = vsel %vm807, %v198, %v678
  %v904 = vsel %vm807, %v199, %v680
  %v905 = vsel %vm807, %v200, %v682
  %v906 = vsel %vm807, %v201, %v684
  %v907 = vsel %vm807, %v202, %v686
  %v908 = vsel %vm807, %v203, %v688
  %v909 = vsel %vm807, %v204, %v690
  %v910 = vsel %vm807, %v205, %v692
  %v911 = vsel %vm807, %v206, %v694
  %v912 = vsel %vm807, %v207, %v696
  %v913 = vsel %vm807, %v208, %v698
  %v914 = vsel %vm807, %v209, %v700
  %v915 = vsel %vm807, %v210, %v702
  %v916 = vsel %vm807, %v211, %v704
  %v917 = vsel %vm807, %v212, %v706
  %v918 = vsel %vm807, %v213, %v708
  %v919 = vsel %vm807, %v214, %v710
  %v920 = vsel %vm807, %v215, %v712
  %v921 = vsel %vm807, %v216, %v714
  %v922 = vsel %vm807, %v217, %v716
  %v923 = vsel %vm807, %v218, %v718
  %v924 = vsel %vm807, %v219, %v720
  %v925 = vsel %vm807, %v220, %v722
  %v926 = vsel %vm807, %v221, %v724
  %v927 = vsel %vm807, %v222, %v726
  %v928 = vsel %vm807, %v223, %v728
  %v929 = vsel %vm807, %v224, %v730
  %v930 = vsel %vm807, %v225, %v732
  %v931 = vsel %vm807, %v226, %v734
  %v932 = vsel %vm807, %v227, %v736
  %v933 = vsel %vm807, %v228, %v738
  %v934 = vsel %vm807, %v229, %v740
  %v935 = vsel %vm807, %v230, %v742
  %v936 = vld [vmem:[%s1] sm:$0xff]
  %v937 = vld [vmem:[%s1 + $0x8] sm:$0xff]
  %v938 = vld [vmem:[%s1 + $0x10] sm:$0xff]
  %v939 = vld [vmem:[%s1 + $0x18] sm:$0xff]
  %v940 = vld [vmem:[%s1 + $0x20] sm:$0xff]
  %v941 = vld [vmem:[%s1 + $0x28] sm:$0xff]
  %v942 = vld [vmem:[%s1 + $0x30] sm:$0xff]
  %v943 = vld [vmem:[%s1 + $0x38] sm:$0xff]
  %v944 = vld [vmem:[%s1 + $0x40] sm:$0xff]
  %v945 = vld [vmem:[%s1 + $0x48] sm:$0xff]
  %v946 = vld [vmem:[%s1 + $0x50] sm:$0xff]
  %v947 = vld [vmem:[%s1 + $0x58] sm:$0xff]
  %v948 = vld [vmem:[%s1 + $0x60] sm:$0xff]
  %v949 = vld [vmem:[%s1 + $0x68] sm:$0xff]
  %v950 = vld [vmem:[%s1 + $0x70] sm:$0xff]
  %v951 = vld [vmem:[%s1 + $0x78] sm:$0xff]
  %v952 = vld [vmem:[%s1 + $0x80] sm:$0xff]
  %v953 = vld [vmem:[%s1 + $0x88] sm:$0xff]
  %v954 = vld [vmem:[%s1 + $0x90] sm:$0xff]
  %v955 = vld [vmem:[%s1 + $0x98] sm:$0xff]
  %v956 = vld [vmem:[%s1 + $0xa0] sm:$0xff]
  %v957 = vld [vmem:[%s1 + $0xa8] sm:$0xff]
  %v958 = vld [vmem:[%s1 + $0xb0] sm:$0xff]
  %v959 = vld [vmem:[%s1 + $0xb8] sm:$0xff]
  %v960 = vld [vmem:[%s1 + $0xc0] sm:$0xff]
  %v961 = vld [vmem:[%s1 + $0xc8] sm:$0xff]
  %v962 = vld [vmem:[%s1 + $0xd0] sm:$0xff]
  %v963 = vld [vmem:[%s1 + $0xd8] sm:$0xff]
  %v964 = vld [vmem:[%s1 + $0xe0] sm:$0xff]
  %v965 = vld [vmem:[%s1 + $0xe8] sm:$0xff]
  %v966 = vld [vmem:[%s1 + $0xf0] sm:$0xff]
  %v967 = vld [vmem:[%s1 + $0xf8] sm:$0xff]
  %v968 = vld [vmem:[%s2] sm:$0x1]
  %v970 = vperm.slane %v968, 0
  %972 = vmatpush.msra.mxu0 %v951
  %973 = vmatpush.msra.mxu0 %v950
  %974 = vmatpush.msra.mxu0 %v949
  %975 = vmatpush.msra.mxu0 %v948
  %976 = vmatpush.msra.mxu0 %v947
  %977 = vmatpush.msra.mxu0 %v946
  %978 = vmatpush.msra.mxu0 %v945
  %979 = vmatpush.msra.mxu0 %v944
  %980 = vmatpush.msra.mxu0 %v943
  %981 = vmatpush.msra.mxu0 %v942
  %982 = vmatpush.msra.mxu0 %v941
  %983 = vmatpush.msra.mxu0 %v940
  %984 = vmatpush.msra.mxu0 %v939
  %985 = vmatpush.msra.mxu0 %v938
  %986 = vmatpush.msra.mxu0 %v937
  %987 = vmatpush.msra.mxu0 %v936
  %988 = vmatmul.f32.gmra.mxu0 %v808
  %v989 = vpop.f32.mrf.mxu0
  %v990 = vadd.f32 %v970, %v989
  %991 = vmatmul.f32.gmra.mxu0 %v809
  %v992 = vpop.f32.mrf.mxu0
  %v993 = vadd.f32 %v970, %v992
  %994 = vmatmul.f32.gmra.mxu0 %v810
  %v995 = vpop.f32.mrf.mxu0
  %v996 = vadd.f32 %v970, %v995
  %997 = vmatmul.f32.gmra.mxu0 %v811
  %v998 = vpop.f32.mrf.mxu0
  %v999 = vadd.f32 %v970, %v998
  %1000 = vmatmul.f32.gmra.mxu0 %v812
  %v1001 = vpop.f32.mrf.mxu0
  %v1002 = vadd.f32 %v970, %v1001
  %1003 = vmatmul.f32.gmra.mxu0 %v813
  %v1004 = vpop.f32.mrf.mxu0
  %v1005 = vadd.f32 %v970, %v1004
  %1006 = vmatmul.f32.gmra.mxu0 %v814
  %v1007 = vpop.f32.mrf.mxu0
  %v1008 = vadd.f32 %v970, %v1007
  %1009 = vmatmul.f32.gmra.mxu0 %v815
  %v1010 = vpop.f32.mrf.mxu0
  %v1011 = vadd.f32 %v970, %v1010
  %1012 = vmatmul.f32.gmra.mxu0 %v816
  %v1013 = vpop.f32.mrf.mxu0
  %v1014 = vadd.f32 %v970, %v1013
  %1015 = vmatmul.f32.gmra.mxu0 %v817
  %v1016 = vpop.f32.mrf.mxu0
  %v1017 = vadd.f32 %v970, %v1016
  %1018 = vmatmul.f32.gmra.mxu0 %v818
  %v1019 = vpop.f32.mrf.mxu0
  %v1020 = vadd.f32 %v970, %v1019
  %1021 = vmatmul.f32.gmra.mxu0 %v819
  %v1022 = vpop.f32.mrf.mxu0
  %v1023 = vadd.f32 %v970, %v1022
  %1024 = vmatmul.f32.gmra.mxu0 %v820
  %v1025 = vpop.f32.mrf.mxu0
  %v1026 = vadd.f32 %v970, %v1025
  %1027 = vmatmul.f32.gmra.mxu0 %v821
  %v1028 = vpop.f32.mrf.mxu0
  %v1029 = vadd.f32 %v970, %v1028
  %1030 = vmatmul.f32.gmra.mxu0 %v822
  %v1031 = vpop.f32.mrf.mxu0
  %v1032 = vadd.f32 %v970, %v1031
  %1033 = vmatmul.f32.gmra.mxu0 %v823
  %v1034 = vpop.f32.mrf.mxu0
  %v1035 = vadd.f32 %v970, %v1034
  %1036 = vmatmul.f32.gmra.mxu0 %v824
  %v1037 = vpop.f32.mrf.mxu0
  %v1038 = vadd.f32 %v970, %v1037
  %1039 = vmatmul.f32.gmra.mxu0 %v825
  %v1040 = vpop.f32.mrf.mxu0
  %v1041 = vadd.f32 %v970, %v1040
  %1042 = vmatmul.f32.gmra.mxu0 %v826
  %v1043 = vpop.f32.mrf.mxu0
  %v1044 = vadd.f32 %v970, %v1043
  %1045 = vmatmul.f32.gmra.mxu0 %v827
  %v1046 = vpop.f32.mrf.mxu0
  %v1047 = vadd.f32 %v970, %v1046
  %1048 = vmatmul.f32.gmra.mxu0 %v828
  %v1049 = vpop.f32.mrf.mxu0
  %v1050 = vadd.f32 %v970, %v1049
  %1051 = vmatmul.f32.gmra.mxu0 %v829
  %v1052 = vpop.f32.mrf.mxu0
  %v1053 = vadd.f32 %v970, %v1052
  %1054 = vmatmul.f32.gmra.mxu0 %v830
  %v1055 = vpop.f32.mrf.mxu0
  %v1056 = vadd.f32 %v970, %v1055
  %1057 = vmatmul.f32.gmra.mxu0 %v831
  %v1058 = vpop.f32.mrf.mxu0
  %v1059 = vadd.f32 %v970, %v1058
  %1060 = vmatmul.f32.gmra.mxu0 %v832
  %v1061 = vpop.f32.mrf.mxu0
  %v1062 = vadd.f32 %v970, %v1061
  %1063 = vmatmul.f32.gmra.mxu0 %v833
  %v1064 = vpop.f32.mrf.mxu0
  %v1065 = vadd.f32 %v970, %v1064
  %1066 = vmatmul.f32.gmra.mxu0 %v834
  %v1067 = vpop.f32.mrf.mxu0
  %v1068 = vadd.f32 %v970, %v1067
  %1069 = vmatmul.f32.gmra.mxu0 %v835
  %v1070 = vpop.f32.mrf.mxu0
  %v1071 = vadd.f32 %v970, %v1070
  %1072 = vmatmul.f32.gmra.mxu0 %v836
  %v1073 = vpop.f32.mrf.mxu0
  %v1074 = vadd.f32 %v970, %v1073
  %1075 = vmatmul.f32.gmra.mxu0 %v837
  %v1076 = vpop.f32.mrf.mxu0
  %v1077 = vadd.f32 %v970, %v1076
  %1078 = vmatmul.f32.gmra.mxu0 %v838
  %v1079 = vpop.f32.mrf.mxu0
  %v1080 = vadd.f32 %v970, %v1079
  %1081 = vmatmul.f32.gmra.mxu0 %v839
  %v1082 = vpop.f32.mrf.mxu0
  %v1083 = vadd.f32 %v970, %v1082
  %1084 = vmatmul.f32.gmra.mxu0 %v840
  %v1085 = vpop.f32.mrf.mxu0
  %v1086 = vadd.f32 %v970, %v1085
  %1087 = vmatmul.f32.gmra.mxu0 %v841
  %v1088 = vpop.f32.mrf.mxu0
  %v1089 = vadd.f32 %v970, %v1088
  %1090 = vmatmul.f32.gmra.mxu0 %v842
  %v1091 = vpop.f32.mrf.mxu0
  %v1092 = vadd.f32 %v970, %v1091
  %1093 = vmatmul.f32.gmra.mxu0 %v843
  %v1094 = vpop.f32.mrf.mxu0
  %v1095 = vadd.f32 %v970, %v1094
  %1096 = vmatmul.f32.gmra.mxu0 %v844
  %v1097 = vpop.f32.mrf.mxu0
  %v1098 = vadd.f32 %v970, %v1097
  %1099 = vmatmul.f32.gmra.mxu0 %v845
  %v1100 = vpop.f32.mrf.mxu0
  %v1101 = vadd.f32 %v970, %v1100
  %1102 = vmatmul.f32.gmra.mxu0 %v846
  %v1103 = vpop.f32.mrf.mxu0
  %v1104 = vadd.f32 %v970, %v1103
  %1105 = vmatmul.f32.gmra.mxu0 %v847
  %v1106 = vpop.f32.mrf.mxu0
  %v1107 = vadd.f32 %v970, %v1106
  %1108 = vmatmul.f32.gmra.mxu0 %v848
  %v1109 = vpop.f32.mrf.mxu0
  %v1110 = vadd.f32 %v970, %v1109
  %1111 = vmatmul.f32.gmra.mxu0 %v849
  %v1112 = vpop.f32.mrf.mxu0
  %v1113 = vadd.f32 %v970, %v1112
  %1114 = vmatmul.f32.gmra.mxu0 %v850
  %v1115 = vpop.f32.mrf.mxu0
  %v1116 = vadd.f32 %v970, %v1115
  %1117 = vmatmul.f32.gmra.mxu0 %v851
  %v1118 = vpop.f32.mrf.mxu0
  %v1119 = vadd.f32 %v970, %v1118
  %1120 = vmatmul.f32.gmra.mxu0 %v852
  %v1121 = vpop.f32.mrf.mxu0
  %v1122 = vadd.f32 %v970, %v1121
  %1123 = vmatmul.f32.gmra.mxu0 %v853
  %v1124 = vpop.f32.mrf.mxu0
  %v1125 = vadd.f32 %v970, %v1124
  %1126 = vmatmul.f32.gmra.mxu0 %v854
  %v1127 = vpop.f32.mrf.mxu0
  %v1128 = vadd.f32 %v970, %v1127
  %1129 = vmatmul.f32.gmra.mxu0 %v855
  %v1130 = vpop.f32.mrf.mxu0
  %v1131 = vadd.f32 %v970, %v1130
  %1132 = vmatmul.f32.gmra.mxu0 %v856
  %v1133 = vpop.f32.mrf.mxu0
  %v1134 = vadd.f32 %v970, %v1133
  %1135 = vmatmul.f32.gmra.mxu0 %v857
  %v1136 = vpop.f32.mrf.mxu0
  %v1137 = vadd.f32 %v970, %v1136
  %1138 = vmatmul.f32.gmra.mxu0 %v858
  %v1139 = vpop.f32.mrf.mxu0
  %v1140 = vadd.f32 %v970, %v1139
  %1141 = vmatmul.f32.gmra.mxu0 %v859
  %v1142 = vpop.f32.mrf.mxu0
  %v1143 = vadd.f32 %v970, %v1142
  %1144 = vmatmul.f32.gmra.mxu0 %v860
  %v1145 = vpop.f32.mrf.mxu0
  %v1146 = vadd.f32 %v970, %v1145
  %1147 = vmatmul.f32.gmra.mxu0 %v861
  %v1148 = vpop.f32.mrf.mxu0
  %v1149 = vadd.f32 %v970, %v1148
  %1150 = vmatmul.f32.gmra.mxu0 %v862
  %v1151 = vpop.f32.mrf.mxu0
  %v1152 = vadd.f32 %v970, %v1151
  %1153 = vmatmul.f32.gmra.mxu0 %v863
  %v1154 = vpop.f32.mrf.mxu0
  %v1155 = vadd.f32 %v970, %v1154
  %1156 = vmatmul.f32.gmra.mxu0 %v864
  %v1157 = vpop.f32.mrf.mxu0
  %v1158 = vadd.f32 %v970, %v1157
  %1159 = vmatmul.f32.gmra.mxu0 %v865
  %v1160 = vpop.f32.mrf.mxu0
  %v1161 = vadd.f32 %v970, %v1160
  %1162 = vmatmul.f32.gmra.mxu0 %v866
  %v1163 = vpop.f32.mrf.mxu0
  %v1164 = vadd.f32 %v970, %v1163
  %1165 = vmatmul.f32.gmra.mxu0 %v867
  %v1166 = vpop.f32.mrf.mxu0
  %v1167 = vadd.f32 %v970, %v1166
  %1168 = vmatmul.f32.gmra.mxu0 %v868
  %v1169 = vpop.f32.mrf.mxu0
  %v1170 = vadd.f32 %v970, %v1169
  %1171 = vmatmul.f32.gmra.mxu0 %v869
  %v1172 = vpop.f32.mrf.mxu0
  %v1173 = vadd.f32 %v970, %v1172
  %1174 = vmatmul.f32.gmra.mxu0 %v870
  %v1175 = vpop.f32.mrf.mxu0
  %v1176 = vadd.f32 %v970, %v1175
  %1177 = vmatmul.f32.gmra.mxu0 %v871
  %v1178 = vpop.f32.mrf.mxu0
  %v1179 = vadd.f32 %v970, %v1178
  %1180 = vdwg.mxu0
  %1181 = vmatpush.msra.mxu0 %v967
  %1182 = vmatpush.msra.mxu0 %v966
  %1183 = vmatpush.msra.mxu0 %v965
  %1184 = vmatpush.msra.mxu0 %v964
  %1185 = vmatpush.msra.mxu0 %v963
  %1186 = vmatpush.msra.mxu0 %v962
  %1187 = vmatpush.msra.mxu0 %v961
  %1188 = vmatpush.msra.mxu0 %v960
  %1189 = vmatpush.msra.mxu0 %v959
  %1190 = vmatpush.msra.mxu0 %v958
  %1191 = vmatpush.msra.mxu0 %v957
  %1192 = vmatpush.msra.mxu0 %v956
  %1193 = vmatpush.msra.mxu0 %v955
  %1194 = vmatpush.msra.mxu0 %v954
  %1195 = vmatpush.msra.mxu0 %v953
  %1196 = vmatpush.msra.mxu0 %v952
  %1197 = vmatmul.f32.gmra.mxu0 %v872
  %v1198 = vpop.f32.mrf.mxu0
  %v1199 = vadd.f32 %v990, %v1198
  %1200 = vmatmul.f32.gmra.mxu0 %v873
  %v1201 = vpop.f32.mrf.mxu0
  %v1202 = vadd.f32 %v993, %v1201
  %1203 = vmatmul.f32.gmra.mxu0 %v874
  %v1204 = vpop.f32.mrf.mxu0
  %v1205 = vadd.f32 %v996, %v1204
  %1206 = vmatmul.f32.gmra.mxu0 %v875
  %v1207 = vpop.f32.mrf.mxu0
  %v1208 = vadd.f32 %v999, %v1207
  %1209 = vmatmul.f32.gmra.mxu0 %v876
  %v1210 = vpop.f32.mrf.mxu0
  %v1211 = vadd.f32 %v1002, %v1210
  %1212 = vmatmul.f32.gmra.mxu0 %v877
  %v1213 = vpop.f32.mrf.mxu0
  %v1214 = vadd.f32 %v1005, %v1213
  %1215 = vmatmul.f32.gmra.mxu0 %v878
  %v1216 = vpop.f32.mrf.mxu0
  %v1217 = vadd.f32 %v1008, %v1216
  %1218 = vmatmul.f32.gmra.mxu0 %v879
  %v1219 = vpop.f32.mrf.mxu0
  %v1220 = vadd.f32 %v1011, %v1219
  %1221 = vmatmul.f32.gmra.mxu0 %v880
  %v1222 = vpop.f32.mrf.mxu0
  %v1223 = vadd.f32 %v1014, %v1222
  %1224 = vmatmul.f32.gmra.mxu0 %v881
  %v1225 = vpop.f32.mrf.mxu0
  %v1226 = vadd.f32 %v1017, %v1225
  %1227 = vmatmul.f32.gmra.mxu0 %v882
  %v1228 = vpop.f32.mrf.mxu0
  %v1229 = vadd.f32 %v1020, %v1228
  %1230 = vmatmul.f32.gmra.mxu0 %v883
  %v1231 = vpop.f32.mrf.mxu0
  %v1232 = vadd.f32 %v1023, %v1231
  %1233 = vmatmul.f32.gmra.mxu0 %v884
  %v1234 = vpop.f32.mrf.mxu0
  %v1235 = vadd.f32 %v1026, %v1234
  %1236 = vmatmul.f32.gmra.mxu0 %v885
  %v1237 = vpop.f32.mrf.mxu0
  %v1238 = vadd.f32 %v1029, %v1237
  %1239 = vmatmul.f32.gmra.mxu0 %v886
  %v1240 = vpop.f32.mrf.mxu0
  %v1241 = vadd.f32 %v1032, %v1240
  %1242 = vmatmul.f32.gmra.mxu0 %v887
  %v1243 = vpop.f32.mrf.mxu0
  %v1244 = vadd.f32 %v1035, %v1243
  %1245 = vmatmul.f32.gmra.mxu0 %v888
  %v1246 = vpop.f32.mrf.mxu0
  %v1247 = vadd.f32 %v1038, %v1246
  %1248 = vmatmul.f32.gmra.mxu0 %v889
  %v1249 = vpop.f32.mrf.mxu0
  %v1250 = vadd.f32 %v1041, %v1249
  %1251 = vmatmul.f32.gmra.mxu0 %v890
  %v1252 = vpop.f32.mrf.mxu0
  %v1253 = vadd.f32 %v1044, %v1252
  %1254 = vmatmul.f32.gmra.mxu0 %v891
  %v1255 = vpop.f32.mrf.mxu0
  %v1256 = vadd.f32 %v1047, %v1255
  %1257 = vmatmul.f32.gmra.mxu0 %v892
  %v1258 = vpop.f32.mrf.mxu0
  %v1259 = vadd.f32 %v1050, %v1258
  %1260 = vmatmul.f32.gmra.mxu0 %v893
  %v1261 = vpop.f32.mrf.mxu0
  %v1262 = vadd.f32 %v1053, %v1261
  %1263 = vmatmul.f32.gmra.mxu0 %v894
  %v1264 = vpop.f32.mrf.mxu0
  %v1265 = vadd.f32 %v1056, %v1264
  %1266 = vmatmul.f32.gmra.mxu0 %v895
  %v1267 = vpop.f32.mrf.mxu0
  %v1268 = vadd.f32 %v1059, %v1267
  %1269 = vmatmul.f32.gmra.mxu0 %v896
  %v1270 = vpop.f32.mrf.mxu0
  %v1271 = vadd.f32 %v1062, %v1270
  %1272 = vmatmul.f32.gmra.mxu0 %v897
  %v1273 = vpop.f32.mrf.mxu0
  %v1274 = vadd.f32 %v1065, %v1273
  %1275 = vmatmul.f32.gmra.mxu0 %v898
  %v1276 = vpop.f32.mrf.mxu0
  %v1277 = vadd.f32 %v1068, %v1276
  %1278 = vmatmul.f32.gmra.mxu0 %v899
  %v1279 = vpop.f32.mrf.mxu0
  %v1280 = vadd.f32 %v1071, %v1279
  %1281 = vmatmul.f32.gmra.mxu0 %v900
  %v1282 = vpop.f32.mrf.mxu0
  %v1283 = vadd.f32 %v1074, %v1282
  %1284 = vmatmul.f32.gmra.mxu0 %v901
  %v1285 = vpop.f32.mrf.mxu0
  %v1286 = vadd.f32 %v1077, %v1285
  %1287 = vmatmul.f32.gmra.mxu0 %v902
  %v1288 = vpop.f32.mrf.mxu0
  %v1289 = vadd.f32 %v1080, %v1288
  %1290 = vmatmul.f32.gmra.mxu0 %v903
  %v1291 = vpop.f32.mrf.mxu0
  %v1292 = vadd.f32 %v1083, %v1291
  %1293 = vmatmul.f32.gmra.mxu0 %v904
  %v1294 = vpop.f32.mrf.mxu0
  %v1295 = vadd.f32 %v1086, %v1294
  %1296 = vmatmul.f32.gmra.mxu0 %v905
  %v1297 = vpop.f32.mrf.mxu0
  %v1298 = vadd.f32 %v1089, %v1297
  %1299 = vmatmul.f32.gmra.mxu0 %v906
  %v1300 = vpop.f32.mrf.mxu0
  %v1301 = vadd.f32 %v1092, %v1300
  %1302 = vmatmul.f32.gmra.mxu0 %v907
  %v1303 = vpop.f32.mrf.mxu0
  %v1304 = vadd.f32 %v1095, %v1303
  %1305 = vmatmul.f32.gmra.mxu0 %v908
  %v1306 = vpop.f32.mrf.mxu0
  %v1307 = vadd.f32 %v1098, %v1306
  %1308 = vmatmul.f32.gmra.mxu0 %v909
  %v1309 = vpop.f32.mrf.mxu0
  %v1310 = vadd.f32 %v1101, %v1309
  %1311 = vmatmul.f32.gmra.mxu0 %v910
  %v1312 = vpop.f32.mrf.mxu0
  %v1313 = vadd.f32 %v1104, %v1312
  %1314 = vmatmul.f32.gmra.mxu0 %v911
  %v1315 = vpop.f32.mrf.mxu0
  %v1316 = vadd.f32 %v1107, %v1315
  %1317 = vmatmul.f32.gmra.mxu0 %v912
  %v1318 = vpop.f32.mrf.mxu0
  %v1319 = vadd.f32 %v1110, %v1318
  %1320 = vmatmul.f32.gmra.mxu0 %v913
  %v1321 = vpop.f32.mrf.mxu0
  %v1322 = vadd.f32 %v1113, %v1321
  %1323 = vmatmul.f32.gmra.mxu0 %v914
  %v1324 = vpop.f32.mrf.mxu0
  %v1325 = vadd.f32 %v1116, %v1324
  %1326 = vmatmul.f32.gmra.mxu0 %v915
  %v1327 = vpop.f32.mrf.mxu0
  %v1328 = vadd.f32 %v1119, %v1327
  %1329 = vmatmul.f32.gmra.mxu0 %v916
  %v1330 = vpop.f32.mrf.mxu0
  %v1331 = vadd.f32 %v1122, %v1330
  %1332 = vmatmul.f32.gmra.mxu0 %v917
  %v1333 = vpop.f32.mrf.mxu0
  %v1334 = vadd.f32 %v1125, %v1333
  %1335 = vmatmul.f32.gmra.mxu0 %v918
  %v1336 = vpop.f32.mrf.mxu0
  %v1337 = vadd.f32 %v1128, %v1336
  %1338 = vmatmul.f32.gmra.mxu0 %v919
  %v1339 = vpop.f32.mrf.mxu0
  %v1340 = vadd.f32 %v1131, %v1339
  %1341 = vmatmul.f32.gmra.mxu0 %v920
  %v1342 = vpop.f32.mrf.mxu0
  %v1343 = vadd.f32 %v1134, %v1342
  %1344 = vmatmul.f32.gmra.mxu0 %v921
  %v1345 = vpop.f32.mrf.mxu0
  %v1346 = vadd.f32 %v1137, %v1345
  %1347 = vmatmul.f32.gmra.mxu0 %v922
  %v1348 = vpop.f32.mrf.mxu0
  %v1349 = vadd.f32 %v1140, %v1348
  %1350 = vmatmul.f32.gmra.mxu0 %v923
  %v1351 = vpop.f32.mrf.mxu0
  %v1352 = vadd.f32 %v1143, %v1351
  %1353 = vmatmul.f32.gmra.mxu0 %v924
  %v1354 = vpop.f32.mrf.mxu0
  %v1355 = vadd.f32 %v1146, %v1354
  %1356 = vmatmul.f32.gmra.mxu0 %v925
  %v1357 = vpop.f32.mrf.mxu0
  %v1358 = vadd.f32 %v1149, %v1357
  %1359 = vmatmul.f32.gmra.mxu0 %v926
  %v1360 = vpop.f32.mrf.mxu0
  %v1361 = vadd.f32 %v1152, %v1360
  %1362 = vmatmul.f32.gmra.mxu0 %v927
  %v1363 = vpop.f32.mrf.mxu0
  %v1364 = vadd.f32 %v1155, %v1363
  %1365 = vmatmul.f32.gmra.mxu0 %v928
  %v1366 = vpop.f32.mrf.mxu0
  %v1367 = vadd.f32 %v1158, %v1366
  %1368 = vmatmul.f32.gmra.mxu0 %v929
  %v1369 = vpop.f32.mrf.mxu0
  %v1370 = vadd.f32 %v1161, %v1369
  %1371 = vmatmul.f32.gmra.mxu0 %v930
  %v1372 = vpop.f32.mrf.mxu0
  %v1373 = vadd.f32 %v1164, %v1372
  %1374 = vmatmul.f32.gmra.mxu0 %v931
  %v1375 = vpop.f32.mrf.mxu0
  %v1376 = vadd.f32 %v1167, %v1375
  %1377 = vmatmul.f32.gmra.mxu0 %v932
  %v1378 = vpop.f32.mrf.mxu0
  %v1379 = vadd.f32 %v1170, %v1378
  %1380 = vmatmul.f32.gmra.mxu0 %v933
  %v1381 = vpop.f32.mrf.mxu0
  %v1382 = vadd.f32 %v1173, %v1381
  %1383 = vmatmul.f32.gmra.mxu0 %v934
  %v1384 = vpop.f32.mrf.mxu0
  %v1385 = vadd.f32 %v1176, %v1384
  %1386 = vmatmul.f32.gmra.mxu0 %v935
  %v1387 = vpop.f32.mrf.mxu0
  %v1388 = vadd.f32 %v1179, %v1387
  %1389 = vdwg.mxu0
  %v1390 = vmax.f32 %v1199, 0.0
  %v1391 = vmax.f32 %v1202, 0.0
  %v1392 = vmax.f32 %v1205, 0.0
  %v1393 = vmax.f32 %v1208, 0.0
  %v1394 = vmax.f32 %v1211, 0.0
  %v1395 = vmax.f32 %v1214, 0.0
  %v1396 = vmax.f32 %v1217, 0.0
  %v1397 = vmax.f32 %v1220, 0.0
  %v1398 = vmax.f32 %v1223, 0.0
  %v1399 = vmax.f32 %v1226, 0.0
  %v1400 = vmax.f32 %v1229, 0.0
  %v1401 = vmax.f32 %v1232, 0.0
  %v1402 = vmax.f32 %v1235, 0.0
  %v1403 = vmax.f32 %v1238, 0.0
  %v1404 = vmax.f32 %v1241, 0.0
  %v1405 = vmax.f32 %v1244, 0.0
  %v1406 = vmax.f32 %v1247, 0.0
  %v1407 = vmax.f32 %v1250, 0.0
  %v1408 = vmax.f32 %v1253, 0.0
  %v1409 = vmax.f32 %v1256, 0.0
  %v1410 = vmax.f32 %v1259, 0.0
  %v1411 = vmax.f32 %v1262, 0.0
  %v1412 = vmax.f32 %v1265, 0.0
  %v1413 = vmax.f32 %v1268, 0.0
  %v1414 = vmax.f32 %v1271, 0.0
  %v1415 = vmax.f32 %v1274, 0.0
  %v1416 = vmax.f32 %v1277, 0.0
  %v1417 = vmax.f32 %v1280, 0.0
  %v1418 = vmax.f32 %v1283, 0.0
  %v1419 = vmax.f32 %v1286, 0.0
  %v1420 = vmax.f32 %v1289, 0.0
  %v1421 = vmax.f32 %v1292, 0.0
  %v1422 = vmax.f32 %v1295, 0.0
  %v1423 = vmax.f32 %v1298, 0.0
  %v1424 = vmax.f32 %v1301, 0.0
  %v1425 = vmax.f32 %v1304, 0.0
  %v1426 = vmax.f32 %v1307, 0.0
  %v1427 = vmax.f32 %v1310, 0.0
  %v1428 = vmax.f32 %v1313, 0.0
  %v1429 = vmax.f32 %v1316, 0.0
  %v1430 = vmax.f32 %v1319, 0.0
  %v1431 = vmax.f32 %v1322, 0.0
  %v1432 = vmax.f32 %v1325, 0.0
  %v1433 = vmax.f32 %v1328, 0.0
  %v1434 = vmax.f32 %v1331, 0.0
  %v1435 = vmax.f32 %v1334, 0.0
  %v1436 = vmax.f32 %v1337, 0.0
  %v1437 = vmax.f32 %v1340, 0.0
  %v1438 = vmax.f32 %v1343, 0.0
  %v1439 = vmax.f32 %v1346, 0.0
  %v1440 = vmax.f32 %v1349, 0.0
  %v1441 = vmax.f32 %v1352, 0.0
  %v1442 = vmax.f32 %v1355, 0.0
  %v1443 = vmax.f32 %v1358, 0.0
  %v1444 = vmax.f32 %v1361, 0.0
  %v1445 = vmax.f32 %v1364, 0.0
  %v1446 = vmax.f32 %v1367, 0.0
  %v1447 = vmax.f32 %v1370, 0.0
  %v1448 = vmax.f32 %v1373, 0.0
  %v1449 = vmax.f32 %v1376, 0.0
  %v1450 = vmax.f32 %v1379, 0.0
  %v1451 = vmax.f32 %v1382, 0.0
  %v1452 = vmax.f32 %v1385, 0.0
  %v1453 = vmax.f32 %v1388, 0.0
  %v1518 = vrot.slane %v1390, 2
  %v1519 = vrot.slane %v1390, 4
  %v1520 = vrot.slane %v1390, 6
  %v1521 = vrot.slane %v1391, 2
  %v1522 = vrot.slane %v1391, 4
  %v1523 = vrot.slane %v1391, 6
  %v1524 = vrot.slane %v1392, 2
  %v1525 = vrot.slane %v1392, 4
  %v1526 = vrot.slane %v1392, 6
  %v1527 = vrot.slane %v1393, 2
  %v1528 = vrot.slane %v1393, 4
  %v1529 = vrot.slane %v1393, 6
  %v1530 = vrot.slane %v1394, 2
  %v1531 = vrot.slane %v1394, 4
  %v1532 = vrot.slane %v1394, 6
  %v1533 = vrot.slane %v1395, 2
  %v1534 = vrot.slane %v1395, 4
  %v1535 = vrot.slane %v1395, 6
  %v1536 = vrot.slane %v1396, 2
  %v1537 = vrot.slane %v1396, 4
  %v1538 = vrot.slane %v1396, 6
  %v1539 = vrot.slane %v1397, 2
  %v1540 = vrot.slane %v1397, 4
  %v1541 = vrot.slane %v1397, 6
  %v1542 = vrot.slane %v1398, 2
  %v1543 = vrot.slane %v1398, 4
  %v1544 = vrot.slane %v1398, 6
  %v1545 = vrot.slane %v1399, 2
  %v1546 = vrot.slane %v1399, 4
  %v1547 = vrot.slane %v1399, 6
  %v1548 = vrot.slane %v1400, 2
  %v1549 = vrot.slane %v1400, 4
  %v1550 = vrot.slane %v1400, 6
  %v1551 = vrot.slane %v1401, 2
  %v1552 = vrot.slane %v1401, 4
  %v1553 = vrot.slane %v1401, 6
  %v1554 = vrot.slane %v1402, 2
  %v1555 = vrot.slane %v1402, 4
  %v1556 = vrot.slane %v1402, 6
  %v1557 = vrot.slane %v1403, 2
  %v1558 = vrot.slane %v1403, 4
  %v1559 = vrot.slane %v1403, 6
  %v1560 = vrot.slane %v1404, 2
  %v1561 = vrot.slane %v1404, 4
  %v1562 = vrot.slane %v1404, 6
  %v1563 = vrot.slane %v1405, 2
  %v1564 = vrot.slane %v1405, 4
  %v1565 = vrot.slane %v1405, 6
  %v1566 = vrot.slane %v1406, 2
  %v1567 = vrot.slane %v1406, 4
  %v1568 = vrot.slane %v1406, 6
  %v1569 = vrot.slane %v1407, 2
  %v1570 = vrot.slane %v1407, 4
  %v1571 = vrot.slane %v1407, 6
  %v1572 = vrot.slane %v1408, 2
  %v1573 = vrot.slane %v1408, 4
  %v1574 = vrot.slane %v1408, 6
  %v1575 = vrot.slane %v1409, 2
  %v1576 = vrot.slane %v1409, 4
  %v1577 = vrot.slane %v1409, 6
  %v1578 = vrot.slane %v1410, 2
  %v1579 = vrot.slane %v1410, 4
  %v1580 = vrot.slane %v1410, 6
  %v1581 = vrot.slane %v1411, 2
  %v1582 = vrot.slane %v1411, 4
  %v1583 = vrot.slane %v1411, 6
  %v1584 = vrot.slane %v1412, 2
  %v1585 = vrot.slane %v1412, 4
  %v1586 = vrot.slane %v1412, 6
  %v1587 = vrot.slane %v1413, 2
  %v1588 = vrot.slane %v1413, 4
  %v1589 = vrot.slane %v1413, 6
  %v1590 = vrot.slane %v1414, 2
  %v1591 = vrot.slane %v1414, 4
  %v1592 = vrot.slane %v1414, 6
  %v1593 = vrot.slane %v1415, 2
  %v1594 = vrot.slane %v1415, 4
  %v1595 = vrot.slane %v1415, 6
  %v1596 = vrot.slane %v1416, 2
  %v1597 = vrot.slane %v1416, 4
  %v1598 = vrot.slane %v1416, 6
  %v1599 = vrot.slane %v1417, 2
  %v1600 = vrot.slane %v1417, 4
  %v1601 = vrot.slane %v1417, 6
  %v1602 = vrot.slane %v1418, 2
  %v1603 = vrot.slane %v1418, 4
  %v1604 = vrot.slane %v1418, 6
  %v1605 = vrot.slane %v1419, 2
  %v1606 = vrot.slane %v1419, 4
  %v1607 = vrot.slane %v1419, 6
  %v1608 = vrot.slane %v1420, 2
  %v1609 = vrot.slane %v1420, 4
  %v1610 = vrot.slane %v1420, 6
  %v1611 = vrot.slane %v1421, 2
  %v1612 = vrot.slane %v1421, 4
  %v1613 = vrot.slane %v1421, 6
  %v1614 = vrot.slane %v1422, 2
  %v1615 = vrot.slane %v1422, 4
  %v1616 = vrot.slane %v1422, 6
  %v1617 = vrot.slane %v1423, 2
  %v1618 = vrot.slane %v1423, 4
  %v1619 = vrot.slane %v1423, 6
  %v1620 = vrot.slane %v1424, 2
  %v1621 = vrot.slane %v1424, 4
  %v1622 = vrot.slane %v1424, 6
  %v1623 = vrot.slane %v1425, 2
  %v1624 = vrot.slane %v1425, 4
  %v1625 = vrot.slane %v1425, 6
  %v1626 = vrot.slane %v1426, 2
  %v1627 = vrot.slane %v1426, 4
  %v1628 = vrot.slane %v1426, 6
  %v1629 = vrot.slane %v1427, 2
  %v1630 = vrot.slane %v1427, 4
  %v1631 = vrot.slane %v1427, 6
  %v1632 = vrot.slane %v1428, 2
  %v1633 = vrot.slane %v1428, 4
  %v1634 = vrot.slane %v1428, 6
  %v1635 = vrot.slane %v1429, 2
  %v1636 = vrot.slane %v1429, 4
  %v1637 = vrot.slane %v1429, 6
  %v1638 = vrot.slane %v1430, 2
  %v1639 = vrot.slane %v1430, 4
  %v1640 = vrot.slane %v1430, 6
  %v1641 = vrot.slane %v1431, 2
  %v1642 = vrot.slane %v1431, 4
  %v1643 = vrot.slane %v1431, 6
  %v1644 = vrot.slane %v1432, 2
  %v1645 = vrot.slane %v1432, 4
  %v1646 = vrot.slane %v1432, 6
  %v1647 = vrot.slane %v1433, 2
  %v1648 = vrot.slane %v1433, 4
  %v1649 = vrot.slane %v1433, 6
  %v1650 = vrot.slane %v1434, 2
  %v1651 = vrot.slane %v1434, 4
  %v1652 = vrot.slane %v1434, 6
  %v1653 = vrot.slane %v1435, 2
  %v1654 = vrot.slane %v1435, 4
  %v1655 = vrot.slane %v1435, 6
  %v1656 = vrot.slane %v1436, 2
  %v1657 = vrot.slane %v1436, 4
  %v1658 = vrot.slane %v1436, 6
  %v1659 = vrot.slane %v1437, 2
  %v1660 = vrot.slane %v1437, 4
  %v1661 = vrot.slane %v1437, 6
  %v1662 = vrot.slane %v1438, 2
  %v1663 = vrot.slane %v1438, 4
  %v1664 = vrot.slane %v1438, 6
  %v1665 = vrot.slane %v1439, 2
  %v1666 = vrot.slane %v1439, 4
  %v1667 = vrot.slane %v1439, 6
  %v1668 = vrot.slane %v1440, 2
  %v1669 = vrot.slane %v1440, 4
  %v1670 = vrot.slane %v1440, 6
  %v1671 = vrot.slane %v1441, 2
  %v1672 = vrot.slane %v1441, 4
  %v1673 = vrot.slane %v1441, 6
  %v1674 = vrot.slane %v1442, 2
  %v1675 = vrot.slane %v1442, 4
  %v1676 = vrot.slane %v1442, 6
  %v1677 = vrot.slane %v1443, 2
  %v1678 = vrot.slane %v1443, 4
  %v1679 = vrot.slane %v1443, 6
  %v1680 = vrot.slane %v1444, 2
  %v1681 = vrot.slane %v1444, 4
  %v1682 = vrot.slane %v1444, 6
  %v1683 = vrot.slane %v1445, 2
  %v1684 = vrot.slane %v1445, 4
  %v1685 = vrot.slane %v1445, 6
  %v1686 = vrot.slane %v1446, 2
  %v1687 = vrot.slane %v1446, 4
  %v1688 = vrot.slane %v1446, 6
  %v1689 = vrot.slane %v1447, 2
  %v1690 = vrot.slane %v1447, 4
  %v1691 = vrot.slane %v1447, 6
  %v1692 = vrot.slane %v1448, 2
  %v1693 = vrot.slane %v1448, 4
  %v1694 = vrot.slane %v1448, 6
  %v1695 = vrot.slane %v1449, 2
  %v1696 = vrot.slane %v1449, 4
  %v1697 = vrot.slane %v1449, 6
  %v1698 = vrot.slane %v1450, 2
  %v1699 = vrot.slane %v1450, 4
  %v1700 = vrot.slane %v1450, 6
  %v1701 = vrot.slane %v1451, 2
  %v1702 = vrot.slane %v1451, 4
  %v1703 = vrot.slane %v1451, 6
  %v1704 = vrot.slane %v1452, 2
  %v1705 = vrot.slane %v1452, 4
  %v1706 = vrot.slane %v1452, 6
  %v1707 = vrot.slane %v1453, 2
  %v1708 = vrot.slane %v1453, 4
  %v1709 = vrot.slane %v1453, 6
  %v1710 = vperm.slane %v1390, 0
  %v1711 = vperm.slane %v1518, 0
  %v1712 = vperm.slane %v1519, 0
  %v1713 = vperm.slane %v1520, 0
  %v1714 = vperm.slane %v1392, 0
  %v1715 = vperm.slane %v1524, 0
  %v1716 = vperm.slane %v1525, 0
  %v1717 = vperm.slane %v1526, 0
  %v1718 = vperm.slane %v1394, 0
  %v1719 = vperm.slane %v1530, 0
  %v1720 = vperm.slane %v1531, 0
  %v1721 = vperm.slane %v1532, 0
  %v1722 = vperm.slane %v1396, 0
  %v1723 = vperm.slane %v1536, 0
  %v1724 = vperm.slane %v1537, 0
  %v1725 = vperm.slane %v1538, 0
  %v1726 = vperm.slane %v1398, 0
  %v1727 = vperm.slane %v1542, 0
  %v1728 = vperm.slane %v1543, 0
  %v1729 = vperm.slane %v1544, 0
  %v1730 = vperm.slane %v1400, 0
  %v1731 = vperm.slane %v1548, 0
  %v1732 = vperm.slane %v1549, 0
  %v1733 = vperm.slane %v1550, 0
  %v1734 = vperm.slane %v1402, 0
  %v1735 = vperm.slane %v1554, 0
  %v1736 = vperm.slane %v1555, 0
  %v1737 = vperm.slane %v1556, 0
  %v1738 = vperm.slane %v1404, 0
  %v1739 = vperm.slane %v1560, 0
  %v1740 = vperm.slane %v1561, 0
  %v1741 = vperm.slane %v1562, 0
  %v1742 = vperm.slane %v1406, 0
  %v1743 = vperm.slane %v1566, 0
  %v1744 = vperm.slane %v1567, 0
  %v1745 = vperm.slane %v1568, 0
  %v1746 = vperm.slane %v1408, 0
  %v1747 = vperm.slane %v1572, 0
  %v1748 = vperm.slane %v1573, 0
  %v1749 = vperm.slane %v1574, 0
  %v1750 = vperm.slane %v1410, 0
  %v1751 = vperm.slane %v1578, 0
  %v1752 = vperm.slane %v1579, 0
  %v1753 = vperm.slane %v1580, 0
  %v1754 = vperm.slane %v1412, 0
  %v1755 = vperm.slane %v1584, 0
  %v1756 = vperm.slane %v1585, 0
  %v1757 = vperm.slane %v1586, 0
  %v1758 = vperm.slane %v1414, 0
  %v1759 = vperm.slane %v1590, 0
  %v1760 = vperm.slane %v1591, 0
  %v1761 = vperm.slane %v1592, 0
  %v1762 = vperm.slane %v1416, 0
  %v1763 = vperm.slane %v1596, 0
  %v1764 = vperm.slane %v1597, 0
  %v1765 = vperm.slane %v1598, 0
  %v1766 = vperm.slane %v1418, 0
  %v1767 = vperm.slane %v1602, 0
  %v1768 = vperm.slane %v1603, 0
  %v1769 = vperm.slane %v1604, 0
  %v1770 = vperm.slane %v1420, 0
  %v1771 = vperm.slane %v1608, 0
  %v1772 = vperm.slane %v1609, 0
  %v1773 = vperm.slane %v1610, 0
  %v1774 = vperm.slane %v1422, 0
  %v1775 = vperm.slane %v1614, 0
  %v1776 = vperm.slane %v1615, 0
  %v1777 = vperm.slane %v1616, 0
  %v1778 = vperm.slane %v1424, 0
  %v1779 = vperm.slane %v1620, 0
  %v1780 = vperm.slane %v1621, 0
  %v1781 = vperm.slane %v1622, 0
  %v1782 = vperm.slane %v1426, 0
  %v1783 = vperm.slane %v1626, 0
  %v1784 = vperm.slane %v1627, 0
  %v1785 = vperm.slane %v1628, 0
  %v1786 = vperm.slane %v1428, 0
  %v1787 = vperm.slane %v1632, 0
  %v1788 = vperm.slane %v1633, 0
  %v1789 = vperm.slane %v1634, 0
  %v1790 = vperm.slane %v1430, 0
  %v1791 = vperm.slane %v1638, 0
  %v1792 = vperm.slane %v1639, 0
  %v1793 = vperm.slane %v1640, 0
  %v1794 = vperm.slane %v1432, 0
  %v1795 = vperm.slane %v1644, 0
  %v1796 = vperm.slane %v1645, 0
  %v1797 = vperm.slane %v1646, 0
  %v1798 = vperm.slane %v1434, 0
  %v1799 = vperm.slane %v1650, 0
  %v1800 = vperm.slane %v1651, 0
  %v1801 = vperm.slane %v1652, 0
  %v1802 = vperm.slane %v1436, 0
  %v1803 = vperm.slane %v1656, 0
  %v1804 = vperm.slane %v1657, 0
  %v1805 = vperm.slane %v1658, 0
  %v1806 = vperm.slane %v1438, 0
  %v1807 = vperm.slane %v1662, 0
  %v1808 = vperm.slane %v1663, 0
  %v1809 = vperm.slane %v1664, 0
  %v1810 = vperm.slane %v1440, 0
  %v1811 = vperm.slane %v1668, 0
  %v1812 = vperm.slane %v1669, 0
  %v1813 = vperm.slane %v1670, 0
  %v1814 = vperm.slane %v1442, 0
  %v1815 = vperm.slane %v1674, 0
  %v1816 = vperm.slane %v1675, 0
  %v1817 = vperm.slane %v1676, 0
  %v1818 = vperm.slane %v1444, 0
  %v1819 = vperm.slane %v1680, 0
  %v1820 = vperm.slane %v1681, 0
  %v1821 = vperm.slane %v1682, 0
  %v1822 = vperm.slane %v1446, 0
  %v1823 = vperm.slane %v1686, 0
  %v1824 = vperm.slane %v1687, 0
  %v1825 = vperm.slane %v1688, 0
  %v1826 = vperm.slane %v1448, 0
  %v1827 = vperm.slane %v1692, 0
  %v1828 = vperm.slane %v1693, 0
  %v1829 = vperm.slane %v1694, 0
  %v1830 = vperm.slane %v1450, 0
  %v1831 = vperm.slane %v1698, 0
  %v1832 = vperm.slane %v1699, 0
  %v1833 = vperm.slane %v1700, 0
  %v1834 = vperm.slane %v1452, 0
  %v1835 = vperm.slane %v1704, 0
  %v1836 = vperm.slane %v1705, 0
  %v1837 = vperm.slane %v1706, 0
  %vm1838 = vcmask 1041409
  %v1839 = vsel %vm1838, %v1711, %v1710
  %vm1840 = vcmask 1042434
  %v1841 = vsel %vm1840, %v1712, %v1839
  %vm1842 = vcmask 1043459
  %v1843 = vsel %vm1842, %v1713, %v1841
  %v1844 = vsel %vm1838, %v1715, %v1714
  %v1845 = vsel %vm1840, %v1716, %v1844
  %v1846 = vsel %vm1842, %v1717, %v1845
  %v1847 = vsel %vm1838, %v1719, %v1718
  %v1848 = vsel %vm1840, %v1720, %v1847
  %v1849 = vsel %vm1842, %v1721, %v1848
  %v1850 = vsel %vm1838, %v1723, %v1722
  %v1851 = vsel %vm1840, %v1724, %v1850
  %v1852 = vsel %vm1842, %v1725, %v1851
  %v1853 = vsel %vm1838, %v1727, %v1726
  %v1854 = vsel %vm1840, %v1728, %v1853
  %v1855 = vsel %vm1842, %v1729, %v1854
  %v1856 = vsel %vm1838, %v1731, %v1730
  %v1857 = vsel %vm1840, %v1732, %v1856
  %v1858 = vsel %vm1842, %v1733, %v1857
  %v1859 = vsel %vm1838, %v1735, %v1734
  %v1860 = vsel %vm1840, %v1736, %v1859
  %v1861 = vsel %vm1842, %v1737, %v1860
  %v1862 = vsel %vm1838, %v1739, %v1738
  %v1863 = vsel %vm1840, %v1740, %v1862
  %v1864 = vsel %vm1842, %v1741, %v1863
  %v1865 = vsel %vm1838, %v1743, %v1742
  %v1866 = vsel %vm1840, %v1744, %v1865
  %v1867 = vsel %vm1842, %v1745, %v1866
  %v1868 = vsel %vm1838, %v1747, %v1746
  %v1869 = vsel %vm1840, %v1748, %v1868
  %v1870 = vsel %vm1842, %v1749, %v1869
  %v1871 = vsel %vm1838, %v1751, %v1750
  %v1872 = vsel %vm1840, %v1752, %v1871
  %v1873 = vsel %vm1842, %v1753, %v1872
  %v1874 = vsel %vm1838, %v1755, %v1754
  %v1875 = vsel %vm1840, %v1756, %v1874
  %v1876 = vsel %vm1842, %v1757, %v1875
  %v1877 = vsel %vm1838, %v1759, %v1758
  %v1878 = vsel %vm1840, %v1760, %v1877
  %v1879 = vsel %vm1842, %v1761, %v1878
  %v1880 = vsel %vm1838, %v1763, %v1762
  %v1881 = vsel %vm1840, %v1764, %v1880
  %v1882 = vsel %vm1842, %v1765, %v1881
  %v1883 = vsel %vm1838, %v1767, %v1766
  %v1884 = vsel %vm1840, %v1768, %v1883
  %v1885 = vsel %vm1842, %v1769, %v1884
  %v1886 = vsel %vm1838, %v1771, %v1770
  %v1887 = vsel %vm1840, %v1772, %v1886
  %v1888 = vsel %vm1842, %v1773, %v1887
  %v1889 = vsel %vm1838, %v1775, %v1774
  %v1890 = vsel %vm1840, %v1776, %v1889
  %v1891 = vsel %vm1842, %v1777, %v1890
  %v1892 = vsel %vm1838, %v1779, %v1778
  %v1893 = vsel %vm1840, %v1780, %v1892
  %v1894 = vsel %vm1842, %v1781, %v1893
  %v1895 = vsel %vm1838, %v1783, %v1782
  %v1896 = vsel %vm1840, %v1784, %v1895
  %v1897 = vsel %vm1842, %v1785, %v1896
  %v1898 = vsel %vm1838, %v1787, %v1786
  %v1899 = vsel %vm1840, %v1788, %v1898
  %v1900 = vsel %vm1842, %v1789, %v1899
  %v1901 = vsel %vm1838, %v1791, %v1790
  %v1902 = vsel %vm1840, %v1792, %v1901
  %v1903 = vsel %vm1842, %v1793, %v1902
  %v1904 = vsel %vm1838, %v1795, %v1794
  %v1905 = vsel %vm1840, %v1796, %v1904
  %v1906 = vsel %vm1842, %v1797, %v1905
  %v1907 = vsel %vm1838, %v1799, %v1798
  %v1908 = vsel %vm1840, %v1800, %v1907
  %v1909 = vsel %vm1842, %v1801, %v1908
  %v1910 = vsel %vm1838, %v1803, %v1802
  %v1911 = vsel %vm1840, %v1804, %v1910
  %v1912 = vsel %vm1842, %v1805, %v1911
  %v1913 = vsel %vm1838, %v1807, %v1806
  %v1914 = vsel %vm1840, %v1808, %v1913
  %v1915 = vsel %vm1842, %v1809, %v1914
  %v1916 = vsel %vm1838, %v1811, %v1810
  %v1917 = vsel %vm1840, %v1812, %v1916
  %v1918 = vsel %vm1842, %v1813, %v1917
  %v1919 = vsel %vm1838, %v1815, %v1814
  %v1920 = vsel %vm1840, %v1816, %v1919
  %v1921 = vsel %vm1842, %v1817, %v1920
  %v1922 = vsel %vm1838, %v1819, %v1818
  %v1923 = vsel %vm1840, %v1820, %v1922
  %v1924 = vsel %vm1842, %v1821, %v1923
  %v1925 = vsel %vm1838, %v1823, %v1822
  %v1926 = vsel %vm1840, %v1824, %v1925
  %v1927 = vsel %vm1842, %v1825, %v1926
  %v1928 = vsel %vm1838, %v1827, %v1826
  %v1929 = vsel %vm1840, %v1828, %v1928
  %v1930 = vsel %vm1842, %v1829, %v1929
  %v1931 = vsel %vm1838, %v1831, %v1830
  %v1932 = vsel %vm1840, %v1832, %v1931
  %v1933 = vsel %vm1842, %v1833, %v1932
  %v1934 = vsel %vm1838, %v1835, %v1834
  %v1935 = vsel %vm1840, %v1836, %v1934
  %v1936 = vsel %vm1842, %v1837, %v1935
  %v1969 = vperm.slane %v1390, 1
  %v1970 = vperm.slane %v1518, 1
  %v1971 = vperm.slane %v1519, 1
  %v1972 = vperm.slane %v1520, 1
  %v1973 = vperm.slane %v1392, 1
  %v1974 = vperm.slane %v1524, 1
  %v1975 = vperm.slane %v1525, 1
  %v1976 = vperm.slane %v1526, 1
  %v1977 = vperm.slane %v1394, 1
  %v1978 = vperm.slane %v1530, 1
  %v1979 = vperm.slane %v1531, 1
  %v1980 = vperm.slane %v1532, 1
  %v1981 = vperm.slane %v1396, 1
  %v1982 = vperm.slane %v1536, 1
  %v1983 = vperm.slane %v1537, 1
  %v1984 = vperm.slane %v1538, 1
  %v1985 = vperm.slane %v1398, 1
  %v1986 = vperm.slane %v1542, 1
  %v1987 = vperm.slane %v1543, 1
  %v1988 = vperm.slane %v1544, 1
  %v1989 = vperm.slane %v1400, 1
  %v1990 = vperm.slane %v1548, 1
  %v1991 = vperm.slane %v1549, 1
  %v1992 = vperm.slane %v1550, 1
  %v1993 = vperm.slane %v1402, 1
  %v1994 = vperm.slane %v1554, 1
  %v1995 = vperm.slane %v1555, 1
  %v1996 = vperm.slane %v1556, 1
  %v1997 = vperm.slane %v1404, 1
  %v1998 = vperm.slane %v1560, 1
  %v1999 = vperm.slane %v1561, 1
  %v2000 = vperm.slane %v1562, 1
  %v2001 = vperm.slane %v1406, 1
  %v2002 = vperm.slane %v1566, 1
  %v2003 = vperm.slane %v1567, 1
  %v2004 = vperm.slane %v1568, 1
  %v2005 = vperm.slane %v1408, 1
  %v2006 = vperm.slane %v1572, 1
  %v2007 = vperm.slane %v1573, 1
  %v2008 = vperm.slane %v1574, 1
  %v2009 = vperm.slane %v1410, 1
  %v2010 = vperm.slane %v1578, 1
  %v2011 = vperm.slane %v1579, 1
  %v2012 = vperm.slane %v1580, 1
  %v2013 = vperm.slane %v1412, 1
  %v2014 = vperm.slane %v1584, 1
  %v2015 = vperm.slane %v1585, 1
  %v2016 = vperm.slane %v1586, 1
  %v2017 = vperm.slane %v1414, 1
  %v2018 = vperm.slane %v1590, 1
  %v2019 = vperm.slane %v1591, 1
  %v2020 = vperm.slane %v1592, 1
  %v2021 = vperm.slane %v1416, 1
  %v2022 = vperm.slane %v1596, 1
  %v2023 = vperm.slane %v1597, 1
  %v2024 = vperm.slane %v1598, 1
  %v2025 = vperm.slane %v1418, 1
  %v2026 = vperm.slane %v1602, 1
  %v2027 = vperm.slane %v1603, 1
  %v2028 = vperm.slane %v1604, 1
  %v2029 = vperm.slane %v1420, 1
  %v2030 = vperm.slane %v1608, 1
  %v2031 = vperm.slane %v1609, 1
  %v2032 = vperm.slane %v1610, 1
  %v2033 = vperm.slane %v1422, 1
  %v2034 = vperm.slane %v1614, 1
  %v2035 = vperm.slane %v1615, 1
  %v2036 = vperm.slane %v1616, 1
  %v2037 = vperm.slane %v1424, 1
  %v2038 = vperm.slane %v1620, 1
  %v2039 = vperm.slane %v1621, 1
  %v2040 = vperm.slane %v1622, 1
  %v2041 = vperm.slane %v1426, 1
  %v2042 = vperm.slane %v1626, 1
  %v2043 = vperm.slane %v1627, 1
  %v2044 = vperm.slane %v1628, 1
  %v2045 = vperm.slane %v1428, 1
  %v2046 = vperm.slane %v1632, 1
  %v2047 = vperm.slane %v1633, 1
  %v2048 = vperm.slane %v1634, 1
  %v2049 = vperm.slane %v1430, 1
  %v2050 = vperm.slane %v1638, 1
  %v2051 = vperm.slane %v1639, 1
  %v2052 = vperm.slane %v1640, 1
  %v2053 = vperm.slane %v1432, 1
  %v2054 = vperm.slane %v1644, 1
  %v2055 = vperm.slane %v1645, 1
  %v2056 = vperm.slane %v1646, 1
  %v2057 = vperm.slane %v1434, 1
  %v2058 = vperm.slane %v1650, 1
  %v2059 = vperm.slane %v1651, 1
  %v2060 = vperm.slane %v1652, 1
  %v2061 = vperm.slane %v1436, 1
  %v2062 = vperm.slane %v1656, 1
  %v2063 = vperm.slane %v1657, 1
  %v2064 = vperm.slane %v1658, 1
  %v2065 = vperm.slane %v1438, 1
  %v2066 = vperm.slane %v1662, 1
  %v2067 = vperm.slane %v1663, 1
  %v2068 = vperm.slane %v1664, 1
  %v2069 = vperm.slane %v1440, 1
  %v2070 = vperm.slane %v1668, 1
  %v2071 = vperm.slane %v1669, 1
  %v2072 = vperm.slane %v1670, 1
  %v2073 = vperm.slane %v1442, 1
  %v2074 = vperm.slane %v1674, 1
  %v2075 = vperm.slane %v1675, 1
  %v2076 = vperm.slane %v1676, 1
  %v2077 = vperm.slane %v1444, 1
  %v2078 = vperm.slane %v1680, 1
  %v2079 = vperm.slane %v1681, 1
  %v2080 = vperm.slane %v1682, 1
  %v2081 = vperm.slane %v1446, 1
  %v2082 = vperm.slane %v1686, 1
  %v2083 = vperm.slane %v1687, 1
  %v2084 = vperm.slane %v1688, 1
  %v2085 = vperm.slane %v1448, 1
  %v2086 = vperm.slane %v1692, 1
  %v2087 = vperm.slane %v1693, 1
  %v2088 = vperm.slane %v1694, 1
  %v2089 = vperm.slane %v1450, 1
  %v2090 = vperm.slane %v1698, 1
  %v2091 = vperm.slane %v1699, 1
  %v2092 = vperm.slane %v1700, 1
  %v2093 = vperm.slane %v1452, 1
  %v2094 = vperm.slane %v1704, 1
  %v2095 = vperm.slane %v1705, 1
  %v2096 = vperm.slane %v1706, 1
  %v2097 = vsel %vm1838, %v1970, %v1969
  %v2098 = vsel %vm1840, %v1971, %v2097
  %v2099 = vsel %vm1842, %v1972, %v2098
  %v2100 = vsel %vm1838, %v1974, %v1973
  %v2101 = vsel %vm1840, %v1975, %v2100
  %v2102 = vsel %vm1842, %v1976, %v2101
  %v2103 = vsel %vm1838, %v1978, %v1977
  %v2104 = vsel %vm1840, %v1979, %v2103
  %v2105 = vsel %vm1842, %v1980, %v2104
  %v2106 = vsel %vm1838, %v1982, %v1981
  %v2107 = vsel %vm1840, %v1983, %v2106
  %v2108 = vsel %vm1842, %v1984, %v2107
  %v2109 = vsel %vm1838, %v1986, %v1985
  %v2110 = vsel %vm1840, %v1987, %v2109
  %v2111 = vsel %vm1842, %v1988, %v2110
  %v2112 = vsel %vm1838, %v1990, %v1989
  %v2113 = vsel %vm1840, %v1991, %v2112
  %v2114 = vsel %vm1842, %v1992, %v2113
  %v2115 = vsel %vm1838, %v1994, %v1993
  %v2116 = vsel %vm1840, %v1995, %v2115
  %v2117 = vsel %vm1842, %v1996, %v2116
  %v2118 = vsel %vm1838, %v1998, %v1997
  %v2119 = vsel %vm1840, %v1999, %v2118
  %v2120 = vsel %vm1842, %v2000, %v2119
  %v2121 = vsel %vm1838, %v2002, %v2001
  %v2122 = vsel %vm1840, %v2003, %v2121
  %v2123 = vsel %vm1842, %v2004, %v2122
  %v2124 = vsel %vm1838, %v2006, %v2005
  %v2125 = vsel %vm1840, %v2007, %v2124
  %v2126 = vsel %vm1842, %v2008, %v2125
  %v2127 = vsel %vm1838, %v2010, %v2009
  %v2128 = vsel %vm1840, %v2011, %v2127
  %v2129 = vsel %vm1842, %v2012, %v2128
  %v2130 = vsel %vm1838, %v2014, %v2013
  %v2131 = vsel %vm1840, %v2015, %v2130
  %v2132 = vsel %vm1842, %v2016, %v2131
  %v2133 = vsel %vm1838, %v2018, %v2017
  %v2134 = vsel %vm1840, %v2019, %v2133
  %v2135 = vsel %vm1842, %v2020, %v2134
  %v2136 = vsel %vm1838, %v2022, %v2021
  %v2137 = vsel %vm1840, %v2023, %v2136
  %v2138 = vsel %vm1842, %v2024, %v2137
  %v2139 = vsel %vm1838, %v2026, %v2025
  %v2140 = vsel %vm1840, %v2027, %v2139
  %v2141 = vsel %vm1842, %v2028, %v2140
  %v2142 = vsel %vm1838, %v2030, %v2029
  %v2143 = vsel %vm1840, %v2031, %v2142
  %v2144 = vsel %vm1842, %v2032, %v2143
  %v2145 = vsel %vm1838, %v2034, %v2033
  %v2146 = vsel %vm1840, %v2035, %v2145
  %v2147 = vsel %vm1842, %v2036, %v2146
  %v2148 = vsel %vm1838, %v2038, %v2037
  %v2149 = vsel %vm1840, %v2039, %v2148
  %v2150 = vsel %vm1842, %v2040, %v2149
  %v2151 = vsel %vm1838, %v2042, %v2041
  %v2152 = vsel %vm1840, %v2043, %v2151
  %v2153 = vsel %vm1842, %v2044, %v2152
  %v2154 = vsel %vm1838, %v2046, %v2045
  %v2155 = vsel %vm1840, %v2047, %v2154
  %v2156 = vsel %vm1842, %v2048, %v2155
  %v2157 = vsel %vm1838, %v2050, %v2049
  %v2158 = vsel %vm1840, %v2051, %v2157
  %v2159 = vsel %vm1842, %v2052, %v2158
  %v2160 = vsel %vm1838, %v2054, %v2053
  %v2161 = vsel %vm1840, %v2055, %v2160
  %v2162 = vsel %vm1842, %v2056, %v2161
  %v2163 = vsel %vm1838, %v2058, %v2057
  %v2164 = vsel %vm1840, %v2059, %v2163
  %v2165 = vsel %vm1842, %v2060, %v2164
  %v2166 = vsel %vm1838, %v2062, %v2061
  %v2167 = vsel %vm1840, %v2063, %v2166
  %v2168 = vsel %vm1842, %v2064, %v2167
  %v2169 = vsel %vm1838, %v2066, %v2065
  %v2170 = vsel %vm1840, %v2067, %v2169
  %v2171 = vsel %vm1842, %v2068, %v2170
  %v2172 = vsel %vm1838, %v2070, %v2069
  %v2173 = vsel %vm1840, %v2071, %v2172
  %v2174 = vsel %vm1842, %v2072, %v2173
  %v2175 = vsel %vm1838, %v2074, %v2073
  %v2176 = vsel %vm1840, %v2075, %v2175
  %v2177 = vsel %vm1842, %v2076, %v2176
  %v2178 = vsel %vm1838, %v2078, %v2077
  %v2179 = vsel %vm1840, %v2079, %v2178
  %v2180 = vsel %vm1842, %v2080, %v2179
  %v2181 = vsel %vm1838, %v2082, %v2081
  %v2182 = vsel %vm1840, %v2083, %v2181
  %v2183 = vsel %vm1842, %v2084, %v2182
  %v2184 = vsel %vm1838, %v2086, %v2085
  %v2185 = vsel %vm1840, %v2087, %v2184
  %v2186 = vsel %vm1842, %v2088, %v2185
  %v2187 = vsel %vm1838, %v2090, %v2089
  %v2188 = vsel %vm1840, %v2091, %v2187
  %v2189 = vsel %vm1842, %v2092, %v2188
  %v2190 = vsel %vm1838, %v2094, %v2093
  %v2191 = vsel %vm1840, %v2095, %v2190
  %v2192 = vsel %vm1842, %v2096, %v2191
  %2193 = vrot.lane.b32.xlu0 %v2099, 32
  %v2194 = vpop.permute.xlu0 %2193
  %2195 = vrot.lane.b32.xlu0 %v2102, 32
  %v2196 = vpop.permute.xlu0 %2195
  %2197 = vrot.lane.b32.xlu0 %v2105, 32
  %v2198 = vpop.permute.xlu0 %2197
  %2199 = vrot.lane.b32.xlu0 %v2108, 32
  %v2200 = vpop.permute.xlu0 %2199
  %2201 = vrot.lane.b32.xlu0 %v2111, 32
  %v2202 = vpop.permute.xlu0 %2201
  %2203 = vrot.lane.b32.xlu0 %v2114, 32
  %v2204 = vpop.permute.xlu0 %2203
  %2205 = vrot.lane.b32.xlu0 %v2117, 32
  %v2206 = vpop.permute.xlu0 %2205
  %2207 = vrot.lane.b32.xlu0 %v2120, 32
  %v2208 = vpop.permute.xlu0 %2207
  %2209 = vrot.lane.b32.xlu0 %v2123, 32
  %v2210 = vpop.permute.xlu0 %2209
  %2211 = vrot.lane.b32.xlu0 %v2126, 32
  %v2212 = vpop.permute.xlu0 %2211
  %2213 = vrot.lane.b32.xlu0 %v2129, 32
  %v2214 = vpop.permute.xlu0 %2213
  %2215 = vrot.lane.b32.xlu0 %v2132, 32
  %v2216 = vpop.permute.xlu0 %2215
  %2217 = vrot.lane.b32.xlu0 %v2135, 32
  %v2218 = vpop.permute.xlu0 %2217
  %2219 = vrot.lane.b32.xlu0 %v2138, 32
  %v2220 = vpop.permute.xlu0 %2219
  %2221 = vrot.lane.b32.xlu0 %v2141, 32
  %v2222 = vpop.permute.xlu0 %2221
  %2223 = vrot.lane.b32.xlu0 %v2144, 32
  %v2224 = vpop.permute.xlu0 %2223
  %2225 = vrot.lane.b32.xlu0 %v2147, 32
  %v2226 = vpop.permute.xlu0 %2225
  %2227 = vrot.lane.b32.xlu0 %v2150, 32
  %v2228 = vpop.permute.xlu0 %2227
  %2229 = vrot.lane.b32.xlu0 %v2153, 32
  %v2230 = vpop.permute.xlu0 %2229
  %2231 = vrot.lane.b32.xlu0 %v2156, 32
  %v2232 = vpop.permute.xlu0 %2231
  %2233 = vrot.lane.b32.xlu0 %v2159, 32
  %v2234 = vpop.permute.xlu0 %2233
  %2235 = vrot.lane.b32.xlu0 %v2162, 32
  %v2236 = vpop.permute.xlu0 %2235
  %2237 = vrot.lane.b32.xlu0 %v2165, 32
  %v2238 = vpop.permute.xlu0 %2237
  %2239 = vrot.lane.b32.xlu0 %v2168, 32
  %v2240 = vpop.permute.xlu0 %2239
  %2241 = vrot.lane.b32.xlu0 %v2171, 32
  %v2242 = vpop.permute.xlu0 %2241
  %2243 = vrot.lane.b32.xlu0 %v2174, 32
  %v2244 = vpop.permute.xlu0 %2243
  %2245 = vrot.lane.b32.xlu0 %v2177, 32
  %v2246 = vpop.permute.xlu0 %2245
  %2247 = vrot.lane.b32.xlu0 %v2180, 32
  %v2248 = vpop.permute.xlu0 %2247
  %2249 = vrot.lane.b32.xlu0 %v2183, 32
  %v2250 = vpop.permute.xlu0 %2249
  %2251 = vrot.lane.b32.xlu0 %v2186, 32
  %v2252 = vpop.permute.xlu0 %2251
  %2253 = vrot.lane.b32.xlu0 %v2189, 32
  %v2254 = vpop.permute.xlu0 %2253
  %2255 = vrot.lane.b32.xlu0 %v2192, 32
  %v2256 = vpop.permute.xlu0 %2255
  %v2289 = vperm.slane %v1391, 0
  %v2290 = vperm.slane %v1521, 0
  %v2291 = vperm.slane %v1522, 0
  %v2292 = vperm.slane %v1523, 0
  %v2293 = vperm.slane %v1393, 0
  %v2294 = vperm.slane %v1527, 0
  %v2295 = vperm.slane %v1528, 0
  %v2296 = vperm.slane %v1529, 0
  %v2297 = vperm.slane %v1395, 0
  %v2298 = vperm.slane %v1533, 0
  %v2299 = vperm.slane %v1534, 0
  %v2300 = vperm.slane %v1535, 0
  %v2301 = vperm.slane %v1397, 0
  %v2302 = vperm.slane %v1539, 0
  %v2303 = vperm.slane %v1540, 0
  %v2304 = vperm.slane %v1541, 0
  %v2305 = vperm.slane %v1399, 0
  %v2306 = vperm.slane %v1545, 0
  %v2307 = vperm.slane %v1546, 0
  %v2308 = vperm.slane %v1547, 0
  %v2309 = vperm.slane %v1401, 0
  %v2310 = vperm.slane %v1551, 0
  %v2311 = vperm.slane %v1552, 0
  %v2312 = vperm.slane %v1553, 0
  %v2313 = vperm.slane %v1403, 0
  %v2314 = vperm.slane %v1557, 0
  %v2315 = vperm.slane %v1558, 0
  %v2316 = vperm.slane %v1559, 0
  %v2317 = vperm.slane %v1405, 0
  %v2318 = vperm.slane %v1563, 0
  %v2319 = vperm.slane %v1564, 0
  %v2320 = vperm.slane %v1565, 0
  %v2321 = vperm.slane %v1407, 0
  %v2322 = vperm.slane %v1569, 0
  %v2323 = vperm.slane %v1570, 0
  %v2324 = vperm.slane %v1571, 0
  %v2325 = vperm.slane %v1409, 0
  %v2326 = vperm.slane %v1575, 0
  %v2327 = vperm.slane %v1576, 0
  %v2328 = vperm.slane %v1577, 0
  %v2329 = vperm.slane %v1411, 0
  %v2330 = vperm.slane %v1581, 0
  %v2331 = vperm.slane %v1582, 0
  %v2332 = vperm.slane %v1583, 0
  %v2333 = vperm.slane %v1413, 0
  %v2334 = vperm.slane %v1587, 0
  %v2335 = vperm.slane %v1588, 0
  %v2336 = vperm.slane %v1589, 0
  %v2337 = vperm.slane %v1415, 0
  %v2338 = vperm.slane %v1593, 0
  %v2339 = vperm.slane %v1594, 0
  %v2340 = vperm.slane %v1595, 0
  %v2341 = vperm.slane %v1417, 0
  %v2342 = vperm.slane %v1599, 0
  %v2343 = vperm.slane %v1600, 0
  %v2344 = vperm.slane %v1601, 0
  %v2345 = vperm.slane %v1419, 0
  %v2346 = vperm.slane %v1605, 0
  %v2347 = vperm.slane %v1606, 0
  %v2348 = vperm.slane %v1607, 0
  %v2349 = vperm.slane %v1421, 0
  %v2350 = vperm.slane %v1611, 0
  %v2351 = vperm.slane %v1612, 0
  %v2352 = vperm.slane %v1613, 0
  %v2353 = vperm.slane %v1423, 0
  %v2354 = vperm.slane %v1617, 0
  %v2355 = vperm.slane %v1618, 0
  %v2356 = vperm.slane %v1619, 0
  %v2357 = vperm.slane %v1425, 0
  %v2358 = vperm.slane %v1623, 0
  %v2359 = vperm.slane %v1624, 0
  %v2360 = vperm.slane %v1625, 0
  %v2361 = vperm.slane %v1427, 0
  %v2362 = vperm.slane %v1629, 0
  %v2363 = vperm.slane %v1630, 0
  %v2364 = vperm.slane %v1631, 0
  %v2365 = vperm.slane %v1429, 0
  %v2366 = vperm.slane %v1635, 0
  %v2367 = vperm.slane %v1636, 0
  %v2368 = vperm.slane %v1637, 0
  %v2369 = vperm.slane %v1431, 0
  %v2370 = vperm.slane %v1641, 0
  %v2371 = vperm.slane %v1642, 0
  %v2372 = vperm.slane %v1643, 0
  %v2373 = vperm.slane %v1433, 0
  %v2374 = vperm.slane %v1647, 0
  %v2375 = vperm.slane %v1648, 0
  %v2376 = vperm.slane %v1649, 0
  %v2377 = vperm.slane %v1435, 0
  %v2378 = vperm.slane %v1653, 0
  %v2379 = vperm.slane %v1654, 0
  %v2380 = vperm.slane %v1655, 0
  %v2381 = vperm.slane %v1437, 0
  %v2382 = vperm.slane %v1659, 0
  %v2383 = vperm.slane %v1660, 0
  %v2384 = vperm.slane %v1661, 0
  %v2385 = vperm.slane %v1439, 0
  %v2386 = vperm.slane %v1665, 0
  %v2387 = vperm.slane %v1666, 0
  %v2388 = vperm.slane %v1667, 0
  %v2389 = vperm.slane %v1441, 0
  %v2390 = vperm.slane %v1671, 0
  %v2391 = vperm.slane %v1672, 0
  %v2392 = vperm.slane %v1673, 0
  %v2393 = vperm.slane %v1443, 0
  %v2394 = vperm.slane %v1677, 0
  %v2395 = vperm.slane %v1678, 0
  %v2396 = vperm.slane %v1679, 0
  %v2397 = vperm.slane %v1445, 0
  %v2398 = vperm.slane %v1683, 0
  %v2399 = vperm.slane %v1684, 0
  %v2400 = vperm.slane %v1685, 0
  %v2401 = vperm.slane %v1447, 0
  %v2402 = vperm.slane %v1689, 0
  %v2403 = vperm.slane %v1690, 0
  %v2404 = vperm.slane %v1691, 0
  %v2405 = vperm.slane %v1449, 0
  %v2406 = vperm.slane %v1695, 0
  %v2407 = vperm.slane %v1696, 0
  %v2408 = vperm.slane %v1697, 0
  %v2409 = vperm.slane %v1451, 0
  %v2410 = vperm.slane %v1701, 0
  %v2411 = vperm.slane %v1702, 0
  %v2412 = vperm.slane %v1703, 0
  %v2413 = vperm.slane %v1453, 0
  %v2414 = vperm.slane %v1707, 0
  %v2415 = vperm.slane %v1708, 0
  %v2416 = vperm.slane %v1709, 0
  %v2417 = vsel %vm1838, %v2290, %v2289
  %v2418 = vsel %vm1840, %v2291, %v2417
  %v2419 = vsel %vm1842, %v2292, %v2418
  %v2420 = vsel %vm1838, %v2294, %v2293
  %v2421 = vsel %vm1840, %v2295, %v2420
  %v2422 = vsel %vm1842, %v2296, %v2421
  %v2423 = vsel %vm1838, %v2298, %v2297
  %v2424 = vsel %vm1840, %v2299, %v2423
  %v2425 = vsel %vm1842, %v2300, %v2424
  %v2426 = vsel %vm1838, %v2302, %v2301
  %v2427 = vsel %vm1840, %v2303, %v2426
  %v2428 = vsel %vm1842, %v2304, %v2427
  %v2429 = vsel %vm1838, %v2306, %v2305
  %v2430 = vsel %vm1840, %v2307, %v2429
  %v2431 = vsel %vm1842, %v2308, %v2430
  %v2432 = vsel %vm1838, %v2310, %v2309
  %v2433 = vsel %vm1840, %v2311, %v2432
  %v2434 = vsel %vm1842, %v2312, %v2433
  %v2435 = vsel %vm1838, %v2314, %v2313
  %v2436 = vsel %vm1840, %v2315, %v2435
  %v2437 = vsel %vm1842, %v2316, %v2436
  %v2438 = vsel %vm1838, %v2318, %v2317
  %v2439 = vsel %vm1840, %v2319, %v2438
  %v2440 = vsel %vm1842, %v2320, %v2439
  %v2441 = vsel %vm1838, %v2322, %v2321
  %v2442 = vsel %vm1840, %v2323, %v2441
  %v2443 = vsel %vm1842, %v2324, %v2442
  %v2444 = vsel %vm1838, %v2326, %v2325
  %v2445 = vsel %vm1840, %v2327, %v2444
  %v2446 = vsel %vm1842, %v2328, %v2445
  %v2447 = vsel %vm1838, %v2330, %v2329
  %v2448 = vsel %vm1840, %v2331, %v2447
  %v2449 = vsel %vm1842, %v2332, %v2448
  %v2450 = vsel %vm1838, %v2334, %v2333
  %v2451 = vsel %vm1840, %v2335, %v2450
  %v2452 = vsel %vm1842, %v2336, %v2451
  %v2453 = vsel %vm1838, %v2338, %v2337
  %v2454 = vsel %vm1840, %v2339, %v2453
  %v2455 = vsel %vm1842, %v2340, %v2454
  %v2456 = vsel %vm1838, %v2342, %v2341
  %v2457 = vsel %vm1840, %v2343, %v2456
  %v2458 = vsel %vm1842, %v2344, %v2457
  %v2459 = vsel %vm1838, %v2346, %v2345
  %v2460 = vsel %vm1840, %v2347, %v2459
  %v2461 = vsel %vm1842, %v2348, %v2460
  %v2462 = vsel %vm1838, %v2350, %v2349
  %v2463 = vsel %vm1840, %v2351, %v2462
  %v2464 = vsel %vm1842, %v2352, %v2463
  %v2465 = vsel %vm1838, %v2354, %v2353
  %v2466 = vsel %vm1840, %v2355, %v2465
  %v2467 = vsel %vm1842, %v2356, %v2466
  %v2468 = vsel %vm1838, %v2358, %v2357
  %v2469 = vsel %vm1840, %v2359, %v2468
  %v2470 = vsel %vm1842, %v2360, %v2469
  %v2471 = vsel %vm1838, %v2362, %v2361
  %v2472 = vsel %vm1840, %v2363, %v2471
  %v2473 = vsel %vm1842, %v2364, %v2472
  %v2474 = vsel %vm1838, %v2366, %v2365
  %v2475 = vsel %vm1840, %v2367, %v2474
  %v2476 = vsel %vm1842, %v2368, %v2475
  %v2477 = vsel %vm1838, %v2370, %v2369
  %v2478 = vsel %vm1840, %v2371, %v2477
  %v2479 = vsel %vm1842, %v2372, %v2478
  %v2480 = vsel %vm1838, %v2374, %v2373
  %v2481 = vsel %vm1840, %v2375, %v2480
  %v2482 = vsel %vm1842, %v2376, %v2481
  %v2483 = vsel %vm1838, %v2378, %v2377
  %v2484 = vsel %vm1840, %v2379, %v2483
  %v2485 = vsel %vm1842, %v2380, %v2484
  %v2486 = vsel %vm1838, %v2382, %v2381
  %v2487 = vsel %vm1840, %v2383, %v2486
  %v2488 = vsel %vm1842, %v2384, %v2487
  %v2489 = vsel %vm1838, %v2386, %v2385
  %v2490 = vsel %vm1840, %v2387, %v2489
  %v2491 = vsel %vm1842, %v2388, %v2490
  %v2492 = vsel %vm1838, %v2390, %v2389
  %v2493 = vsel %vm1840, %v2391, %v2492
  %v2494 = vsel %vm1842, %v2392, %v2493
  %v2495 = vsel %vm1838, %v2394, %v2393
  %v2496 = vsel %vm1840, %v2395, %v2495
  %v2497 = vsel %vm1842, %v2396, %v2496
  %v2498 = vsel %vm1838, %v2398, %v2397
  %v2499 = vsel %vm1840, %v2399, %v2498
  %v2500 = vsel %vm1842, %v2400, %v2499
  %v2501 = vsel %vm1838, %v2402, %v2401
  %v2502 = vsel %vm1840, %v2403, %v2501
  %v2503 = vsel %vm1842, %v2404, %v2502
  %v2504 = vsel %vm1838, %v2406, %v2405
  %v2505 = vsel %vm1840, %v2407, %v2504
  %v2506 = vsel %vm1842, %v2408, %v2505
  %v2507 = vsel %vm1838, %v2410, %v2409
  %v2508 = vsel %vm1840, %v2411, %v2507
  %v2509 = vsel %vm1842, %v2412, %v2508
  %v2510 = vsel %vm1838, %v2414, %v2413
  %v2511 = vsel %vm1840, %v2415, %v2510
  %v2512 = vsel %vm1842, %v2416, %v2511
  %2513 = vrot.lane.b32.xlu0 %v2419, 64
  %v2514 = vpop.permute.xlu0 %2513
  %2515 = vrot.lane.b32.xlu0 %v2422, 64
  %v2516 = vpop.permute.xlu0 %2515
  %2517 = vrot.lane.b32.xlu0 %v2425, 64
  %v2518 = vpop.permute.xlu0 %2517
  %2519 = vrot.lane.b32.xlu0 %v2428, 64
  %v2520 = vpop.permute.xlu0 %2519
  %2521 = vrot.lane.b32.xlu0 %v2431, 64
  %v2522 = vpop.permute.xlu0 %2521
  %2523 = vrot.lane.b32.xlu0 %v2434, 64
  %v2524 = vpop.permute.xlu0 %2523
  %2525 = vrot.lane.b32.xlu0 %v2437, 64
  %v2526 = vpop.permute.xlu0 %2525
  %2527 = vrot.lane.b32.xlu0 %v2440, 64
  %v2528 = vpop.permute.xlu0 %2527
  %2529 = vrot.lane.b32.xlu0 %v2443, 64
  %v2530 = vpop.permute.xlu0 %2529
  %2531 = vrot.lane.b32.xlu0 %v2446, 64
  %v2532 = vpop.permute.xlu0 %2531
  %2533 = vrot.lane.b32.xlu0 %v2449, 64
  %v2534 = vpop.permute.xlu0 %2533
  %2535 = vrot.lane.b32.xlu0 %v2452, 64
  %v2536 = vpop.permute.xlu0 %2535
  %2537 = vrot.lane.b32.xlu0 %v2455, 64
  %v2538 = vpop.permute.xlu0 %2537
  %2539 = vrot.lane.b32.xlu0 %v2458, 64
  %v2540 = vpop.permute.xlu0 %2539
  %2541 = vrot.lane.b32.xlu0 %v2461, 64
  %v2542 = vpop.permute.xlu0 %2541
  %2543 = vrot.lane.b32.xlu0 %v2464, 64
  %v2544 = vpop.permute.xlu0 %2543
  %2545 = vrot.lane.b32.xlu0 %v2467, 64
  %v2546 = vpop.permute.xlu0 %2545
  %2547 = vrot.lane.b32.xlu0 %v2470, 64
  %v2548 = vpop.permute.xlu0 %2547
  %2549 = vrot.lane.b32.xlu0 %v2473, 64
  %v2550 = vpop.permute.xlu0 %2549
  %2551 = vrot.lane.b32.xlu0 %v2476, 64
  %v2552 = vpop.permute.xlu0 %2551
  %2553 = vrot.lane.b32.xlu0 %v2479, 64
  %v2554 = vpop.permute.xlu0 %2553
  %2555 = vrot.lane.b32.xlu0 %v2482, 64
  %v2556 = vpop.permute.xlu0 %2555
  %2557 = vrot.lane.b32.xlu0 %v2485, 64
  %v2558 = vpop.permute.xlu0 %2557
  %2559 = vrot.lane.b32.xlu0 %v2488, 64
  %v2560 = vpop.permute.xlu0 %2559
  %2561 = vrot.lane.b32.xlu0 %v2491, 64
  %v2562 = vpop.permute.xlu0 %2561
  %2563 = vrot.lane.b32.xlu0 %v2494, 64
  %v2564 = vpop.permute.xlu0 %2563
  %2565 = vrot.lane.b32.xlu0 %v2497, 64
  %v2566 = vpop.permute.xlu0 %2565
  %2567 = vrot.lane.b32.xlu0 %v2500, 64
  %v2568 = vpop.permute.xlu0 %2567
  %2569 = vrot.lane.b32.xlu0 %v2503, 64
  %v2570 = vpop.permute.xlu0 %2569
  %2571 = vrot.lane.b32.xlu0 %v2506, 64
  %v2572 = vpop.permute.xlu0 %2571
  %2573 = vrot.lane.b32.xlu0 %v2509, 64
  %v2574 = vpop.permute.xlu0 %2573
  %2575 = vrot.lane.b32.xlu0 %v2512, 64
  %v2576 = vpop.permute.xlu0 %2575
  %v2609 = vperm.slane %v1391, 1
  %v2610 = vperm.slane %v1521, 1
  %v2611 = vperm.slane %v1522, 1
  %v2612 = vperm.slane %v1523, 1
  %v2613 = vperm.slane %v1393, 1
  %v2614 = vperm.slane %v1527, 1
  %v2615 = vperm.slane %v1528, 1
  %v2616 = vperm.slane %v1529, 1
  %v2617 = vperm.slane %v1395, 1
  %v2618 = vperm.slane %v1533, 1
  %v2619 = vperm.slane %v1534, 1
  %v2620 = vperm.slane %v1535, 1
  %v2621 = vperm.slane %v1397, 1
  %v2622 = vperm.slane %v1539, 1
  %v2623 = vperm.slane %v1540, 1
  %v2624 = vperm.slane %v1541, 1
  %v2625 = vperm.slane %v1399, 1
  %v2626 = vperm.slane %v1545, 1
  %v2627 = vperm.slane %v1546, 1
  %v2628 = vperm.slane %v1547, 1
  %v2629 = vperm.slane %v1401, 1
  %v2630 = vperm.slane %v1551, 1
  %v2631 = vperm.slane %v1552, 1
  %v2632 = vperm.slane %v1553, 1
  %v2633 = vperm.slane %v1403, 1
  %v2634 = vperm.slane %v1557, 1
  %v2635 = vperm.slane %v1558, 1
  %v2636 = vperm.slane %v1559, 1
  %v2637 = vperm.slane %v1405, 1
  %v2638 = vperm.slane %v1563, 1
  %v2639 = vperm.slane %v1564, 1
  %v2640 = vperm.slane %v1565, 1
  %v2641 = vperm.slane %v1407, 1
  %v2642 = vperm.slane %v1569, 1
  %v2643 = vperm.slane %v1570, 1
  %v2644 = vperm.slane %v1571, 1
  %v2645 = vperm.slane %v1409, 1
  %v2646 = vperm.slane %v1575, 1
  %v2647 = vperm.slane %v1576, 1
  %v2648 = vperm.slane %v1577, 1
  %v2649 = vperm.slane %v1411, 1
  %v2650 = vperm.slane %v1581, 1
  %v2651 = vperm.slane %v1582, 1
  %v2652 = vperm.slane %v1583, 1
  %v2653 = vperm.slane %v1413, 1
  %v2654 = vperm.slane %v1587, 1
  %v2655 = vperm.slane %v1588, 1
  %v2656 = vperm.slane %v1589, 1
  %v2657 = vperm.slane %v1415, 1
  %v2658 = vperm.slane %v1593, 1
  %v2659 = vperm.slane %v1594, 1
  %v2660 = vperm.slane %v1595, 1
  %v2661 = vperm.slane %v1417, 1
  %v2662 = vperm.slane %v1599, 1
  %v2663 = vperm.slane %v1600, 1
  %v2664 = vperm.slane %v1601, 1
  %v2665 = vperm.slane %v1419, 1
  %v2666 = vperm.slane %v1605, 1
  %v2667 = vperm.slane %v1606, 1
  %v2668 = vperm.slane %v1607, 1
  %v2669 = vperm.slane %v1421, 1
  %v2670 = vperm.slane %v1611, 1
  %v2671 = vperm.slane %v1612, 1
  %v2672 = vperm.slane %v1613, 1
  %v2673 = vperm.slane %v1423, 1
  %v2674 = vperm.slane %v1617, 1
  %v2675 = vperm.slane %v1618, 1
  %v2676 = vperm.slane %v1619, 1
  %v2677 = vperm.slane %v1425, 1
  %v2678 = vperm.slane %v1623, 1
  %v2679 = vperm.slane %v1624, 1
  %v2680 = vperm.slane %v1625, 1
  %v2681 = vperm.slane %v1427, 1
  %v2682 = vperm.slane %v1629, 1
  %v2683 = vperm.slane %v1630, 1
  %v2684 = vperm.slane %v1631, 1
  %v2685 = vperm.slane %v1429, 1
  %v2686 = vperm.slane %v1635, 1
  %v2687 = vperm.slane %v1636, 1
  %v2688 = vperm.slane %v1637, 1
  %v2689 = vperm.slane %v1431, 1
  %v2690 = vperm.slane %v1641, 1
  %v2691 = vperm.slane %v1642, 1
  %v2692 = vperm.slane %v1643, 1
  %v2693 = vperm.slane %v1433, 1
  %v2694 = vperm.slane %v1647, 1
  %v2695 = vperm.slane %v1648, 1
  %v2696 = vperm.slane %v1649, 1
  %v2697 = vperm.slane %v1435, 1
  %v2698 = vperm.slane %v1653, 1
  %v2699 = vperm.slane %v1654, 1
  %v2700 = vperm.slane %v1655, 1
  %v2701 = vperm.slane %v1437, 1
  %v2702 = vperm.slane %v1659, 1
  %v2703 = vperm.slane %v1660, 1
  %v2704 = vperm.slane %v1661, 1
  %v2705 = vperm.slane %v1439, 1
  %v2706 = vperm.slane %v1665, 1
  %v2707 = vperm.slane %v1666, 1
  %v2708 = vperm.slane %v1667, 1
  %v2709 = vperm.slane %v1441, 1
  %v2710 = vperm.slane %v1671, 1
  %v2711 = vperm.slane %v1672, 1
  %v2712 = vperm.slane %v1673, 1
  %v2713 = vperm.slane %v1443, 1
  %v2714 = vperm.slane %v1677, 1
  %v2715 = vperm.slane %v1678, 1
  %v2716 = vperm.slane %v1679, 1
  %v2717 = vperm.slane %v1445, 1
  %v2718 = vperm.slane %v1683, 1
  %v2719 = vperm.slane %v1684, 1
  %v2720 = vperm.slane %v1685, 1
  %v2721 = vperm.slane %v1447, 1
  %v2722 = vperm.slane %v1689, 1
  %v2723 = vperm.slane %v1690, 1
  %v2724 = vperm.slane %v1691, 1
  %v2725 = vperm.slane %v1449, 1
  %v2726 = vperm.slane %v1695, 1
  %v2727 = vperm.slane %v1696, 1
  %v2728 = vperm.slane %v1697, 1
  %v2729 = vperm.slane %v1451, 1
  %v2730 = vperm.slane %v1701, 1
  %v2731 = vperm.slane %v1702, 1
  %v2732 = vperm.slane %v1703, 1
  %v2733 = vperm.slane %v1453, 1
  %v2734 = vperm.slane %v1707, 1
  %v2735 = vperm.slane %v1708, 1
  %v2736 = vperm.slane %v1709, 1
  %v2737 = vsel %vm1838, %v2610, %v2609
  %v2738 = vsel %vm1840, %v2611, %v2737
  %v2739 = vsel %vm1842, %v2612, %v2738
  %v2740 = vsel %vm1838, %v2614, %v2613
  %v2741 = vsel %vm1840, %v2615, %v2740
  %v2742 = vsel %vm1842, %v2616, %v2741
  %v2743 = vsel %vm1838, %v2618, %v2617
  %v2744 = vsel %vm1840, %v2619, %v2743
  %v2745 = vsel %vm1842, %v2620, %v2744
  %v2746 = vsel %vm1838, %v2622, %v2621
  %v2747 = vsel %vm1840, %v2623, %v2746
  %v2748 = vsel %vm1842, %v2624, %v2747
  %v2749 = vsel %vm1838, %v2626, %v2625
  %v2750 = vsel %vm1840, %v2627, %v2749
  %v2751 = vsel %vm1842, %v2628, %v2750
  %v2752 = vsel %vm1838, %v2630, %v2629
  %v2753 = vsel %vm1840, %v2631, %v2752
  %v2754 = vsel %vm1842, %v2632, %v2753
  %v2755 = vsel %vm1838, %v2634, %v2633
  %v2756 = vsel %vm1840, %v2635, %v2755
  %v2757 = vsel %vm1842, %v2636, %v2756
  %v2758 = vsel %vm1838, %v2638, %v2637
  %v2759 = vsel %vm1840, %v2639, %v2758
  %v2760 = vsel %vm1842, %v2640, %v2759
  %v2761 = vsel %vm1838, %v2642, %v2641
  %v2762 = vsel %vm1840, %v2643, %v2761
  %v2763 = vsel %vm1842, %v2644, %v2762
  %v2764 = vsel %vm1838, %v2646, %v2645
  %v2765 = vsel %vm1840, %v2647, %v2764
  %v2766 = vsel %vm1842, %v2648, %v2765
  %v2767 = vsel %vm1838, %v2650, %v2649
  %v2768 = vsel %vm1840, %v2651, %v2767
  %v2769 = vsel %vm1842, %v2652, %v2768
  %v2770 = vsel %vm1838, %v2654, %v2653
  %v2771 = vsel %vm1840, %v2655, %v2770
  %v2772 = vsel %vm1842, %v2656, %v2771
  %v2773 = vsel %vm1838, %v2658, %v2657
  %v2774 = vsel %vm1840, %v2659, %v2773
  %v2775 = vsel %vm1842, %v2660, %v2774
  %v2776 = vsel %vm1838, %v2662, %v2661
  %v2777 = vsel %vm1840, %v2663, %v2776
  %v2778 = vsel %vm1842, %v2664, %v2777
  %v2779 = vsel %vm1838, %v2666, %v2665
  %v2780 = vsel %vm1840, %v2667, %v2779
  %v2781 = vsel %vm1842, %v2668, %v2780
  %v2782 = vsel %vm1838, %v2670, %v2669
  %v2783 = vsel %vm1840, %v2671, %v2782
  %v2784 = vsel %vm1842, %v2672, %v2783
  %v2785 = vsel %vm1838, %v2674, %v2673
  %v2786 = vsel %vm1840, %v2675, %v2785
  %v2787 = vsel %vm1842, %v2676, %v2786
  %v2788 = vsel %vm1838, %v2678, %v2677
  %v2789 = vsel %vm1840, %v2679, %v2788
  %v2790 = vsel %vm1842, %v2680, %v2789
  %v2791 = vsel %vm1838, %v2682, %v2681
  %v2792 = vsel %vm1840, %v2683, %v2791
  %v2793 = vsel %vm1842, %v2684, %v2792
  %v2794 = vsel %vm1838, %v2686, %v2685
  %v2795 = vsel %vm1840, %v2687, %v2794
  %v2796 = vsel %vm1842, %v2688, %v2795
  %v2797 = vsel %vm1838, %v2690, %v2689
  %v2798 = vsel %vm1840, %v2691, %v2797
  %v2799 = vsel %vm1842, %v2692, %v2798
  %v2800 = vsel %vm1838, %v2694, %v2693
  %v2801 = vsel %vm1840, %v2695, %v2800
  %v2802 = vsel %vm1842, %v2696, %v2801
  %v2803 = vsel %vm1838, %v2698, %v2697
  %v2804 = vsel %vm1840, %v2699, %v2803
  %v2805 = vsel %vm1842, %v2700, %v2804
  %v2806 = vsel %vm1838, %v2702, %v2701
  %v2807 = vsel %vm1840, %v2703, %v2806
  %v2808 = vsel %vm1842, %v2704, %v2807
  %v2809 = vsel %vm1838, %v2706, %v2705
  %v2810 = vsel %vm1840, %v2707, %v2809
  %v2811 = vsel %vm1842, %v2708, %v2810
  %v2812 = vsel %vm1838, %v2710, %v2709
  %v2813 = vsel %vm1840, %v2711, %v2812
  %v2814 = vsel %vm1842, %v2712, %v2813
  %v2815 = vsel %vm1838, %v2714, %v2713
  %v2816 = vsel %vm1840, %v2715, %v2815
  %v2817 = vsel %vm1842, %v2716, %v2816
  %v2818 = vsel %vm1838, %v2718, %v2717
  %v2819 = vsel %vm1840, %v2719, %v2818
  %v2820 = vsel %vm1842, %v2720, %v2819
  %v2821 = vsel %vm1838, %v2722, %v2721
  %v2822 = vsel %vm1840, %v2723, %v2821
  %v2823 = vsel %vm1842, %v2724, %v2822
  %v2824 = vsel %vm1838, %v2726, %v2725
  %v2825 = vsel %vm1840, %v2727, %v2824
  %v2826 = vsel %vm1842, %v2728, %v2825
  %v2827 = vsel %vm1838, %v2730, %v2729
  %v2828 = vsel %vm1840, %v2731, %v2827
  %v2829 = vsel %vm1842, %v2732, %v2828
  %v2830 = vsel %vm1838, %v2734, %v2733
  %v2831 = vsel %vm1840, %v2735, %v2830
  %v2832 = vsel %vm1842, %v2736, %v2831
  %2833 = vrot.lane.b32.xlu0 %v2739, 96
  %v2834 = vpop.permute.xlu0 %2833
  %2835 = vrot.lane.b32.xlu0 %v2742, 96
  %v2836 = vpop.permute.xlu0 %2835
  %2837 = vrot.lane.b32.xlu0 %v2745, 96
  %v2838 = vpop.permute.xlu0 %2837
  %2839 = vrot.lane.b32.xlu0 %v2748, 96
  %v2840 = vpop.permute.xlu0 %2839
  %2841 = vrot.lane.b32.xlu0 %v2751, 96
  %v2842 = vpop.permute.xlu0 %2841
  %2843 = vrot.lane.b32.xlu0 %v2754, 96
  %v2844 = vpop.permute.xlu0 %2843
  %2845 = vrot.lane.b32.xlu0 %v2757, 96
  %v2846 = vpop.permute.xlu0 %2845
  %2847 = vrot.lane.b32.xlu0 %v2760, 96
  %v2848 = vpop.permute.xlu0 %2847
  %2849 = vrot.lane.b32.xlu0 %v2763, 96
  %v2850 = vpop.permute.xlu0 %2849
  %2851 = vrot.lane.b32.xlu0 %v2766, 96
  %v2852 = vpop.permute.xlu0 %2851
  %2853 = vrot.lane.b32.xlu0 %v2769, 96
  %v2854 = vpop.permute.xlu0 %2853
  %2855 = vrot.lane.b32.xlu0 %v2772, 96
  %v2856 = vpop.permute.xlu0 %2855
  %2857 = vrot.lane.b32.xlu0 %v2775, 96
  %v2858 = vpop.permute.xlu0 %2857
  %2859 = vrot.lane.b32.xlu0 %v2778, 96
  %v2860 = vpop.permute.xlu0 %2859
  %2861 = vrot.lane.b32.xlu0 %v2781, 96
  %v2862 = vpop.permute.xlu0 %2861
  %2863 = vrot.lane.b32.xlu0 %v2784, 96
  %v2864 = vpop.permute.xlu0 %2863
  %2865 = vrot.lane.b32.xlu0 %v2787, 96
  %v2866 = vpop.permute.xlu0 %2865
  %2867 = vrot.lane.b32.xlu0 %v2790, 96
  %v2868 = vpop.permute.xlu0 %2867
  %2869 = vrot.lane.b32.xlu0 %v2793, 96
  %v2870 = vpop.permute.xlu0 %2869
  %2871 = vrot.lane.b32.xlu0 %v2796, 96
  %v2872 = vpop.permute.xlu0 %2871
  %2873 = vrot.lane.b32.xlu0 %v2799, 96
  %v2874 = vpop.permute.xlu0 %2873
  %2875 = vrot.lane.b32.xlu0 %v2802, 96
  %v2876 = vpop.permute.xlu0 %2875
  %2877 = vrot.lane.b32.xlu0 %v2805, 96
  %v2878 = vpop.permute.xlu0 %2877
  %2879 = vrot.lane.b32.xlu0 %v2808, 96
  %v2880 = vpop.permute.xlu0 %2879
  %2881 = vrot.lane.b32.xlu0 %v2811, 96
  %v2882 = vpop.permute.xlu0 %2881
  %2883 = vrot.lane.b32.xlu0 %v2814, 96
  %v2884 = vpop.permute.xlu0 %2883
  %2885 = vrot.lane.b32.xlu0 %v2817, 96
  %v2886 = vpop.permute.xlu0 %2885
  %2887 = vrot.lane.b32.xlu0 %v2820, 96
  %v2888 = vpop.permute.xlu0 %2887
  %2889 = vrot.lane.b32.xlu0 %v2823, 96
  %v2890 = vpop.permute.xlu0 %2889
  %2891 = vrot.lane.b32.xlu0 %v2826, 96
  %v2892 = vpop.permute.xlu0 %2891
  %2893 = vrot.lane.b32.xlu0 %v2829, 96
  %v2894 = vpop.permute.xlu0 %2893
  %2895 = vrot.lane.b32.xlu0 %v2832, 96
  %v2896 = vpop.permute.xlu0 %2895
  %vm2929 = vcmask 261120
  %v2930 = vsel %vm2929, %v1843, %v2194
  %v2931 = vsel %vm2929, %v1846, %v2196
  %v2932 = vsel %vm2929, %v1849, %v2198
  %v2933 = vsel %vm2929, %v1852, %v2200
  %v2934 = vsel %vm2929, %v1855, %v2202
  %v2935 = vsel %vm2929, %v1858, %v2204
  %v2936 = vsel %vm2929, %v1861, %v2206
  %v2937 = vsel %vm2929, %v1864, %v2208
  %v2938 = vsel %vm2929, %v1867, %v2210
  %v2939 = vsel %vm2929, %v1870, %v2212
  %v2940 = vsel %vm2929, %v1873, %v2214
  %v2941 = vsel %vm2929, %v1876, %v2216
  %v2942 = vsel %vm2929, %v1879, %v2218
  %v2943 = vsel %vm2929, %v1882, %v2220
  %v2944 = vsel %vm2929, %v1885, %v2222
  %v2945 = vsel %vm2929, %v1888, %v2224
  %v2946 = vsel %vm2929, %v1891, %v2226
  %v2947 = vsel %vm2929, %v1894, %v2228
  %v2948 = vsel %vm2929, %v1897, %v2230
  %v2949 = vsel %vm2929, %v1900, %v2232
  %v2950 = vsel %vm2929, %v1903, %v2234
  %v2951 = vsel %vm2929, %v1906, %v2236
  %v2952 = vsel %vm2929, %v1909, %v2238
  %v2953 = vsel %vm2929, %v1912, %v2240
  %v2954 = vsel %vm2929, %v1915, %v2242
  %v2955 = vsel %vm2929, %v1918, %v2244
  %v2956 = vsel %vm2929, %v1921, %v2246
  %v2957 = vsel %vm2929, %v1924, %v2248
  %v2958 = vsel %vm2929, %v1927, %v2250
  %v2959 = vsel %vm2929, %v1930, %v2252
  %v2960 = vsel %vm2929, %v1933, %v2254
  %v2961 = vsel %vm2929, %v1936, %v2256
  %v2962 = vsel %vm807, %v2930, %v2514
  %v2963 = vsel %vm807, %v2931, %v2516
  %v2964 = vsel %vm807, %v2932, %v2518
  %v2965 = vsel %vm807, %v2933, %v2520
  %v2966 = vsel %vm807, %v2934, %v2522
  %v2967 = vsel %vm807, %v2935, %v2524
  %v2968 = vsel %vm807, %v2936, %v2526
  %v2969 = vsel %vm807, %v2937, %v2528
  %v2970 = vsel %vm807, %v2938, %v2530
  %v2971 = vsel %vm807, %v2939, %v2532
  %v2972 = vsel %vm807, %v2940, %v2534
  %v2973 = vsel %vm807, %v2941, %v2536
  %v2974 = vsel %vm807, %v2942, %v2538
  %v2975 = vsel %vm807, %v2943, %v2540
  %v2976 = vsel %vm807, %v2944, %v2542
  %v2977 = vsel %vm807, %v2945, %v2544
  %v2978 = vsel %vm807, %v2946, %v2546
  %v2979 = vsel %vm807, %v2947, %v2548
  %v2980 = vsel %vm807, %v2948, %v2550
  %v2981 = vsel %vm807, %v2949, %v2552
  %v2982 = vsel %vm807, %v2950, %v2554
  %v2983 = vsel %vm807, %v2951, %v2556
  %v2984 = vsel %vm807, %v2952, %v2558
  %v2985 = vsel %vm807, %v2953, %v2560
  %v2986 = vsel %vm807, %v2954, %v2562
  %v2987 = vsel %vm807, %v2955, %v2564
  %v2988 = vsel %vm807, %v2956, %v2566
  %v2989 = vsel %vm807, %v2957, %v2568
  %v2990 = vsel %vm807, %v2958, %v2570
  %v2991 = vsel %vm807, %v2959, %v2572
  %v2992 = vsel %vm807, %v2960, %v2574
  %v2993 = vsel %vm807, %v2961, %v2576
  %vm2994 = vcmask 785408
  %v2995 = vsel %vm2994, %v2962, %v2834
  %v2996 = vsel %vm2994, %v2963, %v2836
  %v2997 = vsel %vm2994, %v2964, %v2838
  %v2998 = vsel %vm2994, %v2965, %v2840
  %v2999 = vsel %vm2994, %v2966, %v2842
  %v3000 = vsel %vm2994, %v2967, %v2844
  %v3001 = vsel %vm2994, %v2968, %v2846
  %v3002 = vsel %vm2994, %v2969, %v2848
  %v3003 = vsel %vm2994, %v2970, %v2850
  %v3004 = vsel %vm2994, %v2971, %v2852
  %v3005 = vsel %vm2994, %v2972, %v2854
  %v3006 = vsel %vm2994, %v2973, %v2856
  %v3007 = vsel %vm2994, %v2974, %v2858
  %v3008 = vsel %vm2994, %v2975, %v2860
  %v3009 = vsel %vm2994, %v2976, %v2862
  %v3010 = vsel %vm2994, %v2977, %v2864
  %v3011 = vsel %vm2994, %v2978, %v2866
  %v3012 = vsel %vm2994, %v2979, %v2868
  %v3013 = vsel %vm2994, %v2980, %v2870
  %v3014 = vsel %vm2994, %v2981, %v2872
  %v3015 = vsel %vm2994, %v2982, %v2874
  %v3016 = vsel %vm2994, %v2983, %v2876
  %v3017 = vsel %vm2994, %v2984, %v2878
  %v3018 = vsel %vm2994, %v2985, %v2880
  %v3019 = vsel %vm2994, %v2986, %v2882
  %v3020 = vsel %vm2994, %v2987, %v2884
  %v3021 = vsel %vm2994, %v2988, %v2886
  %v3022 = vsel %vm2994, %v2989, %v2888
  %v3023 = vsel %vm2994, %v2990, %v2890
  %v3024 = vsel %vm2994, %v2991, %v2892
  %v3025 = vsel %vm2994, %v2992, %v2894
  %v3026 = vsel %vm2994, %v2993, %v2896
  %v3051 = vrot.slane %v2995, 1
  %v3052 = vrot.slane %v2995, 2
  %v3053 = vrot.slane %v2996, 1
  %v3054 = vrot.slane %v2996, 2
  %v3055 = vrot.slane %v2997, 1
  %v3056 = vrot.slane %v2997, 2
  %v3057 = vrot.slane %v2999, 1
  %v3058 = vrot.slane %v2999, 2
  %v3059 = vrot.slane %v3000, 1
  %v3060 = vrot.slane %v3000, 2
  %v3061 = vrot.slane %v3001, 1
  %v3062 = vrot.slane %v3001, 2
  %v3063 = vrot.slane %v3003, 1
  %v3064 = vrot.slane %v3003, 2
  %v3065 = vrot.slane %v3004, 1
  %v3066 = vrot.slane %v3004, 2
  %v3067 = vrot.slane %v3005, 1
  %v3068 = vrot.slane %v3005, 2
  %v3069 = vrot.slane %v3007, 1
  %v3070 = vrot.slane %v3007, 2
  %v3071 = vrot.slane %v3008, 1
  %v3072 = vrot.slane %v3008, 2
  %v3073 = vrot.slane %v3009, 1
  %v3074 = vrot.slane %v3009, 2
  %v3075 = vrot.slane %v3011, 1
  %v3076 = vrot.slane %v3011, 2
  %v3077 = vrot.slane %v3012, 1
  %v3078 = vrot.slane %v3012, 2
  %v3079 = vrot.slane %v3013, 1
  %v3080 = vrot.slane %v3013, 2
  %v3081 = vrot.slane %v3015, 1
  %v3082 = vrot.slane %v3015, 2
  %v3083 = vrot.slane %v3016, 1
  %v3084 = vrot.slane %v3016, 2
  %v3085 = vrot.slane %v3017, 1
  %v3086 = vrot.slane %v3017, 2
  %v3087 = vrot.slane %v3019, 1
  %v3088 = vrot.slane %v3019, 2
  %v3089 = vrot.slane %v3020, 1
  %v3090 = vrot.slane %v3020, 2
  %v3091 = vrot.slane %v3021, 1
  %v3092 = vrot.slane %v3021, 2
  %v3093 = vrot.slane %v3023, 1
  %v3094 = vrot.slane %v3023, 2
  %v3095 = vrot.slane %v3024, 1
  %v3096 = vrot.slane %v3024, 2
  %v3097 = vrot.slane %v3025, 1
  %v3098 = vrot.slane %v3025, 2
  %v3099 = vld [vmem:[%s3] sm:$0xff]
  %v3100 = vld [vmem:[%s3 + $0x8] sm:$0xff]
  %v3101 = vld [vmem:[%s3 + $0x10] sm:$0xff]
  %v3102 = vld [vmem:[%s3 + $0x18] sm:$0xff]
  %v3103 = vld [vmem:[%s3 + $0x20] sm:$0xff]
  %v3104 = vld [vmem:[%s3 + $0x28] sm:$0xff]
  %v3105 = vld [vmem:[%s3 + $0x30] sm:$0xff]
  %v3106 = vld [vmem:[%s3 + $0x38] sm:$0xff]
  %v3107 = vld [vmem:[%s3 + $0x40] sm:$0xff]
  %v3108 = vld [vmem:[%s3 + $0x48] sm:$0xff]
  %v3109 = vld [vmem:[%s3 + $0x50] sm:$0xff]
  %v3110 = vld [vmem:[%s3 + $0x58] sm:$0xff]
  %v3111 = vld [vmem:[%s3 + $0x60] sm:$0xff]
  %v3112 = vld [vmem:[%s3 + $0x68] sm:$0xff]
  %v3113 = vld [vmem:[%s3 + $0x70] sm:$0xff]
  %v3114 = vld [vmem:[%s3 + $0x78] sm:$0xff]
  %3115 = vst [vmem:[#allocation1] sm:$0xff] %v2995
  %s3116 = scalar_lea.vmem [#allocation1], 1
  %v3117 = vld [vmem:[%s3116] ss:$9 sm:$0xff]
  %s3118 = scalar_lea.vmem [#allocation1], 2
  %v3119 = vld [vmem:[%s3118] ss:$9 sm:$0xff]
  %s3120 = scalar_lea.vmem [#allocation1], 3
  %v3121 = vld [vmem:[%s3120] ss:$9 sm:$0xff]
  %3122 = vst [vmem:[#allocation1] sm:$0xff] %v2996
  %v3123 = vld [vmem:[%s3116] ss:$9 sm:$0xff]
  %v3124 = vld [vmem:[%s3118] ss:$9 sm:$0xff]
  %v3125 = vld [vmem:[%s3120] ss:$9 sm:$0xff]
  %3126 = vst [vmem:[#allocation1] sm:$0xff] %v2997
  %v3127 = vld [vmem:[%s3116] ss:$9 sm:$0xff]
  %v3128 = vld [vmem:[%s3118] ss:$9 sm:$0xff]
  %v3129 = vld [vmem:[%s3120] ss:$9 sm:$0xff]
  %3130 = vst [vmem:[#allocation1] sm:$0xff] %v2999
  %v3131 = vld [vmem:[%s3116] ss:$9 sm:$0xff]
  %v3132 = vld [vmem:[%s3118] ss:$9 sm:$0xff]
  %v3133 = vld [vmem:[%s3120] ss:$9 sm:$0xff]
  %3134 = vst [vmem:[#allocation1] sm:$0xff] %v3000
  %v3135 = vld [vmem:[%s3116] ss:$9 sm:$0xff]
  %v3136 = vld [vmem:[%s3118] ss:$9 sm:$0xff]
  %v3137 = vld [vmem:[%s3120] ss:$9 sm:$0xff]
  %3138 = vst [vmem:[#allocation1] sm:$0xff] %v3001
  %v3139 = vld [vmem:[%s3116] ss:$9 sm:$0xff]
  %v3140 = vld [vmem:[%s3118] ss:$9 sm:$0xff]
  %v3141 = vld [vmem:[%s3120] ss:$9 sm:$0xff]
  %3142 = vst [vmem:[#allocation1] sm:$0xff] %v3003
  %v3143 = vld [vmem:[%s3116] ss:$9 sm:$0xff]
  %v3144 = vld [vmem:[%s3118] ss:$9 sm:$0xff]
  %v3145 = vld [vmem:[%s3120] ss:$9 sm:$0xff]
  %3146 = vst [vmem:[#allocation1] sm:$0xff] %v3004
  %v3147 = vld [vmem:[%s3116] ss:$9 sm:$0xff]
  %v3148 = vld [vmem:[%s3118] ss:$9 sm:$0xff]
  %v3149 = vld [vmem:[%s3120] ss:$9 sm:$0xff]
  %3150 = vst [vmem:[#allocation1] sm:$0xff] %v3005
  %v3151 = vld [vmem:[%s3116] ss:$9 sm:$0xff]
  %v3152 = vld [vmem:[%s3118] ss:$9 sm:$0xff]
  %v3153 = vld [vmem:[%s3120] ss:$9 sm:$0xff]
  %3154 = vst [vmem:[#allocation1] sm:$0xff] %v3007
  %v3155 = vld [vmem:[%s3116] ss:$9 sm:$0xff]
  %v3156 = vld [vmem:[%s3118] ss:$9 sm:$0xff]
  %v3157 = vld [vmem:[%s3120] ss:$9 sm:$0xff]
  %3158 = vst [vmem:[#allocation1] sm:$0xff] %v3008
  %v3159 = vld [vmem:[%s3116] ss:$9 sm:$0xff]
  %v3160 = vld [vmem:[%s3118] ss:$9 sm:$0xff]
  %v3161 = vld [vmem:[%s3120] ss:$9 sm:$0xff]
  %3162 = vst [vmem:[#allocation1] sm:$0xff] %v3009
  %v3163 = vld [vmem:[%s3116] ss:$9 sm:$0xff]
  %v3164 = vld [vmem:[%s3118] ss:$9 sm:$0xff]
  %v3165 = vld [vmem:[%s3120] ss:$9 sm:$0xff]
  %3166 = vst [vmem:[#allocation1] sm:$0xff] %v3011
  %v3167 = vld [vmem:[%s3116] ss:$9 sm:$0xff]
  %v3168 = vld [vmem:[%s3118] ss:$9 sm:$0xff]
  %v3169 = vld [vmem:[%s3120] ss:$9 sm:$0xff]
  %3170 = vst [vmem:[#allocation1] sm:$0xff] %v3012
  %v3171 = vld [vmem:[%s3116] ss:$9 sm:$0xff]
  %v3172 = vld [vmem:[%s3118] ss:$9 sm:$0xff]
  %v3173 = vld [vmem:[%s3120] ss:$9 sm:$0xff]
  %3174 = vst [vmem:[#allocation1] sm:$0xff] %v3013
  %v3175 = vld [vmem:[%s3116] ss:$9 sm:$0xff]
  %v3176 = vld [vmem:[%s3118] ss:$9 sm:$0xff]
  %v3177 = vld [vmem:[%s3120] ss:$9 sm:$0xff]
  %3178 = vst [vmem:[#allocation1] sm:$0xff] %v3015
  %v3179 = vld [vmem:[%s3116] ss:$9 sm:$0xff]
  %v3180 = vld [vmem:[%s3118] ss:$9 sm:$0xff]
  %v3181 = vld [vmem:[%s3120] ss:$9 sm:$0xff]
  %3182 = vst [vmem:[#allocation1] sm:$0xff] %v3016
  %v3183 = vld [vmem:[%s3116] ss:$9 sm:$0xff]
  %v3184 = vld [vmem:[%s3118] ss:$9 sm:$0xff]
  %v3185 = vld [vmem:[%s3120] ss:$9 sm:$0xff]
  %3186 = vst [vmem:[#allocation1] sm:$0xff] %v3017
  %v3187 = vld [vmem:[%s3116] ss:$9 sm:$0xff]
  %v3188 = vld [vmem:[%s3118] ss:$9 sm:$0xff]
  %v3189 = vld [vmem:[%s3120] ss:$9 sm:$0xff]
  %3190 = vst [vmem:[#allocation1] sm:$0xff] %v3019
  %v3191 = vld [vmem:[%s3116] ss:$9 sm:$0xff]
  %v3192 = vld [vmem:[%s3118] ss:$9 sm:$0xff]
  %v3193 = vld [vmem:[%s3120] ss:$9 sm:$0xff]
  %3194 = vst [vmem:[#allocation1] sm:$0xff] %v3020
  %v3195 = vld [vmem:[%s3116] ss:$9 sm:$0xff]
  %v3196 = vld [vmem:[%s3118] ss:$9 sm:$0xff]
  %v3197 = vld [vmem:[%s3120] ss:$9 sm:$0xff]
  %3198 = vst [vmem:[#allocation1] sm:$0xff] %v3021
  %v3199 = vld [vmem:[%s3116] ss:$9 sm:$0xff]
  %v3200 = vld [vmem:[%s3118] ss:$9 sm:$0xff]
  %v3201 = vld [vmem:[%s3120] ss:$9 sm:$0xff]
  %3202 = vst [vmem:[#allocation1] sm:$0xff] %v3023
  %v3203 = vld [vmem:[%s3116] ss:$9 sm:$0xff]
  %v3204 = vld [vmem:[%s3118] ss:$9 sm:$0xff]
  %v3205 = vld [vmem:[%s3120] ss:$9 sm:$0xff]
  %3206 = vst [vmem:[#allocation1] sm:$0xff] %v3024
  %v3207 = vld [vmem:[%s3116] ss:$9 sm:$0xff]
  %v3208 = vld [vmem:[%s3118] ss:$9 sm:$0xff]
  %v3209 = vld [vmem:[%s3120] ss:$9 sm:$0xff]
  %3210 = vst [vmem:[#allocation1] sm:$0xff] %v3025
  %v3211 = vld [vmem:[%s3116] ss:$9 sm:$0xff]
  %v3212 = vld [vmem:[%s3118] ss:$9 sm:$0xff]
  %v3213 = vld [vmem:[%s3120] ss:$9 sm:$0xff]
  %s3214 = scalar_lea.vmem %s3, 128
  %v3215 = vld [vmem:[%s3214] sm:$0xff]
  %v3216 = vld [vmem:[%s3214 + $0x8] sm:$0xff]
  %v3217 = vld [vmem:[%s3214 + $0x10] sm:$0xff]
  %v3218 = vld [vmem:[%s3214 + $0x18] sm:$0xff]
  %v3219 = vld [vmem:[%s3214 + $0x20] sm:$0xff]
  %v3220 = vld [vmem:[%s3214 + $0x28] sm:$0xff]
  %v3221 = vld [vmem:[%s3214 + $0x30] sm:$0xff]
  %v3222 = vld [vmem:[%s3214 + $0x38] sm:$0xff]
  %v3223 = vld [vmem:[%s3214 + $0x40] sm:$0xff]
  %v3224 = vld [vmem:[%s3214 + $0x48] sm:$0xff]
  %v3225 = vld [vmem:[%s3214 + $0x50] sm:$0xff]
  %v3226 = vld [vmem:[%s3214 + $0x58] sm:$0xff]
  %v3227 = vld [vmem:[%s3214 + $0x60] sm:$0xff]
  %v3228 = vld [vmem:[%s3214 + $0x68] sm:$0xff]
  %v3229 = vld [vmem:[%s3214 + $0x70] sm:$0xff]
  %v3230 = vld [vmem:[%s3214 + $0x78] sm:$0xff]
  %3231 = vst [vmem:[#allocation1] ss:$9 sm:$0xff] %v3117
  %s3232 = scalar_lea.vmem [#allocation1], 1
  %3233 = vst [vmem:[%s3232] ss:$9 sm:$0xff] %v3119
  %s3234 = scalar_lea.vmem [#allocation1], 2
  %3235 = vst [vmem:[%s3234] ss:$9 sm:$0xff] %v3121
  %s3236 = scalar_lea.vmem [#allocation1], 3
  %3237 = vst [vmem:[%s3236] ss:$9 sm:$0xff] %v3123
  %s3238 = scalar_lea.vmem [#allocation1], 4
  %3239 = vst [vmem:[%s3238] ss:$9 sm:$0xff] %v3124
  %s3240 = scalar_lea.vmem [#allocation1], 5
  %3241 = vst [vmem:[%s3240] ss:$9 sm:$0xff] %v3125
  %s3242 = scalar_lea.vmem [#allocation1], 6
  %3243 = vst [vmem:[%s3242] ss:$9 sm:$0xff] %v3127
  %s3244 = scalar_lea.vmem [#allocation1], 7
  %3245 = vst [vmem:[%s3244] ss:$9 sm:$0xff] %v3128
  %v3246 = vld [vmem:[#allocation1] sm:$0xff]
  %3247 = vst [vmem:[#allocation1] ss:$9 sm:$0xff] %v3129
  %3248 = vst [vmem:[%s3232] ss:$9 sm:$0xff] %v3131
  %3249 = vst [vmem:[%s3234] ss:$9 sm:$0xff] %v3132
  %3250 = vst [vmem:[%s3236] ss:$9 sm:$0xff] %v3133
  %3251 = vst [vmem:[%s3238] ss:$9 sm:$0xff] %v3135
  %3252 = vst [vmem:[%s3240] ss:$9 sm:$0xff] %v3136
  %3253 = vst [vmem:[%s3242] ss:$9 sm:$0xff] %v3137
  %3254 = vst [vmem:[%s3244] ss:$9 sm:$0xff] %v3139
  %v3255 = vld [vmem:[#allocation1] sm:$0xff]
  %3256 = vst [vmem:[#allocation1] ss:$9 sm:$0xff] %v3140
  %3257 = vst [vmem:[%s3232] ss:$9 sm:$0xff] %v3141
  %3258 = vst [vmem:[%s3234] ss:$9 sm:$0xff] %v3143
  %3259 = vst [vmem:[%s3236] ss:$9 sm:$0xff] %v3144
  %3260 = vst [vmem:[%s3238] ss:$9 sm:$0xff] %v3145
  %3261 = vst [vmem:[%s3240] ss:$9 sm:$0xff] %v3147
  %3262 = vst [vmem:[%s3242] ss:$9 sm:$0xff] %v3148
  %3263 = vst [vmem:[%s3244] ss:$9 sm:$0xff] %v3149
  %v3264 = vld [vmem:[#allocation1] sm:$0xff]
  %3265 = vst [vmem:[#allocation1] ss:$9 sm:$0xff] %v3151
  %3266 = vst [vmem:[%s3232] ss:$9 sm:$0xff] %v3152
  %3267 = vst [vmem:[%s3234] ss:$9 sm:$0xff] %v3153
  %3268 = vst [vmem:[%s3236] ss:$9 sm:$0xff] %v3155
  %3269 = vst [vmem:[%s3238] ss:$9 sm:$0xff] %v3156
  %3270 = vst [vmem:[%s3240] ss:$9 sm:$0xff] %v3157
  %3271 = vst [vmem:[%s3242] ss:$9 sm:$0xff] %v3159
  %3272 = vst [vmem:[%s3244] ss:$9 sm:$0xff] %v3160
  %v3273 = vld [vmem:[#allocation1] sm:$0xff]
  %3274 = vst [vmem:[#allocation1] ss:$9 sm:$0xff] %v3161
  %3275 = vst [vmem:[%s3232] ss:$9 sm:$0xff] %v3163
  %3276 = vst [vmem:[%s3234] ss:$9 sm:$0xff] %v3164
  %3277 = vst [vmem:[%s3236] ss:$9 sm:$0xff] %v3165
  %3278 = vst [vmem:[%s3238] ss:$9 sm:$0xff] %v3167
  %3279 = vst [vmem:[%s3240] ss:$9 sm:$0xff] %v3168
  %3280 = vst [vmem:[%s3242] ss:$9 sm:$0xff] %v3169
  %3281 = vst [vmem:[%s3244] ss:$9 sm:$0xff] %v3171
  %v3282 = vld [vmem:[#allocation1] sm:$0xff]
  %3283 = vst [vmem:[#allocation1] ss:$9 sm:$0xff] %v3172
  %3284 = vst [vmem:[%s3232] ss:$9 sm:$0xff] %v3173
  %3285 = vst [vmem:[%s3234] ss:$9 sm:$0xff] %v3175
  %3286 = vst [vmem:[%s3236] ss:$9 sm:$0xff] %v3176
  %3287 = vst [vmem:[%s3238] ss:$9 sm:$0xff] %v3177
  %3288 = vst [vmem:[%s3240] ss:$9 sm:$0xff] %v3179
  %3289 = vst [vmem:[%s3242] ss:$9 sm:$0xff] %v3180
  %3290 = vst [vmem:[%s3244] ss:$9 sm:$0xff] %v3181
  %v3291 = vld [vmem:[#allocation1] sm:$0xff]
  %3292 = vst [vmem:[#allocation1] ss:$9 sm:$0xff] %v3183
  %3293 = vst [vmem:[%s3232] ss:$9 sm:$0xff] %v3184
  %3294 = vst [vmem:[%s3234] ss:$9 sm:$0xff] %v3185
  %3295 = vst [vmem:[%s3236] ss:$9 sm:$0xff] %v3187
  %3296 = vst [vmem:[%s3238] ss:$9 sm:$0xff] %v3188
  %3297 = vst [vmem:[%s3240] ss:$9 sm:$0xff] %v3189
  %3298 = vst [vmem:[%s3242] ss:$9 sm:$0xff] %v3191
  %3299 = vst [vmem:[%s3244] ss:$9 sm:$0xff] %v3192
  %v3300 = vld [vmem:[#allocation1] sm:$0xff]
  %3301 = vst [vmem:[#allocation1] ss:$9 sm:$0xff] %v3193
  %3302 = vst [vmem:[%s3232] ss:$9 sm:$0xff] %v3195
  %3303 = vst [vmem:[%s3234] ss:$9 sm:$0xff] %v3196
  %3304 = vst [vmem:[%s3236] ss:$9 sm:$0xff] %v3197
  %3305 = vst [vmem:[%s3238] ss:$9 sm:$0xff] %v3199
  %3306 = vst [vmem:[%s3240] ss:$9 sm:$0xff] %v3200
  %3307 = vst [vmem:[%s3242] ss:$9 sm:$0xff] %v3201
  %3308 = vst [vmem:[%s3244] ss:$9 sm:$0xff] %v3203
  %v3309 = vld [vmem:[#allocation1] sm:$0xff]
  %3310 = vst [vmem:[#allocation1] ss:$9 sm:$0xff] %v3204
  %3311 = vst [vmem:[%s3232] ss:$9 sm:$0xff] %v3205
  %3312 = vst [vmem:[%s3234] ss:$9 sm:$0xff] %v3207
  %3313 = vst [vmem:[%s3236] ss:$9 sm:$0xff] %v3208
  %3314 = vst [vmem:[%s3238] ss:$9 sm:$0xff] %v3209
  %3315 = vst [vmem:[%s3240] ss:$9 sm:$0xff] %v3211
  %3316 = vst [vmem:[%s3242] ss:$9 sm:$0xff] %v3212
  %3317 = vst [vmem:[%s3244] ss:$9 sm:$0xff] %v3213
  %v3318 = vld [vmem:[#allocation1] sm:$0xff]
  %3328 = vmatpush.msra.mxu0 %v3230
  %3329 = vmatpush.msra.mxu0 %v3229
  %3330 = vmatpush.msra.mxu0 %v3228
  %3331 = vmatpush.msra.mxu0 %v3227
  %3332 = vmatpush.msra.mxu0 %v3226
  %3333 = vmatpush.msra.mxu0 %v3225
  %3334 = vmatpush.msra.mxu0 %v3224
  %3335 = vmatpush.msra.mxu0 %v3223
  %3336 = vmatpush.msra.mxu0 %v3222
  %3337 = vmatpush.msra.mxu0 %v3221
  %3338 = vmatpush.msra.mxu0 %v3220
  %3339 = vmatpush.msra.mxu0 %v3219
  %3340 = vmatpush.msra.mxu0 %v3218
  %3341 = vmatpush.msra.mxu0 %v3217
  %3342 = vmatpush.msra.mxu0 %v3216
  %3343 = vmatpush.msra.mxu0 %v3215
  %3344 = vmatmul.f32.gmra.mxu0 %v3246
  %v3345 = vpop.f32.mrf.mxu0
  %v3346 = vadd.f32 0.0, %v3345
  %3347 = vmatmul.f32.gmra.mxu0 %v3255
  %v3348 = vpop.f32.mrf.mxu0
  %v3349 = vadd.f32 0.0, %v3348
  %3350 = vmatmul.f32.gmra.mxu0 %v3264
  %v3351 = vpop.f32.mrf.mxu0
  %v3352 = vadd.f32 0.0, %v3351
  %3353 = vmatmul.f32.gmra.mxu0 %v3273
  %v3354 = vpop.f32.mrf.mxu0
  %v3355 = vadd.f32 0.0, %v3354
  %3356 = vmatmul.f32.gmra.mxu0 %v3282
  %v3357 = vpop.f32.mrf.mxu0
  %v3358 = vadd.f32 0.0, %v3357
  %3359 = vmatmul.f32.gmra.mxu0 %v3291
  %v3360 = vpop.f32.mrf.mxu0
  %v3361 = vadd.f32 0.0, %v3360
  %3362 = vmatmul.f32.gmra.mxu0 %v3300
  %v3363 = vpop.f32.mrf.mxu0
  %v3364 = vadd.f32 0.0, %v3363
  %3365 = vmatmul.f32.gmra.mxu0 %v3309
  %v3366 = vpop.f32.mrf.mxu0
  %v3367 = vadd.f32 0.0, %v3366
  %3368 = vmatmul.f32.gmra.mxu0 %v3318
  %v3369 = vpop.f32.mrf.mxu0
  %v3370 = vadd.f32 0.0, %v3369
  %3371 = vdwg.mxu0
  %3372 = vst [vmem:[#allocation1] ss:$9 sm:$0xff] %v2995
  %s3373 = scalar_lea.vmem [#allocation1], 1
  %3374 = vst [vmem:[%s3373] ss:$9 sm:$0xff] %v3051
  %s3375 = scalar_lea.vmem [#allocation1], 2
  %3376 = vst [vmem:[%s3375] ss:$9 sm:$0xff] %v3052
  %s3377 = scalar_lea.vmem [#allocation1], 3
  %3378 = vst [vmem:[%s3377] ss:$9 sm:$0xff] %v2996
  %s3379 = scalar_lea.vmem [#allocation1], 4
  %3380 = vst [vmem:[%s3379] ss:$9 sm:$0xff] %v3053
  %s3381 = scalar_lea.vmem [#allocation1], 5
  %3382 = vst [vmem:[%s3381] ss:$9 sm:$0xff] %v3054
  %s3383 = scalar_lea.vmem [#allocation1], 6
  %3384 = vst [vmem:[%s3383] ss:$9 sm:$0xff] %v2997
  %s3385 = scalar_lea.vmem [#allocation1], 7
  %3386 = vst [vmem:[%s3385] ss:$9 sm:$0xff] %v3055
  %v3387 = vld [vmem:[#allocation1] sm:$0xff]
  %3388 = vst [vmem:[#allocation1] ss:$9 sm:$0xff] %v3056
  %3389 = vst [vmem:[%s3373] ss:$9 sm:$0xff] %v2999
  %3390 = vst [vmem:[%s3375] ss:$9 sm:$0xff] %v3057
  %3391 = vst [vmem:[%s3377] ss:$9 sm:$0xff] %v3058
  %3392 = vst [vmem:[%s3379] ss:$9 sm:$0xff] %v3000
  %3393 = vst [vmem:[%s3381] ss:$9 sm:$0xff] %v3059
  %3394 = vst [vmem:[%s3383] ss:$9 sm:$0xff] %v3060
  %3395 = vst [vmem:[%s3385] ss:$9 sm:$0xff] %v3001
  %v3396 = vld [vmem:[#allocation1] sm:$0xff]
  %3397 = vst [vmem:[#allocation1] ss:$9 sm:$0xff] %v3061
  %3398 = vst [vmem:[%s3373] ss:$9 sm:$0xff] %v3062
  %3399 = vst [vmem:[%s3375] ss:$9 sm:$0xff] %v3003
  %3400 = vst [vmem:[%s3377] ss:$9 sm:$0xff] %v3063
  %3401 = vst [vmem:[%s3379] ss:$9 sm:$0xff] %v3064
  %3402 = vst [vmem:[%s3381] ss:$9 sm:$0xff] %v3004
  %3403 = vst [vmem:[%s3383] ss:$9 sm:$0xff] %v3065
  %3404 = vst [vmem:[%s3385] ss:$9 sm:$0xff] %v3066
  %v3405 = vld [vmem:[#allocation1] sm:$0xff]
  %3406 = vst [vmem:[#allocation1] ss:$9 sm:$0xff] %v3005
  %3407 = vst [vmem:[%s3373] ss:$9 sm:$0xff] %v3067
  %3408 = vst [vmem:[%s3375] ss:$9 sm:$0xff] %v3068
  %3409 = vst [vmem:[%s3377] ss:$9 sm:$0xff] %v3007
  %3410 = vst [vmem:[%s3379] ss:$9 sm:$0xff] %v3069
  %3411 = vst [vmem:[%s3381] ss:$9 sm:$0xff] %v3070
  %3412 = vst [vmem:[%s3383] ss:$9 sm:$0xff] %v3008
  %3413 = vst [vmem:[%s3385] ss:$9 sm:$0xff] %v3071
  %v3414 = vld [vmem:[#allocation1] sm:$0xff]
  %3415 = vst [vmem:[#allocation1] ss:$9 sm:$0xff] %v3072
  %3416 = vst [vmem:[%s3373] ss:$9 sm:$0xff] %v3009
  %3417 = vst [vmem:[%s3375] ss:$9 sm:$0xff] %v3073
  %3418 = vst [vmem:[%s3377] ss:$9 sm:$0xff] %v3074
  %3419 = vst [vmem:[%s3379] ss:$9 sm:$0xff] %v3011
  %3420 = vst [vmem:[%s3381] ss:$9 sm:$0xff] %v3075
  %3421 = vst [vmem:[%s3383] ss:$9 sm:$0xff] %v3076
  %3422 = vst [vmem:[%s3385] ss:$9 sm:$0xff] %v3012
  %v3423 = vld [vmem:[#allocation1] sm:$0xff]
  %3424 = vst [vmem:[#allocation1] ss:$9 sm:$0xff] %v3077
  %3425 = vst [vmem:[%s3373] ss:$9 sm:$0xff] %v3078
  %3426 = vst [vmem:[%s3375] ss:$9 sm:$0xff] %v3013
  %3427 = vst [vmem:[%s3377] ss:$9 sm:$0xff] %v3079
  %3428 = vst [vmem:[%s3379] ss:$9 sm:$0xff] %v3080
  %3429 = vst [vmem:[%s3381] ss:$9 sm:$0xff] %v3015
  %3430 = vst [vmem:[%s3383] ss:$9 sm:$0xff] %v3081
  %3431 = vst [vmem:[%s3385] ss:$9 sm:$0xff] %v3082
  %v3432 = vld [vmem:[#allocation1] sm:$0xff]
  %3433 = vst [vmem:[#allocation1] ss:$9 sm:$0xff] %v3016
  %3434 = vst [vmem:[%s3373] ss:$9 sm:$0xff] %v3083
  %3435 = vst [vmem:[%s3375] ss:$9 sm:$0xff] %v3084
  %3436 = vst [vmem:[%s3377] ss:$9 sm:$0xff] %v3017
  %3437 = vst [vmem:[%s3379] ss:$9 sm:$0xff] %v3085
  %3438 = vst [vmem:[%s3381] ss:$9 sm:$0xff] %v3086
  %3439 = vst [vmem:[%s3383] ss:$9 sm:$0xff] %v3019
  %3440 = vst [vmem:[%s3385] ss:$9 sm:$0xff] %v3087
  %v3441 = vld [vmem:[#allocation1] sm:$0xff]
  %3442 = vst [vmem:[#allocation1] ss:$9 sm:$0xff] %v3088
  %3443 = vst [vmem:[%s3373] ss:$9 sm:$0xff] %v3020
  %3444 = vst [vmem:[%s3375] ss:$9 sm:$0xff] %v3089
  %3445 = vst [vmem:[%s3377] ss:$9 sm:$0xff] %v3090
  %3446 = vst [vmem:[%s3379] ss:$9 sm:$0xff] %v3021
  %3447 = vst [vmem:[%s3381] ss:$9 sm:$0xff] %v3091
  %3448 = vst [vmem:[%s3383] ss:$9 sm:$0xff] %v3092
  %3449 = vst [vmem:[%s3385] ss:$9 sm:$0xff] %v3023
  %v3450 = vld [vmem:[#allocation1] sm:$0xff]
  %3451 = vst [vmem:[#allocation1] ss:$9 sm:$0xff] %v3093
  %3452 = vst [vmem:[%s3373] ss:$9 sm:$0xff] %v3094
  %3453 = vst [vmem:[%s3375] ss:$9 sm:$0xff] %v3024
  %3454 = vst [vmem:[%s3377] ss:$9 sm:$0xff] %v3095
  %3455 = vst [vmem:[%s3379] ss:$9 sm:$0xff] %v3096
  %3456 = vst [vmem:[%s3381] ss:$9 sm:$0xff] %v3025
  %3457 = vst [vmem:[%s3383] ss:$9 sm:$0xff] %v3097
  %3458 = vst [vmem:[%s3385] ss:$9 sm:$0xff] %v3098
  %v3459 = vld [vmem:[#allocation1] sm:$0xff]
  %3469 = vmatpush.msra.mxu0 %v3114
  %3470 = vmatpush.msra.mxu0 %v3113
  %3471 = vmatpush.msra.mxu0 %v3112
  %3472 = vmatpush.msra.mxu0 %v3111
  %3473 = vmatpush.msra.mxu0 %v3110
  %3474 = vmatpush.msra.mxu0 %v3109
  %3475 = vmatpush.msra.mxu0 %v3108
  %3476 = vmatpush.msra.mxu0 %v3107
  %3477 = vmatpush.msra.mxu0 %v3106
  %3478 = vmatpush.msra.mxu0 %v3105
  %3479 = vmatpush.msra.mxu0 %v3104
  %3480 = vmatpush.msra.mxu0 %v3103
  %3481 = vmatpush.msra.mxu0 %v3102
  %3482 = vmatpush.msra.mxu0 %v3101
  %3483 = vmatpush.msra.mxu0 %v3100
  %3484 = vmatpush.msra.mxu0 %v3099
  %3485 = vmatmul.f32.gmra.mxu0 %v3387
  %v3486 = vpop.f32.mrf.mxu0
  %v3487 = vadd.f32 %v3346, %v3486
  %3488 = vmatmul.f32.gmra.mxu0 %v3396
  %v3489 = vpop.f32.mrf.mxu0
  %v3490 = vadd.f32 %v3349, %v3489
  %3491 = vmatmul.f32.gmra.mxu0 %v3405
  %v3492 = vpop.f32.mrf.mxu0
  %v3493 = vadd.f32 %v3352, %v3492
  %3494 = vmatmul.f32.gmra.mxu0 %v3414
  %v3495 = vpop.f32.mrf.mxu0
  %v3496 = vadd.f32 %v3355, %v3495
  %3497 = vmatmul.f32.gmra.mxu0 %v3423
  %v3498 = vpop.f32.mrf.mxu0
  %v3499 = vadd.f32 %v3358, %v3498
  %3500 = vmatmul.f32.gmra.mxu0 %v3432
  %v3501 = vpop.f32.mrf.mxu0
  %v3502 = vadd.f32 %v3361, %v3501
  %3503 = vmatmul.f32.gmra.mxu0 %v3441
  %v3504 = vpop.f32.mrf.mxu0
  %v3505 = vadd.f32 %v3364, %v3504
  %3506 = vmatmul.f32.gmra.mxu0 %v3450
  %v3507 = vpop.f32.mrf.mxu0
  %v3508 = vadd.f32 %v3367, %v3507
  %3509 = vmatmul.f32.gmra.mxu0 %v3459
  %v3510 = vpop.f32.mrf.mxu0
  %v3511 = vadd.f32 %v3370, %v3510
  %3512 = vdwg.mxu0
  %v3521 = vrot.slane %v2998, 1
  %v3522 = vrot.slane %v2998, 2
  %v3523 = vrot.slane %v3002, 1
  %v3524 = vrot.slane %v3002, 2
  %v3525 = vrot.slane %v3006, 1
  %v3526 = vrot.slane %v3006, 2
  %v3527 = vrot.slane %v3010, 1
  %v3528 = vrot.slane %v3010, 2
  %v3529 = vrot.slane %v3014, 1
  %v3530 = vrot.slane %v3014, 2
  %v3531 = vrot.slane %v3018, 1
  %v3532 = vrot.slane %v3018, 2
  %v3533 = vrot.slane %v3022, 1
  %v3534 = vrot.slane %v3022, 2
  %v3535 = vrot.slane %v3026, 1
  %v3536 = vrot.slane %v3026, 2
  %s3537 = scalar_lea.vmem %s3, 256
  %v3538 = vld [vmem:[%s3537] sm:$0xff]
  %v3539 = vld [vmem:[%s3537 + $0x8] sm:$0xff]
  %v3540 = vld [vmem:[%s3537 + $0x10] sm:$0xff]
  %v3541 = vld [vmem:[%s3537 + $0x18] sm:$0xff]
  %v3542 = vld [vmem:[%s3537 + $0x20] sm:$0xff]
  %v3543 = vld [vmem:[%s3537 + $0x28] sm:$0xff]
  %v3544 = vld [vmem:[%s3537 + $0x30] sm:$0xff]
  %v3545 = vld [vmem:[%s3537 + $0x38] sm:$0xff]
  %v3546 = vld [vmem:[%s3537 + $0x40] sm:$0xff]
  %v3547 = vld [vmem:[%s3537 + $0x48] sm:$0xff]
  %v3548 = vld [vmem:[%s3537 + $0x50] sm:$0xff]
  %v3549 = vld [vmem:[%s3537 + $0x58] sm:$0xff]
  %v3550 = vld [vmem:[%s3537 + $0x60] sm:$0xff]
  %v3551 = vld [vmem:[%s3537 + $0x68] sm:$0xff]
  %v3552 = vld [vmem:[%s3537 + $0x70] sm:$0xff]
  %v3553 = vld [vmem:[%s3537 + $0x78] sm:$0xff]
  %3554 = vst [vmem:[#allocation1] ss:$9 sm:$0xff] %v2996
  %s3555 = scalar_lea.vmem [#allocation1], 1
  %3556 = vst [vmem:[%s3555] ss:$9 sm:$0xff] %v3053
  %s3557 = scalar_lea.vmem [#allocation1], 2
  %3558 = vst [vmem:[%s3557] ss:$9 sm:$0xff] %v3054
  %s3559 = scalar_lea.vmem [#allocation1], 3
  %3560 = vst [vmem:[%s3559] ss:$9 sm:$0xff] %v2997
  %s3561 = scalar_lea.vmem [#allocation1], 4
  %3562 = vst [vmem:[%s3561] ss:$9 sm:$0xff] %v3055
  %s3563 = scalar_lea.vmem [#allocation1], 5
  %3564 = vst [vmem:[%s3563] ss:$9 sm:$0xff] %v3056
  %s3565 = scalar_lea.vmem [#allocation1], 6
  %3566 = vst [vmem:[%s3565] ss:$9 sm:$0xff] %v2998
  %s3567 = scalar_lea.vmem [#allocation1], 7
  %3568 = vst [vmem:[%s3567] ss:$9 sm:$0xff] %v3521
  %v3569 = vld [vmem:[#allocation1] sm:$0xff]
  %3570 = vst [vmem:[#allocation1] ss:$9 sm:$0xff] %v3522
  %3571 = vst [vmem:[%s3555] ss:$9 sm:$0xff] %v3000
  %3572 = vst [vmem:[%s3557] ss:$9 sm:$0xff] %v3059
  %3573 = vst [vmem:[%s3559] ss:$9 sm:$0xff] %v3060
  %3574 = vst [vmem:[%s3561] ss:$9 sm:$0xff] %v3001
  %3575 = vst [vmem:[%s3563] ss:$9 sm:$0xff] %v3061
  %3576 = vst [vmem:[%s3565] ss:$9 sm:$0xff] %v3062
  %3577 = vst [vmem:[%s3567] ss:$9 sm:$0xff] %v3002
  %v3578 = vld [vmem:[#allocation1] sm:$0xff]
  %3579 = vst [vmem:[#allocation1] ss:$9 sm:$0xff] %v3523
  %3580 = vst [vmem:[%s3555] ss:$9 sm:$0xff] %v3524
  %3581 = vst [vmem:[%s3557] ss:$9 sm:$0xff] %v3004
  %3582 = vst [vmem:[%s3559] ss:$9 sm:$0xff] %v3065
  %3583 = vst [vmem:[%s3561] ss:$9 sm:$0xff] %v3066
  %3584 = vst [vmem:[%s3563] ss:$9 sm:$0xff] %v3005
  %3585 = vst [vmem:[%s3565] ss:$9 sm:$0xff] %v3067
  %3586 = vst [vmem:[%s3567] ss:$9 sm:$0xff] %v3068
  %v3587 = vld [vmem:[#allocation1] sm:$0xff]
  %3588 = vst [vmem:[#allocation1] ss:$9 sm:$0xff] %v3006
  %3589 = vst [vmem:[%s3555] ss:$9 sm:$0xff] %v3525
  %3590 = vst [vmem:[%s3557] ss:$9 sm:$0xff] %v3526
  %3591 = vst [vmem:[%s3559] ss:$9 sm:$0xff] %v3008
  %3592 = vst [vmem:[%s3561] ss:$9 sm:$0xff] %v3071
  %3593 = vst [vmem:[%s3563] ss:$9 sm:$0xff] %v3072
  %3594 = vst [vmem:[%s3565] ss:$9 sm:$0xff] %v3009
  %3595 = vst [vmem:[%s3567] ss:$9 sm:$0xff] %v3073
  %v3596 = vld [vmem:[#allocation1] sm:$0xff]
  %3597 = vst [vmem:[#allocation1] ss:$9 sm:$0xff] %v3074
  %3598 = vst [vmem:[%s3555] ss:$9 sm:$0xff] %v3010
  %3599 = vst [vmem:[%s3557] ss:$9 sm:$0xff] %v3527
  %3600 = vst [vmem:[%s3559] ss:$9 sm:$0xff] %v3528
  %3601 = vst [vmem:[%s3561] ss:$9 sm:$0xff] %v3012
  %3602 = vst [vmem:[%s3563] ss:$9 sm:$0xff] %v3077
  %3603 = vst [vmem:[%s3565] ss:$9 sm:$0xff] %v3078
  %3604 = vst [vmem:[%s3567] ss:$9 sm:$0xff] %v3013
  %v3605 = vld [vmem:[#allocation1] sm:$0xff]
  %3606 = vst [vmem:[#allocation1] ss:$9 sm:$0xff] %v3079
  %3607 = vst [vmem:[%s3555] ss:$9 sm:$0xff] %v3080
  %3608 = vst [vmem:[%s3557] ss:$9 sm:$0xff] %v3014
  %3609 = vst [vmem:[%s3559] ss:$9 sm:$0xff] %v3529
  %3610 = vst [vmem:[%s3561] ss:$9 sm:$0xff] %v3530
  %3611 = vst [vmem:[%s3563] ss:$9 sm:$0xff] %v3016
  %3612 = vst [vmem:[%s3565] ss:$9 sm:$0xff] %v3083
  %3613 = vst [vmem:[%s3567] ss:$9 sm:$0xff] %v3084
  %v3614 = vld [vmem:[#allocation1] sm:$0xff]
  %3615 = vst [vmem:[#allocation1] ss:$9 sm:$0xff] %v3017
  %3616 = vst [vmem:[%s3555] ss:$9 sm:$0xff] %v3085
  %3617 = vst [vmem:[%s3557] ss:$9 sm:$0xff] %v3086
  %3618 = vst [vmem:[%s3559] ss:$9 sm:$0xff] %v3018
  %3619 = vst [vmem:[%s3561] ss:$9 sm:$0xff] %v3531
  %3620 = vst [vmem:[%s3563] ss:$9 sm:$0xff] %v3532
  %3621 = vst [vmem:[%s3565] ss:$9 sm:$0xff] %v3020
  %3622 = vst [vmem:[%s3567] ss:$9 sm:$0xff] %v3089
  %v3623 = vld [vmem:[#allocation1] sm:$0xff]
  %3624 = vst [vmem:[#allocation1] ss:$9 sm:$0xff] %v3090
  %3625 = vst [vmem:[%s3555] ss:$9 sm:$0xff] %v3021
  %3626 = vst [vmem:[%s3557] ss:$9 sm:$0xff] %v3091
  %3627 = vst [vmem:[%s3559] ss:$9 sm:$0xff] %v3092
  %3628 = vst [vmem:[%s3561] ss:$9 sm:$0xff] %v3022
  %3629 = vst [vmem:[%s3563] ss:$9 sm:$0xff] %v3533
  %3630 = vst [vmem:[%s3565] ss:$9 sm:$0xff] %v3534
  %3631 = vst [vmem:[%s3567] ss:$9 sm:$0xff] %v3024
  %v3632 = vld [vmem:[#allocation1] sm:$0xff]
  %3633 = vst [vmem:[#allocation1] ss:$9 sm:$0xff] %v3095
  %3634 = vst [vmem:[%s3555] ss:$9 sm:$0xff] %v3096
  %3635 = vst [vmem:[%s3557] ss:$9 sm:$0xff] %v3025
  %3636 = vst [vmem:[%s3559] ss:$9 sm:$0xff] %v3097
  %3637 = vst [vmem:[%s3561] ss:$9 sm:$0xff] %v3098
  %3638 = vst [vmem:[%s3563] ss:$9 sm:$0xff] %v3026
  %3639 = vst [vmem:[%s3565] ss:$9 sm:$0xff] %v3535
  %3640 = vst [vmem:[%s3567] ss:$9 sm:$0xff] %v3536
  %v3641 = vld [vmem:[#allocation1] sm:$0xff]
  %3651 = vmatpush.msra.mxu0 %v3553
  %3652 = vmatpush.msra.mxu0 %v3552
  %3653 = vmatpush.msra.mxu0 %v3551
  %3654 = vmatpush.msra.mxu0 %v3550
  %3655 = vmatpush.msra.mxu0 %v3549
  %3656 = vmatpush.msra.mxu0 %v3548
  %3657 = vmatpush.msra.mxu0 %v3547
  %3658 = vmatpush.msra.mxu0 %v3546
  %3659 = vmatpush.msra.mxu0 %v3545
  %3660 = vmatpush.msra.mxu0 %v3544
  %3661 = vmatpush.msra.mxu0 %v3543
  %3662 = vmatpush.msra.mxu0 %v3542
  %3663 = vmatpush.msra.mxu0 %v3541
  %3664 = vmatpush.msra.mxu0 %v3540
  %3665 = vmatpush.msra.mxu0 %v3539
  %3666 = vmatpush.msra.mxu0 %v3538
  %3667 = vmatmul.f32.gmra.mxu0 %v3569
  %v3668 = vpop.f32.mrf.mxu0
  %v3669 = vadd.f32 0.0, %v3668
  %3670 = vmatmul.f32.gmra.mxu0 %v3578
  %v3671 = vpop.f32.mrf.mxu0
  %v3672 = vadd.f32 0.0, %v3671
  %3673 = vmatmul.f32.gmra.mxu0 %v3587
  %v3674 = vpop.f32.mrf.mxu0
  %v3675 = vadd.f32 0.0, %v3674
  %3676 = vmatmul.f32.gmra.mxu0 %v3596
  %v3677 = vpop.f32.mrf.mxu0
  %v3678 = vadd.f32 0.0, %v3677
  %3679 = vmatmul.f32.gmra.mxu0 %v3605
  %v3680 = vpop.f32.mrf.mxu0
  %v3681 = vadd.f32 0.0, %v3680
  %3682 = vmatmul.f32.gmra.mxu0 %v3614
  %v3683 = vpop.f32.mrf.mxu0
  %v3684 = vadd.f32 0.0, %v3683
  %3685 = vmatmul.f32.gmra.mxu0 %v3623
  %v3686 = vpop.f32.mrf.mxu0
  %v3687 = vadd.f32 0.0, %v3686
  %3688 = vmatmul.f32.gmra.mxu0 %v3632
  %v3689 = vpop.f32.mrf.mxu0
  %v3690 = vadd.f32 0.0, %v3689
  %3691 = vmatmul.f32.gmra.mxu0 %v3641
  %v3692 = vpop.f32.mrf.mxu0
  %v3693 = vadd.f32 0.0, %v3692
  %3694 = vdwg.mxu0
  %v3695 = vadd.f32 %v3487, %v3669
  %v3696 = vadd.f32 %v3490, %v3672
  %v3697 = vadd.f32 %v3493, %v3675
  %v3698 = vadd.f32 %v3496, %v3678
  %v3699 = vadd.f32 %v3499, %v3681
  %v3700 = vadd.f32 %v3502, %v3684
  %v3701 = vadd.f32 %v3505, %v3687
  %v3702 = vadd.f32 %v3508, %v3690
  %v3703 = vadd.f32 %v3511, %v3693
  %3704 = vst [vmem:[#allocation1] sm:$0xff] %v2996
  %s3705 = scalar_lea.vmem [#allocation1], 1
  %v3706 = vld [vmem:[%s3705] ss:$9 sm:$0xff]
  %s3707 = scalar_lea.vmem [#allocation1], 2
  %v3708 = vld [vmem:[%s3707] ss:$9 sm:$0xff]
  %s3709 = scalar_lea.vmem [#allocation1], 3
  %v3710 = vld [vmem:[%s3709] ss:$9 sm:$0xff]
  %3711 = vst [vmem:[#allocation1] sm:$0xff] %v2997
  %v3712 = vld [vmem:[%s3705] ss:$9 sm:$0xff]
  %v3713 = vld [vmem:[%s3707] ss:$9 sm:$0xff]
  %v3714 = vld [vmem:[%s3709] ss:$9 sm:$0xff]
  %3715 = vst [vmem:[#allocation1] sm:$0xff] %v2998
  %v3716 = vld [vmem:[%s3705] ss:$9 sm:$0xff]
  %v3717 = vld [vmem:[%s3707] ss:$9 sm:$0xff]
  %v3718 = vld [vmem:[%s3709] ss:$9 sm:$0xff]
  %3719 = vst [vmem:[#allocation1] sm:$0xff] %v3000
  %v3720 = vld [vmem:[%s3705] ss:$9 sm:$0xff]
  %v3721 = vld [vmem:[%s3707] ss:$9 sm:$0xff]
  %v3722 = vld [vmem:[%s3709] ss:$9 sm:$0xff]
  %3723 = vst [vmem:[#allocation1] sm:$0xff] %v3001
  %v3724 = vld [vmem:[%s3705] ss:$9 sm:$0xff]
  %v3725 = vld [vmem:[%s3707] ss:$9 sm:$0xff]
  %v3726 = vld [vmem:[%s3709] ss:$9 sm:$0xff]
  %3727 = vst [vmem:[#allocation1] sm:$0xff] %v3002
  %v3728 = vld [vmem:[%s3705] ss:$9 sm:$0xff]
  %v3729 = vld [vmem:[%s3707] ss:$9 sm:$0xff]
  %v3730 = vld [vmem:[%s3709] ss:$9 sm:$0xff]
  %3731 = vst [vmem:[#allocation1] sm:$0xff] %v3004
  %v3732 = vld [vmem:[%s3705] ss:$9 sm:$0xff]
  %v3733 = vld [vmem:[%s3707] ss:$9 sm:$0xff]
  %v3734 = vld [vmem:[%s3709] ss:$9 sm:$0xff]
  %3735 = vst [vmem:[#allocation1] sm:$0xff] %v3005
  %v3736 = vld [vmem:[%s3705] ss:$9 sm:$0xff]
  %v3737 = vld [vmem:[%s3707] ss:$9 sm:$0xff]
  %v3738 = vld [vmem:[%s3709] ss:$9 sm:$0xff]
  %3739 = vst [vmem:[#allocation1] sm:$0xff] %v3006
  %v3740 = vld [vmem:[%s3705] ss:$9 sm:$0xff]
  %v3741 = vld [vmem:[%s3707] ss:$9 sm:$0xff]
  %v3742 = vld [vmem:[%s3709] ss:$9 sm:$0xff]
  %3743 = vst [vmem:[#allocation1] sm:$0xff] %v3008
  %v3744 = vld [vmem:[%s3705] ss:$9 sm:$0xff]
  %v3745 = vld [vmem:[%s3707] ss:$9 sm:$0xff]
  %v3746 = vld [vmem:[%s3709] ss:$9 sm:$0xff]
  %3747 = vst [vmem:[#allocation1] sm:$0xff] %v3009
  %v3748 = vld [vmem:[%s3705] ss:$9 sm:$0xff]
  %v3749 = vld [vmem:[%s3707] ss:$9 sm:$0xff]
  %v3750 = vld [vmem:[%s3709] ss:$9 sm:$0xff]
  %3751 = vst [vmem:[#allocation1] sm:$0xff] %v3010
  %v3752 = vld [vmem:[%s3705] ss:$9 sm:$0xff]
  %v3753 = vld [vmem:[%s3707] ss:$9 sm:$0xff]
  %v3754 = vld [vmem:[%s3709] ss:$9 sm:$0xff]
  %3755 = vst [vmem:[#allocation1] sm:$0xff] %v3012
  %v3756 = vld [vmem:[%s3705] ss:$9 sm:$0xff]
  %v3757 = vld [vmem:[%s3707] ss:$9 sm:$0xff]
  %v3758 = vld [vmem:[%s3709] ss:$9 sm:$0xff]
  %3759 = vst [vmem:[#allocation1] sm:$0xff] %v3013
  %v3760 = vld [vmem:[%s3705] ss:$9 sm:$0xff]
  %v3761 = vld [vmem:[%s3707] ss:$9 sm:$0xff]
  %v3762 = vld [vmem:[%s3709] ss:$9 sm:$0xff]
  %3763 = vst [vmem:[#allocation1] sm:$0xff] %v3014
  %v3764 = vld [vmem:[%s3705] ss:$9 sm:$0xff]
  %v3765 = vld [vmem:[%s3707] ss:$9 sm:$0xff]
  %v3766 = vld [vmem:[%s3709] ss:$9 sm:$0xff]
  %3767 = vst [vmem:[#allocation1] sm:$0xff] %v3016
  %v3768 = vld [vmem:[%s3705] ss:$9 sm:$0xff]
  %v3769 = vld [vmem:[%s3707] ss:$9 sm:$0xff]
  %v3770 = vld [vmem:[%s3709] ss:$9 sm:$0xff]
  %3771 = vst [vmem:[#allocation1] sm:$0xff] %v3017
  %v3772 = vld [vmem:[%s3705] ss:$9 sm:$0xff]
  %v3773 = vld [vmem:[%s3707] ss:$9 sm:$0xff]
  %v3774 = vld [vmem:[%s3709] ss:$9 sm:$0xff]
  %3775 = vst [vmem:[#allocation1] sm:$0xff] %v3018
  %v3776 = vld [vmem:[%s3705] ss:$9 sm:$0xff]
  %v3777 = vld [vmem:[%s3707] ss:$9 sm:$0xff]
  %v3778 = vld [vmem:[%s3709] ss:$9 sm:$0xff]
  %3779 = vst [vmem:[#allocation1] sm:$0xff] %v3020
  %v3780 = vld [vmem:[%s3705] ss:$9 sm:$0xff]
  %v3781 = vld [vmem:[%s3707] ss:$9 sm:$0xff]
  %v3782 = vld [vmem:[%s3709] ss:$9 sm:$0xff]
  %3783 = vst [vmem:[#allocation1] sm:$0xff] %v3021
  %v3784 = vld [vmem:[%s3705] ss:$9 sm:$0xff]
  %v3785 = vld [vmem:[%s3707] ss:$9 sm:$0xff]
  %v3786 = vld [vmem:[%s3709] ss:$9 sm:$0xff]
  %3787 = vst [vmem:[#allocation1] sm:$0xff] %v3022
  %v3788 = vld [vmem:[%s3705] ss:$9 sm:$0xff]
  %v3789 = vld [vmem:[%s3707] ss:$9 sm:$0xff]
  %v3790 = vld [vmem:[%s3709] ss:$9 sm:$0xff]
  %3791 = vst [vmem:[#allocation1] sm:$0xff] %v3024
  %v3792 = vld [vmem:[%s3705] ss:$9 sm:$0xff]
  %v3793 = vld [vmem:[%s3707] ss:$9 sm:$0xff]
  %v3794 = vld [vmem:[%s3709] ss:$9 sm:$0xff]
  %3795 = vst [vmem:[#allocation1] sm:$0xff] %v3025
  %v3796 = vld [vmem:[%s3705] ss:$9 sm:$0xff]
  %v3797 = vld [vmem:[%s3707] ss:$9 sm:$0xff]
  %v3798 = vld [vmem:[%s3709] ss:$9 sm:$0xff]
  %3799 = vst [vmem:[#allocation1] sm:$0xff] %v3026
  %v3800 = vld [vmem:[%s3705] ss:$9 sm:$0xff]
  %v3801 = vld [vmem:[%s3707] ss:$9 sm:$0xff]
  %v3802 = vld [vmem:[%s3709] ss:$9 sm:$0xff]
  %s3803 = scalar_lea.vmem %s3, 384
  %v3804 = vld [vmem:[%s3803] sm:$0xff]
  %v3805 = vld [vmem:[%s3803 + $0x8] sm:$0xff]
  %v3806 = vld [vmem:[%s3803 + $0x10] sm:$0xff]
  %v3807 = vld [vmem:[%s3803 + $0x18] sm:$0xff]
  %v3808 = vld [vmem:[%s3803 + $0x20] sm:$0xff]
  %v3809 = vld [vmem:[%s3803 + $0x28] sm:$0xff]
  %v3810 = vld [vmem:[%s3803 + $0x30] sm:$0xff]
  %v3811 = vld [vmem:[%s3803 + $0x38] sm:$0xff]
  %v3812 = vld [vmem:[%s3803 + $0x40] sm:$0xff]
  %v3813 = vld [vmem:[%s3803 + $0x48] sm:$0xff]
  %v3814 = vld [vmem:[%s3803 + $0x50] sm:$0xff]
  %v3815 = vld [vmem:[%s3803 + $0x58] sm:$0xff]
  %v3816 = vld [vmem:[%s3803 + $0x60] sm:$0xff]
  %v3817 = vld [vmem:[%s3803 + $0x68] sm:$0xff]
  %v3818 = vld [vmem:[%s3803 + $0x70] sm:$0xff]
  %v3819 = vld [vmem:[%s3803 + $0x78] sm:$0xff]
  %3820 = vst [vmem:[#allocation1] ss:$9 sm:$0xff] %v3706
  %s3821 = scalar_lea.vmem [#allocation1], 1
  %3822 = vst [vmem:[%s3821] ss:$9 sm:$0xff] %v3708
  %s3823 = scalar_lea.vmem [#allocation1], 2
  %3824 = vst [vmem:[%s3823] ss:$9 sm:$0xff] %v3710
  %s3825 = scalar_lea.vmem [#allocation1], 3
  %3826 = vst [vmem:[%s3825] ss:$9 sm:$0xff] %v3712
  %s3827 = scalar_lea.vmem [#allocation1], 4
  %3828 = vst [vmem:[%s3827] ss:$9 sm:$0xff] %v3713
  %s3829 = scalar_lea.vmem [#allocation1], 5
  %3830 = vst [vmem:[%s3829] ss:$9 sm:$0xff] %v3714
  %s3831 = scalar_lea.vmem [#allocation1], 6
  %3832 = vst [vmem:[%s3831] ss:$9 sm:$0xff] %v3716
  %s3833 = scalar_lea.vmem [#allocation1], 7
  %3834 = vst [vmem:[%s3833] ss:$9 sm:$0xff] %v3717
  %v3835 = vld [vmem:[#allocation1] sm:$0xff]
  %3836 = vst [vmem:[#allocation1] ss:$9 sm:$0xff] %v3718
  %3837 = vst [vmem:[%s3821] ss:$9 sm:$0xff] %v3720
  %3838 = vst [vmem:[%s3823] ss:$9 sm:$0xff] %v3721
  %3839 = vst [vmem:[%s3825] ss:$9 sm:$0xff] %v3722
  %3840 = vst [vmem:[%s3827] ss:$9 sm:$0xff] %v3724
  %3841 = vst [vmem:[%s3829] ss:$9 sm:$0xff] %v3725
  %3842 = vst [vmem:[%s3831] ss:$9 sm:$0xff] %v3726
  %3843 = vst [vmem:[%s3833] ss:$9 sm:$0xff] %v3728
  %v3844 = vld [vmem:[#allocation1] sm:$0xff]
  %3845 = vst [vmem:[#allocation1] ss:$9 sm:$0xff] %v3729
  %3846 = vst [vmem:[%s3821] ss:$9 sm:$0xff] %v3730
  %3847 = vst [vmem:[%s3823] ss:$9 sm:$0xff] %v3732
  %3848 = vst [vmem:[%s3825] ss:$9 sm:$0xff] %v3733
  %3849 = vst [vmem:[%s3827] ss:$9 sm:$0xff] %v3734
  %3850 = vst [vmem:[%s3829] ss:$9 sm:$0xff] %v3736
  %3851 = vst [vmem:[%s3831] ss:$9 sm:$0xff] %v3737
  %3852 = vst [vmem:[%s3833] ss:$9 sm:$0xff] %v3738
  %v3853 = vld [vmem:[#allocation1] sm:$0xff]
  %3854 = vst [vmem:[#allocation1] ss:$9 sm:$0xff] %v3740
  %3855 = vst [vmem:[%s3821] ss:$9 sm:$0xff] %v3741
  %3856 = vst [vmem:[%s3823] ss:$9 sm:$0xff] %v3742
  %3857 = vst [vmem:[%s3825] ss:$9 sm:$0xff] %v3744
  %3858 = vst [vmem:[%s3827] ss:$9 sm:$0xff] %v3745
  %3859 = vst [vmem:[%s3829] ss:$9 sm:$0xff] %v3746
  %3860 = vst [vmem:[%s3831] ss:$9 sm:$0xff] %v3748
  %3861 = vst [vmem:[%s3833] ss:$9 sm:$0xff] %v3749
  %v3862 = vld [vmem:[#allocation1] sm:$0xff]
  %3863 = vst [vmem:[#allocation1] ss:$9 sm:$0xff] %v3750
  %3864 = vst [vmem:[%s3821] ss:$9 sm:$0xff] %v3752
  %3865 = vst [vmem:[%s3823] ss:$9 sm:$0xff] %v3753
  %3866 = vst [vmem:[%s3825] ss:$9 sm:$0xff] %v3754
  %3867 = vst [vmem:[%s3827] ss:$9 sm:$0xff] %v3756
  %3868 = vst [vmem:[%s3829] ss:$9 sm:$0xff] %v3757
  %3869 = vst [vmem:[%s3831] ss:$9 sm:$0xff] %v3758
  %3870 = vst [vmem:[%s3833] ss:$9 sm:$0xff] %v3760
  %v3871 = vld [vmem:[#allocation1] sm:$0xff]
  %3872 = vst [vmem:[#allocation1] ss:$9 sm:$0xff] %v3761
  %3873 = vst [vmem:[%s3821] ss:$9 sm:$0xff] %v3762
  %3874 = vst [vmem:[%s3823] ss:$9 sm:$0xff] %v3764
  %3875 = vst [vmem:[%s3825] ss:$9 sm:$0xff] %v3765
  %3876 = vst [vmem:[%s3827] ss:$9 sm:$0xff] %v3766
  %3877 = vst [vmem:[%s3829] ss:$9 sm:$0xff] %v3768
  %3878 = vst [vmem:[%s3831] ss:$9 sm:$0xff] %v3769
  %3879 = vst [vmem:[%s3833] ss:$9 sm:$0xff] %v3770
  %v3880 = vld [vmem:[#allocation1] sm:$0xff]
  %3881 = vst [vmem:[#allocation1] ss:$9 sm:$0xff] %v3772
  %3882 = vst [vmem:[%s3821] ss:$9 sm:$0xff] %v3773
  %3883 = vst [vmem:[%s3823] ss:$9 sm:$0xff] %v3774
  %3884 = vst [vmem:[%s3825] ss:$9 sm:$0xff] %v3776
  %3885 = vst [vmem:[%s3827] ss:$9 sm:$0xff] %v3777
  %3886 = vst [vmem:[%s3829] ss:$9 sm:$0xff] %v3778
  %3887 = vst [vmem:[%s3831] ss:$9 sm:$0xff] %v3780
  %3888 = vst [vmem:[%s3833] ss:$9 sm:$0xff] %v3781
  %v3889 = vld [vmem:[#allocation1] sm:$0xff]
  %3890 = vst [vmem:[#allocation1] ss:$9 sm:$0xff] %v3782
  %3891 = vst [vmem:[%s3821] ss:$9 sm:$0xff] %v3784
  %3892 = vst [vmem:[%s3823] ss:$9 sm:$0xff] %v3785
  %3893 = vst [vmem:[%s3825] ss:$9 sm:$0xff] %v3786
  %3894 = vst [vmem:[%s3827] ss:$9 sm:$0xff] %v3788
  %3895 = vst [vmem:[%s3829] ss:$9 sm:$0xff] %v3789
  %3896 = vst [vmem:[%s3831] ss:$9 sm:$0xff] %v3790
  %3897 = vst [vmem:[%s3833] ss:$9 sm:$0xff] %v3792
  %v3898 = vld [vmem:[#allocation1] sm:$0xff]
  %3899 = vst [vmem:[#allocation1] ss:$9 sm:$0xff] %v3793
  %3900 = vst [vmem:[%s3821] ss:$9 sm:$0xff] %v3794
  %3901 = vst [vmem:[%s3823] ss:$9 sm:$0xff] %v3796
  %3902 = vst [vmem:[%s3825] ss:$9 sm:$0xff] %v3797
  %3903 = vst [vmem:[%s3827] ss:$9 sm:$0xff] %v3798
  %3904 = vst [vmem:[%s3829] ss:$9 sm:$0xff] %v3800
  %3905 = vst [vmem:[%s3831] ss:$9 sm:$0xff] %v3801
  %3906 = vst [vmem:[%s3833] ss:$9 sm:$0xff] %v3802
  %v3907 = vld [vmem:[#allocation1] sm:$0xff]
  %3917 = vmatpush.msra.mxu0 %v3819
  %3918 = vmatpush.msra.mxu0 %v3818
  %3919 = vmatpush.msra.mxu0 %v3817
  %3920 = vmatpush.msra.mxu0 %v3816
  %3921 = vmatpush.msra.mxu0 %v3815
  %3922 = vmatpush.msra.mxu0 %v3814
  %3923 = vmatpush.msra.mxu0 %v3813
  %3924 = vmatpush.msra.mxu0 %v3812
  %3925 = vmatpush.msra.mxu0 %v3811
  %3926 = vmatpush.msra.mxu0 %v3810
  %3927 = vmatpush.msra.mxu0 %v3809
  %3928 = vmatpush.msra.mxu0 %v3808
  %3929 = vmatpush.msra.mxu0 %v3807
  %3930 = vmatpush.msra.mxu0 %v3806
  %3931 = vmatpush.msra.mxu0 %v3805
  %3932 = vmatpush.msra.mxu0 %v3804
  %3933 = vmatmul.f32.gmra.mxu0 %v3835
  %v3934 = vpop.f32.mrf.mxu0
  %v3935 = vadd.f32 0.0, %v3934
  %3936 = vmatmul.f32.gmra.mxu0 %v3844
  %v3937 = vpop.f32.mrf.mxu0
  %v3938 = vadd.f32 0.0, %v3937
  %3939 = vmatmul.f32.gmra.mxu0 %v3853
  %v3940 = vpop.f32.mrf.mxu0
  %v3941 = vadd.f32 0.0, %v3940
  %3942 = vmatmul.f32.gmra.mxu0 %v3862
  %v3943 = vpop.f32.mrf.mxu0
  %v3944 = vadd.f32 0.0, %v3943
  %3945 = vmatmul.f32.gmra.mxu0 %v3871
  %v3946 = vpop.f32.mrf.mxu0
  %v3947 = vadd.f32 0.0, %v3946
  %3948 = vmatmul.f32.gmra.mxu0 %v3880
  %v3949 = vpop.f32.mrf.mxu0
  %v3950 = vadd.f32 0.0, %v3949
  %3951 = vmatmul.f32.gmra.mxu0 %v3889
  %v3952 = vpop.f32.mrf.mxu0
  %v3953 = vadd.f32 0.0, %v3952
  %3954 = vmatmul.f32.gmra.mxu0 %v3898
  %v3955 = vpop.f32.mrf.mxu0
  %v3956 = vadd.f32 0.0, %v3955
  %3957 = vmatmul.f32.gmra.mxu0 %v3907
  %v3958 = vpop.f32.mrf.mxu0
  %v3959 = vadd.f32 0.0, %v3958
  %3960 = vdwg.mxu0
  %v3961 = vadd.f32 %v3695, %v3935
  %v3962 = vadd.f32 %v3696, %v3938
  %v3963 = vadd.f32 %v3697, %v3941
  %v3964 = vadd.f32 %v3698, %v3944
  %v3965 = vadd.f32 %v3699, %v3947
  %v3966 = vadd.f32 %v3700, %v3950
  %v3967 = vadd.f32 %v3701, %v3953
  %v3968 = vadd.f32 %v3702, %v3956
  %v3969 = vadd.f32 %v3703, %v3959
  %v3970 = vld [vmem:[%s4] sm:$0x1]
  %v3972 = vperm.slane %v3970, 0
  %v3974 = vadd.f32 %v3961, %v3972
  %v3975 = vadd.f32 %v3962, %v3972
  %v3976 = vadd.f32 %v3963, %v3972
  %v3977 = vadd.f32 %v3964, %v3972
  %v3978 = vadd.f32 %v3965, %v3972
  %v3979 = vadd.f32 %v3966, %v3972
  %v3980 = vadd.f32 %v3967, %v3972
  %v3981 = vadd.f32 %v3968, %v3972
  %v3982 = vadd.f32 %v3969, %v3972
  %v3983 = vmax.f32 %v3974, 0.0
  %v3984 = vmax.f32 %v3975, 0.0
  %v3985 = vmax.f32 %v3976, 0.0
  %v3986 = vmax.f32 %v3977, 0.0
  %v3987 = vmax.f32 %v3978, 0.0
  %v3988 = vmax.f32 %v3979, 0.0
  %v3989 = vmax.f32 %v3980, 0.0
  %v3990 = vmax.f32 %v3981, 0.0
  %v3991 = vmax.f32 %v3982, 0.0
  %v4001 = vrot.slane %v3983, 1
  %v4002 = vrot.slane %v3983, 2
  %v4003 = vrot.slane %v3983, 3
  %v4004 = vrot.slane %v3983, 4
  %v4005 = vrot.slane %v3983, 5
  %v4006 = vrot.slane %v3983, 6
  %v4007 = vrot.slane %v3983, 7
  %v4008 = vrot.slane %v3984, 1
  %v4009 = vrot.slane %v3984, 2
  %v4010 = vrot.slane %v3984, 3
  %v4011 = vrot.slane %v3984, 4
  %v4012 = vrot.slane %v3984, 5
  %v4013 = vrot.slane %v3984, 6
  %v4014 = vrot.slane %v3984, 7
  %v4015 = vrot.slane %v3985, 1
  %v4016 = vrot.slane %v3985, 2
  %v4017 = vrot.slane %v3985, 3
  %v4018 = vrot.slane %v3985, 4
  %v4019 = vrot.slane %v3985, 5
  %v4020 = vrot.slane %v3985, 6
  %v4021 = vrot.slane %v3985, 7
  %v4022 = vrot.slane %v3986, 1
  %v4023 = vrot.slane %v3986, 2
  %v4024 = vrot.slane %v3986, 3
  %v4025 = vrot.slane %v3986, 4
  %v4026 = vrot.slane %v3986, 5
  %v4027 = vrot.slane %v3986, 6
  %v4028 = vrot.slane %v3986, 7
  %v4029 = vrot.slane %v3987, 1
  %v4030 = vrot.slane %v3987, 2
  %v4031 = vrot.slane %v3987, 3
  %v4032 = vrot.slane %v3987, 4
  %v4033 = vrot.slane %v3987, 5
  %v4034 = vrot.slane %v3987, 6
  %v4035 = vrot.slane %v3987, 7
  %v4036 = vrot.slane %v3988, 1
  %v4037 = vrot.slane %v3988, 2
  %v4038 = vrot.slane %v3988, 3
  %v4039 = vrot.slane %v3988, 4
  %v4040 = vrot.slane %v3988, 5
  %v4041 = vrot.slane %v3988, 6
  %v4042 = vrot.slane %v3988, 7
  %v4043 = vrot.slane %v3989, 1
  %v4044 = vrot.slane %v3989, 2
  %v4045 = vrot.slane %v3989, 3
  %v4046 = vrot.slane %v3989, 4
  %v4047 = vrot.slane %v3989, 5
  %v4048 = vrot.slane %v3989, 6
  %v4049 = vrot.slane %v3989, 7
  %v4050 = vrot.slane %v3990, 1
  %v4051 = vrot.slane %v3990, 2
  %v4052 = vrot.slane %v3990, 3
  %v4053 = vrot.slane %v3990, 4
  %v4054 = vrot.slane %v3990, 5
  %v4055 = vrot.slane %v3990, 6
  %v4056 = vrot.slane %v3990, 7
  %v4057 = vrot.slane %v3991, 1
  %v4058 = vrot.slane %v3991, 2
  %v4059 = vrot.slane %v3991, 3
  %v4060 = vrot.slane %v3991, 4
  %v4061 = vrot.slane %v3991, 5
  %v4062 = vrot.slane %v3991, 6
  %v4063 = vrot.slane %v3991, 7
  %4064 = vst [vmem:[#allocation1] ss:$9 sm:$0xff] %v3983
  %s4065 = scalar_lea.vmem [#allocation1], 1
  %4066 = vst [vmem:[%s4065] ss:$9 sm:$0xff] %v4008
  %s4067 = scalar_lea.vmem [#allocation1], 2
  %4068 = vst [vmem:[%s4067] ss:$9 sm:$0xff] %v4016
  %s4069 = scalar_lea.vmem [#allocation1], 3
  %4070 = vst [vmem:[%s4069] ss:$9 sm:$0xff] %v4024
  %s4071 = scalar_lea.vmem [#allocation1], 4
  %4072 = vst [vmem:[%s4071] ss:$9 sm:$0xff] %v4032
  %s4073 = scalar_lea.vmem [#allocation1], 5
  %4074 = vst [vmem:[%s4073] ss:$9 sm:$0xff] %v4040
  %s4075 = scalar_lea.vmem [#allocation1], 6
  %4076 = vst [vmem:[%s4075] ss:$9 sm:$0xff] %v4048
  %s4077 = scalar_lea.vmem [#allocation1], 7
  %4078 = vst [vmem:[%s4077] ss:$9 sm:$0xff] %v4056
  %v4079 = vld [vmem:[#allocation1] sm:$0xff]
  %4081 = vst [vmem:[#allocation1] ss:$9 sm:$0xff] %v4001
  %s4082 = scalar_lea.vmem [#allocation1], 1
  %4083 = vst [vmem:[%s4082] ss:$9 sm:$0xff] %v4009
  %s4084 = scalar_lea.vmem [#allocation1], 2
  %4085 = vst [vmem:[%s4084] ss:$9 sm:$0xff] %v4017
  %s4086 = scalar_lea.vmem [#allocation1], 3
  %4087 = vst [vmem:[%s4086] ss:$9 sm:$0xff] %v4025
  %s4088 = scalar_lea.vmem [#allocation1], 4
  %4089 = vst [vmem:[%s4088] ss:$9 sm:$0xff] %v4033
  %s4090 = scalar_lea.vmem [#allocation1], 5
  %4091 = vst [vmem:[%s4090] ss:$9 sm:$0xff] %v4041
  %s4092 = scalar_lea.vmem [#allocation1], 6
  %4093 = vst [vmem:[%s4092] ss:$9 sm:$0xff] %v4049
  %s4094 = scalar_lea.vmem [#allocation1], 7
  %4095 = vst [vmem:[%s4094] ss:$9 sm:$0xff] %v3991
  %v4096 = vld [vmem:[#allocation1] sm:$0xff]
  %4097 = vrot.lane.b32.xlu0 %v4096, 64
  %v4098 = vpop.permute.xlu0 %4097
  %4100 = vst [vmem:[#allocation1] ss:$9 sm:$0xff] %v4002
  %s4101 = scalar_lea.vmem [#allocation1], 1
  %4102 = vst [vmem:[%s4101] ss:$9 sm:$0xff] %v4010
  %s4103 = scalar_lea.vmem [#allocation1], 2
  %4104 = vst [vmem:[%s4103] ss:$9 sm:$0xff] %v4018
  %s4105 = scalar_lea.vmem [#allocation1], 3
  %4106 = vst [vmem:[%s4105] ss:$9 sm:$0xff] %v4026
  %s4107 = scalar_lea.vmem [#allocation1], 4
  %4108 = vst [vmem:[%s4107] ss:$9 sm:$0xff] %v4034
  %s4109 = scalar_lea.vmem [#allocation1], 5
  %4110 = vst [vmem:[%s4109] ss:$9 sm:$0xff] %v4042
  %s4111 = scalar_lea.vmem [#allocation1], 6
  %4112 = vst [vmem:[%s4111] ss:$9 sm:$0xff] %v3990
  %s4113 = scalar_lea.vmem [#allocation1], 7
  %4114 = vst [vmem:[%s4113] ss:$9 sm:$0xff] %v4057
  %v4115 = vld [vmem:[#allocation1] sm:$0xff]
  %4117 = vst [vmem:[#allocation1] ss:$9 sm:$0xff] %v4003
  %s4118 = scalar_lea.vmem [#allocation1], 1
  %4119 = vst [vmem:[%s4118] ss:$9 sm:$0xff] %v4011
  %s4120 = scalar_lea.vmem [#allocation1], 2
  %4121 = vst [vmem:[%s4120] ss:$9 sm:$0xff] %v4019
  %s4122 = scalar_lea.vmem [#allocation1], 3
  %4123 = vst [vmem:[%s4122] ss:$9 sm:$0xff] %v4027
  %s4124 = scalar_lea.vmem [#allocation1], 4
  %4125 = vst [vmem:[%s4124] ss:$9 sm:$0xff] %v4035
  %s4126 = scalar_lea.vmem [#allocation1], 5
  %4127 = vst [vmem:[%s4126] ss:$9 sm:$0xff] %v3989
  %s4128 = scalar_lea.vmem [#allocation1], 6
  %4129 = vst [vmem:[%s4128] ss:$9 sm:$0xff] %v4050
  %s4130 = scalar_lea.vmem [#allocation1], 7
  %4131 = vst [vmem:[%s4130] ss:$9 sm:$0xff] %v4058
  %v4132 = vld [vmem:[#allocation1] sm:$0xff]
  %4133 = vrot.lane.b32.xlu0 %v4132, 64
  %v4134 = vpop.permute.xlu0 %4133
  %4136 = vst [vmem:[#allocation1] ss:$9 sm:$0xff] %v4004
  %s4137 = scalar_lea.vmem [#allocation1], 1
  %4138 = vst [vmem:[%s4137] ss:$9 sm:$0xff] %v4012
  %s4139 = scalar_lea.vmem [#allocation1], 2
  %4140 = vst [vmem:[%s4139] ss:$9 sm:$0xff] %v4020
  %s4141 = scalar_lea.vmem [#allocation1], 3
  %4142 = vst [vmem:[%s4141] ss:$9 sm:$0xff] %v4028
  %s4143 = scalar_lea.vmem [#allocation1], 4
  %4144 = vst [vmem:[%s4143] ss:$9 sm:$0xff] %v3988
  %s4145 = scalar_lea.vmem [#allocation1], 5
  %4146 = vst [vmem:[%s4145] ss:$9 sm:$0xff] %v4043
  %s4147 = scalar_lea.vmem [#allocation1], 6
  %4148 = vst [vmem:[%s4147] ss:$9 sm:$0xff] %v4051
  %s4149 = scalar_lea.vmem [#allocation1], 7
  %4150 = vst [vmem:[%s4149] ss:$9 sm:$0xff] %v4059
  %v4151 = vld [vmem:[#allocation1] sm:$0xff]
  %4153 = vst [vmem:[#allocation1] ss:$9 sm:$0xff] %v4005
  %s4154 = scalar_lea.vmem [#allocation1], 1
  %4155 = vst [vmem:[%s4154] ss:$9 sm:$0xff] %v4013
  %s4156 = scalar_lea.vmem [#allocation1], 2
  %4157 = vst [vmem:[%s4156] ss:$9 sm:$0xff] %v4021
  %s4158 = scalar_lea.vmem [#allocation1], 3
  %4159 = vst [vmem:[%s4158] ss:$9 sm:$0xff] %v3987
  %s4160 = scalar_lea.vmem [#allocation1], 4
  %4161 = vst [vmem:[%s4160] ss:$9 sm:$0xff] %v4036
  %s4162 = scalar_lea.vmem [#allocation1], 5
  %4163 = vst [vmem:[%s4162] ss:$9 sm:$0xff] %v4044
  %s4164 = scalar_lea.vmem [#allocation1], 6
  %4165 = vst [vmem:[%s4164] ss:$9 sm:$0xff] %v4052
  %s4166 = scalar_lea.vmem [#allocation1], 7
  %4167 = vst [vmem:[%s4166] ss:$9 sm:$0xff] %v4060
  %v4168 = vld [vmem:[#allocation1] sm:$0xff]
  %4169 = vrot.lane.b32.xlu0 %v4168, 64
  %v4170 = vpop.permute.xlu0 %4169
  %4172 = vst [vmem:[#allocation1] ss:$9 sm:$0xff] %v4006
  %s4173 = scalar_lea.vmem [#allocation1], 1
  %4174 = vst [vmem:[%s4173] ss:$9 sm:$0xff] %v4014
  %s4175 = scalar_lea.vmem [#allocation1], 2
  %4176 = vst [vmem:[%s4175] ss:$9 sm:$0xff] %v3986
  %s4177 = scalar_lea.vmem [#allocation1], 3
  %4178 = vst [vmem:[%s4177] ss:$9 sm:$0xff] %v4029
  %s4179 = scalar_lea.vmem [#allocation1], 4
  %4180 = vst [vmem:[%s4179] ss:$9 sm:$0xff] %v4037
  %s4181 = scalar_lea.vmem [#allocation1], 5
  %4182 = vst [vmem:[%s4181] ss:$9 sm:$0xff] %v4045
  %s4183 = scalar_lea.vmem [#allocation1], 6
  %4184 = vst [vmem:[%s4183] ss:$9 sm:$0xff] %v4053
  %s4185 = scalar_lea.vmem [#allocation1], 7
  %4186 = vst [vmem:[%s4185] ss:$9 sm:$0xff] %v4061
  %v4187 = vld [vmem:[#allocation1] sm:$0xff]
  %4189 = vst [vmem:[#allocation1] ss:$9 sm:$0xff] %v4007
  %s4190 = scalar_lea.vmem [#allocation1], 1
  %4191 = vst [vmem:[%s4190] ss:$9 sm:$0xff] %v3985
  %s4192 = scalar_lea.vmem [#allocation1], 2
  %4193 = vst [vmem:[%s4192] ss:$9 sm:$0xff] %v4022
  %s4194 = scalar_lea.vmem [#allocation1], 3
  %4195 = vst [vmem:[%s4194] ss:$9 sm:$0xff] %v4030
  %s4196 = scalar_lea.vmem [#allocation1], 4
  %4197 = vst [vmem:[%s4196] ss:$9 sm:$0xff] %v4038
  %s4198 = scalar_lea.vmem [#allocation1], 5
  %4199 = vst [vmem:[%s4198] ss:$9 sm:$0xff] %v4046
  %s4200 = scalar_lea.vmem [#allocation1], 6
  %4201 = vst [vmem:[%s4200] ss:$9 sm:$0xff] %v4054
  %s4202 = scalar_lea.vmem [#allocation1], 7
  %4203 = vst [vmem:[%s4202] ss:$9 sm:$0xff] %v4062
  %v4204 = vld [vmem:[#allocation1] sm:$0xff]
  %4205 = vrot.lane.b32.xlu0 %v4204, 64
  %v4206 = vpop.permute.xlu0 %4205
  %4208 = vst [vmem:[#allocation1] ss:$9 sm:$0xff] %v3984
  %s4209 = scalar_lea.vmem [#allocation1], 1
  %4210 = vst [vmem:[%s4209] ss:$9 sm:$0xff] %v4015
  %s4211 = scalar_lea.vmem [#allocation1], 2
  %4212 = vst [vmem:[%s4211] ss:$9 sm:$0xff] %v4023
  %s4213 = scalar_lea.vmem [#allocation1], 3
  %4214 = vst [vmem:[%s4213] ss:$9 sm:$0xff] %v4031
  %s4215 = scalar_lea.vmem [#allocation1], 4
  %4216 = vst [vmem:[%s4215] ss:$9 sm:$0xff] %v4039
  %s4217 = scalar_lea.vmem [#allocation1], 5
  %4218 = vst [vmem:[%s4217] ss:$9 sm:$0xff] %v4047
  %s4219 = scalar_lea.vmem [#allocation1], 6
  %4220 = vst [vmem:[%s4219] ss:$9 sm:$0xff] %v4055
  %s4221 = scalar_lea.vmem [#allocation1], 7
  %4222 = vst [vmem:[%s4221] ss:$9 sm:$0xff] %v4063
  %v4223 = vld [vmem:[#allocation1] sm:$0xff]
  %v4224 = vsel %vm807, %v4079, %v4098
  %v4225 = vsel %vm807, %v4115, %v4134
  %v4226 = vsel %vm807, %v4151, %v4170
  %v4227 = vsel %vm807, %v4187, %v4206
  %v4228 = vld [vmem:[%s5] sm:$0xff]
  %v4229 = vld [vmem:[%s5 + $0x8] sm:$0xff]
  %v4230 = vld [vmem:[%s5 + $0x10] sm:$0xff]
  %v4231 = vld [vmem:[%s5 + $0x18] sm:$0xff]
  %v4232 = vld [vmem:[%s5 + $0x20] sm:$0xff]
  %v4233 = vld [vmem:[%s5 + $0x28] sm:$0xff]
  %v4234 = vld [vmem:[%s5 + $0x30] sm:$0xff]
  %v4235 = vld [vmem:[%s5 + $0x38] sm:$0xff]
  %v4236 = vld [vmem:[%s5 + $0x40] sm:$0xff]
  %v4237 = vld [vmem:[%s5 + $0x48] sm:$0xff]
  %v4238 = vld [vmem:[%s5 + $0x50] sm:$0xff]
  %v4239 = vld [vmem:[%s5 + $0x58] sm:$0xff]
  %v4240 = vld [vmem:[%s5 + $0x60] sm:$0xff]
  %v4241 = vld [vmem:[%s5 + $0x68] sm:$0xff]
  %v4242 = vld [vmem:[%s5 + $0x70] sm:$0xff]
  %v4243 = vld [vmem:[%s5 + $0x78] sm:$0xff]
  %v4244 = vld [vmem:[%s5 + $0x80] sm:$0xff]
  %v4245 = vld [vmem:[%s5 + $0x88] sm:$0xff]
  %v4246 = vld [vmem:[%s5 + $0x90] sm:$0xff]
  %v4247 = vld [vmem:[%s5 + $0x98] sm:$0xff]
  %v4248 = vld [vmem:[%s5 + $0xa0] sm:$0xff]
  %v4249 = vld [vmem:[%s5 + $0xa8] sm:$0xff]
  %v4250 = vld [vmem:[%s5 + $0xb0] sm:$0xff]
  %v4251 = vld [vmem:[%s5 + $0xb8] sm:$0xff]
  %v4252 = vld [vmem:[%s5 + $0xc0] sm:$0xff]
  %v4253 = vld [vmem:[%s5 + $0xc8] sm:$0xff]
  %v4254 = vld [vmem:[%s5 + $0xd0] sm:$0xff]
  %v4255 = vld [vmem:[%s5 + $0xd8] sm:$0xff]
  %v4256 = vld [vmem:[%s5 + $0xe0] sm:$0xff]
  %v4257 = vld [vmem:[%s5 + $0xe8] sm:$0xff]
  %v4258 = vld [vmem:[%s5 + $0xf0] sm:$0xff]
  %v4259 = vld [vmem:[%s5 + $0xf8] sm:$0xff]
  %v4260 = vld [vmem:[%s5 + $0x100] sm:$0xff]
  %v4261 = vld [vmem:[%s5 + $0x108] sm:$0xff]
  %v4262 = vld [vmem:[%s5 + $0x110] sm:$0xff]
  %v4263 = vld [vmem:[%s5 + $0x118] sm:$0xff]
  %v4264 = vld [vmem:[%s5 + $0x120] sm:$0xff]
  %v4265 = vld [vmem:[%s5 + $0x128] sm:$0xff]
  %v4266 = vld [vmem:[%s5 + $0x130] sm:$0xff]
  %v4267 = vld [vmem:[%s5 + $0x138] sm:$0xff]
  %v4268 = vld [vmem:[%s5 + $0x140] sm:$0xff]
  %v4269 = vld [vmem:[%s5 + $0x148] sm:$0xff]
  %v4270 = vld [vmem:[%s5 + $0x150] sm:$0xff]
  %v4271 = vld [vmem:[%s5 + $0x158] sm:$0xff]
  %v4272 = vld [vmem:[%s5 + $0x160] sm:$0xff]
  %v4273 = vld [vmem:[%s5 + $0x168] sm:$0xff]
  %v4274 = vld [vmem:[%s5 + $0x170] sm:$0xff]
  %v4275 = vld [vmem:[%s5 + $0x178] sm:$0xff]
  %v4276 = vld [vmem:[%s5 + $0x180] sm:$0xff]
  %v4277 = vld [vmem:[%s5 + $0x188] sm:$0xff]
  %v4278 = vld [vmem:[%s5 + $0x190] sm:$0xff]
  %v4279 = vld [vmem:[%s5 + $0x198] sm:$0xff]
  %v4280 = vld [vmem:[%s5 + $0x1a0] sm:$0xff]
  %v4281 = vld [vmem:[%s5 + $0x1a8] sm:$0xff]
  %v4282 = vld [vmem:[%s5 + $0x1b0] sm:$0xff]
  %v4283 = vld [vmem:[%s5 + $0x1b8] sm:$0xff]
  %v4284 = vld [vmem:[%s5 + $0x1c0] sm:$0xff]
  %v4285 = vld [vmem:[%s5 + $0x1c8] sm:$0xff]
  %v4286 = vld [vmem:[%s5 + $0x1d0] sm:$0xff]
  %v4287 = vld [vmem:[%s5 + $0x1d8] sm:$0xff]
  %v4288 = vld [vmem:[%s5 + $0x1e0] sm:$0xff]
  %v4289 = vld [vmem:[%s5 + $0x1e8] sm:$0xff]
  %v4290 = vld [vmem:[%s5 + $0x1f0] sm:$0xff]
  %v4291 = vld [vmem:[%s5 + $0x1f8] sm:$0xff]
  %v4292 = vld [vmem:[%s5 + $0x200] sm:$0xff]
  %v4293 = vld [vmem:[%s5 + $0x208] sm:$0xff]
  %v4294 = vld [vmem:[%s5 + $0x210] sm:$0xff]
  %v4295 = vld [vmem:[%s5 + $0x218] sm:$0xff]
  %v4296 = vld [vmem:[%s5 + $0x220] sm:$0xff]
  %v4297 = vld [vmem:[%s5 + $0x228] sm:$0xff]
  %v4298 = vld [vmem:[%s5 + $0x230] sm:$0xff]
  %v4299 = vld [vmem:[%s5 + $0x238] sm:$0xff]
  %v4300 = vld [vmem:[%s6] sm:$0x1]
  %v4302 = vperm.slane %v4300, 0
  %v4304 = vsel %vm807, %v4223, 0
  %4306 = vmatpush.msra.mxu0 %v4243
  %4307 = vmatpush.msra.mxu0 %v4242
  %4308 = vmatpush.msra.mxu0 %v4241
  %4309 = vmatpush.msra.mxu0 %v4240
  %4310 = vmatpush.msra.mxu0 %v4239
  %4311 = vmatpush.msra.mxu0 %v4238
  %4312 = vmatpush.msra.mxu0 %v4237
  %4313 = vmatpush.msra.mxu0 %v4236
  %4314 = vmatpush.msra.mxu0 %v4235
  %4315 = vmatpush.msra.mxu0 %v4234
  %4316 = vmatpush.msra.mxu0 %v4233
  %4317 = vmatpush.msra.mxu0 %v4232
  %4318 = vmatpush.msra.mxu0 %v4231
  %4319 = vmatpush.msra.mxu0 %v4230
  %4320 = vmatpush.msra.mxu0 %v4229
  %4321 = vmatpush.msra.mxu0 %v4228
  %4322 = vmatmul.f32.gmra.mxu0 %v4224
  %v4323 = vpop.f32.mrf.mxu0
  %v4324 = vadd.f32 %v4302, %v4323
  %4325 = vdwg.mxu0
  %4326 = vmatpush.msra.mxu0 %v4259
  %4327 = vmatpush.msra.mxu0 %v4258
  %4328 = vmatpush.msra.mxu0 %v4257
  %4329 = vmatpush.msra.mxu0 %v4256
  %4330 = vmatpush.msra.mxu0 %v4255
  %4331 = vmatpush.msra.mxu0 %v4254
  %4332 = vmatpush.msra.mxu0 %v4253
  %4333 = vmatpush.msra.mxu0 %v4252
  %4334 = vmatpush.msra.mxu0 %v4251
  %4335 = vmatpush.msra.mxu0 %v4250
  %4336 = vmatpush.msra.mxu0 %v4249
  %4337 = vmatpush.msra.mxu0 %v4248
  %4338 = vmatpush.msra.mxu0 %v4247
  %4339 = vmatpush.msra.mxu0 %v4246
  %4340 = vmatpush.msra.mxu0 %v4245
  %4341 = vmatpush.msra.mxu0 %v4244
  %4342 = vmatmul.f32.gmra.mxu0 %v4225
  %v4343 = vpop.f32.mrf.mxu0
  %v4344 = vadd.f32 %v4324, %v4343
  %4345 = vdwg.mxu0
  %4346 = vmatpush.msra.mxu0 %v4275
  %4347 = vmatpush.msra.mxu0 %v4274
  %4348 = vmatpush.msra.mxu0 %v4273
  %4349 = vmatpush.msra.mxu0 %v4272
  %4350 = vmatpush.msra.mxu0 %v4271
  %4351 = vmatpush.msra.mxu0 %v4270
  %4352 = vmatpush.msra.mxu0 %v4269
  %4353 = vmatpush.msra.mxu0 %v4268
  %4354 = vmatpush.msra.mxu0 %v4267
  %4355 = vmatpush.msra.mxu0 %v4266
  %4356 = vmatpush.msra.mxu0 %v4265
  %4357 = vmatpush.msra.mxu0 %v4264
  %4358 = vmatpush.msra.mxu0 %v4263
  %4359 = vmatpush.msra.mxu0 %v4262
  %4360 = vmatpush.msra.mxu0 %v4261
  %4361 = vmatpush.msra.mxu0 %v4260
  %4362 = vmatmul.f32.gmra.mxu0 %v4226
  %v4363 = vpop.f32.mrf.mxu0
  %v4364 = vadd.f32 %v4344, %v4363
  %4365 = vdwg.mxu0
  %4366 = vmatpush.msra.mxu0 %v4291
  %4367 = vmatpush.msra.mxu0 %v4290
  %4368 = vmatpush.msra.mxu0 %v4289
  %4369 = vmatpush.msra.mxu0 %v4288
  %4370 = vmatpush.msra.mxu0 %v4287
  %4371 = vmatpush.msra.mxu0 %v4286
  %4372 = vmatpush.msra.mxu0 %v4285
  %4373 = vmatpush.msra.mxu0 %v4284
  %4374 = vmatpush.msra.mxu0 %v4283
  %4375 = vmatpush.msra.mxu0 %v4282
  %4376 = vmatpush.msra.mxu0 %v4281
  %4377 = vmatpush.msra.mxu0 %v4280
  %4378 = vmatpush.msra.mxu0 %v4279
  %4379 = vmatpush.msra.mxu0 %v4278
  %4380 = vmatpush.msra.mxu0 %v4277
  %4381 = vmatpush.msra.mxu0 %v4276
  %4382 = vmatmul.f32.gmra.mxu0 %v4227
  %v4383 = vpop.f32.mrf.mxu0
  %v4384 = vadd.f32 %v4364, %v4383
  %4385 = vdwg.mxu0
  %4386 = vmatpush.msra.mxu0 0.0
  %4387 = vmatpush.msra.mxu0 0.0
  %4388 = vmatpush.msra.mxu0 0.0
  %4389 = vmatpush.msra.mxu0 0.0
  %4390 = vmatpush.msra.mxu0 0.0
  %4391 = vmatpush.msra.mxu0 0.0
  %4392 = vmatpush.msra.mxu0 0.0
  %4393 = vmatpush.msra.mxu0 0.0
  %4394 = vmatpush.msra.mxu0 %v4299
  %4395 = vmatpush.msra.mxu0 %v4298
  %4396 = vmatpush.msra.mxu0 %v4297
  %4397 = vmatpush.msra.mxu0 %v4296
  %4398 = vmatpush.msra.mxu0 %v4295
  %4399 = vmatpush.msra.mxu0 %v4294
  %4400 = vmatpush.msra.mxu0 %v4293
  %4401 = vmatpush.msra.mxu0 %v4292
  %4402 = vmatmul.f32.gmra.mxu0 %v4304
  %v4403 = vpop.f32.mrf.mxu0
  %v4404 = vadd.f32 %v4384, %v4403
  %4405 = vdwg.mxu0
  %v4406 = vmax.f32 %v4404, 0.0
  %v4407 = vld [vmem:[%s7] sm:$0xff]
  %v4408 = vld [vmem:[%s7 + $0x8] sm:$0xff]
  %v4409 = vld [vmem:[%s7 + $0x10] sm:$0xff]
  %v4410 = vld [vmem:[%s7 + $0x18] sm:$0xff]
  %v4411 = vld [vmem:[%s7 + $0x20] sm:$0xff]
  %v4412 = vld [vmem:[%s7 + $0x28] sm:$0xff]
  %v4413 = vld [vmem:[%s7 + $0x30] sm:$0xff]
  %v4414 = vld [vmem:[%s7 + $0x38] sm:$0xff]
  %v4415 = vld [vmem:[%s7 + $0x40] sm:$0xff]
  %v4416 = vld [vmem:[%s7 + $0x48] sm:$0xff]
  %v4417 = vld [vmem:[%s7 + $0x50] sm:$0xff]
  %v4418 = vld [vmem:[%s7 + $0x58] sm:$0xff]
  %v4419 = vld [vmem:[%s7 + $0x60] sm:$0xff]
  %v4420 = vld [vmem:[%s7 + $0x68] sm:$0xff]
  %v4421 = vld [vmem:[%s7 + $0x70] sm:$0xff]
  %v4422 = vld [vmem:[%s7 + $0x78] sm:$0xff]
  %v4423 = vld [vmem:[%s7 + $0x80] sm:$0xff]
  %v4424 = vld [vmem:[%s7 + $0x88] sm:$0xff]
  %v4425 = vld [vmem:[%s7 + $0x90] sm:$0xff]
  %v4426 = vld [vmem:[%s7 + $0x98] sm:$0xff]
  %v4427 = vld [vmem:[%s7 + $0xa0] sm:$0xff]
  %v4428 = vld [vmem:[%s7 + $0xa8] sm:$0xff]
  %v4429 = vld [vmem:[%s7 + $0xb0] sm:$0xff]
  %v4430 = vld [vmem:[%s7 + $0xb8] sm:$0xff]
  %v4431 = vld [vmem:[%s7 + $0xc0] sm:$0xff]
  %v4432 = vld [vmem:[%s7 + $0xc8] sm:$0xff]
  %v4433 = vld [vmem:[%s7 + $0xd0] sm:$0xff]
  %v4434 = vld [vmem:[%s7 + $0xd8] sm:$0xff]
  %v4435 = vld [vmem:[%s7 + $0xe0] sm:$0xff]
  %v4436 = vld [vmem:[%s7 + $0xe8] sm:$0xff]
  %v4437 = vld [vmem:[%s7 + $0xf0] sm:$0xff]
  %v4438 = vld [vmem:[%s7 + $0xf8] sm:$0xff]
  %v4439 = vld [vmem:[%s8] sm:$0xf]
  %v4441 = vperm.slane %v4439, 0
  %v4442 = vperm.slane %v4439, 1
  %v4443 = vperm.slane %v4439, 2
  %v4444 = vperm.slane %v4439, 3
  %v4450 = vsel %vm807, %v4406, 0
  %4452 = vmatpush.msra.mxu0 0.0
  %4453 = vmatpush.msra.mxu0 0.0
  %4454 = vmatpush.msra.mxu0 0.0
  %4455 = vmatpush.msra.mxu0 0.0
  %4456 = vmatpush.msra.mxu0 0.0
  %4457 = vmatpush.msra.mxu0 0.0
  %4458 = vmatpush.msra.mxu0 0.0
  %4459 = vmatpush.msra.mxu0 0.0
  %4460 = vmatpush.msra.mxu0 %v4435
  %4461 = vmatpush.msra.mxu0 %v4431
  %4462 = vmatpush.msra.mxu0 %v4427
  %4463 = vmatpush.msra.mxu0 %v4423
  %4464 = vmatpush.msra.mxu0 %v4419
  %4465 = vmatpush.msra.mxu0 %v4415
  %4466 = vmatpush.msra.mxu0 %v4411
  %4467 = vmatpush.msra.mxu0 %v4407
  %4468 = vmatmul.f32.gmra.mxu0 %v4450
  %v4469 = vpop.f32.mrf.mxu0
  %v4470 = vadd.f32 %v4441, %v4469
  %4471 = vdwg.mxu0
  %4472 = vmatpush.msra.mxu0 0.0
  %4473 = vmatpush.msra.mxu0 0.0
  %4474 = vmatpush.msra.mxu0 0.0
  %4475 = vmatpush.msra.mxu0 0.0
  %4476 = vmatpush.msra.mxu0 0.0
  %4477 = vmatpush.msra.mxu0 0.0
  %4478 = vmatpush.msra.mxu0 0.0
  %4479 = vmatpush.msra.mxu0 0.0
  %4480 = vmatpush.msra.mxu0 %v4436
  %4481 = vmatpush.msra.mxu0 %v4432
  %4482 = vmatpush.msra.mxu0 %v4428
  %4483 = vmatpush.msra.mxu0 %v4424
  %4484 = vmatpush.msra.mxu0 %v4420
  %4485 = vmatpush.msra.mxu0 %v4416
  %4486 = vmatpush.msra.mxu0 %v4412
  %4487 = vmatpush.msra.mxu0 %v4408
  %4488 = vmatmul.f32.gmra.mxu0 %v4450
  %v4489 = vpop.f32.mrf.mxu0
  %v4490 = vadd.f32 %v4442, %v4489
  %4491 = vdwg.mxu0
  %4492 = vmatpush.msra.mxu0 0.0
  %4493 = vmatpush.msra.mxu0 0.0
  %4494 = vmatpush.msra.mxu0 0.0
  %4495 = vmatpush.msra.mxu0 0.0
  %4496 = vmatpush.msra.mxu0 0.0
  %4497 = vmatpush.msra.mxu0 0.0
  %4498 = vmatpush.msra.mxu0 0.0
  %4499 = vmatpush.msra.mxu0 0.0
  %4500 = vmatpush.msra.mxu0 %v4437
  %4501 = vmatpush.msra.mxu0 %v4433
  %4502 = vmatpush.msra.mxu0 %v4429
  %4503 = vmatpush.msra.mxu0 %v4425
  %4504 = vmatpush.msra.mxu0 %v4421
  %4505 = vmatpush.msra.mxu0 %v4417
  %4506 = vmatpush.msra.mxu0 %v4413
  %4507 = vmatpush.msra.mxu0 %v4409
  %4508 = vmatmul.f32.gmra.mxu0 %v4450
  %v4509 = vpop.f32.mrf.mxu0
  %v4510 = vadd.f32 %v4443, %v4509
  %4511 = vdwg.mxu0
  %4512 = vmatpush.msra.mxu0 0.0
  %4513 = vmatpush.msra.mxu0 0.0
  %4514 = vmatpush.msra.mxu0 0.0
  %4515 = vmatpush.msra.mxu0 0.0
  %4516 = vmatpush.msra.mxu0 0.0
  %4517 = vmatpush.msra.mxu0 0.0
  %4518 = vmatpush.msra.mxu0 0.0
  %4519 = vmatpush.msra.mxu0 0.0
  %4520 = vmatpush.msra.mxu0 %v4438
  %4521 = vmatpush.msra.mxu0 %v4434
  %4522 = vmatpush.msra.mxu0 %v4430
  %4523 = vmatpush.msra.mxu0 %v4426
  %4524 = vmatpush.msra.mxu0 %v4422
  %4525 = vmatpush.msra.mxu0 %v4418
  %4526 = vmatpush.msra.mxu0 %v4414
  %4527 = vmatpush.msra.mxu0 %v4410
  %4528 = vmatmul.f32.gmra.mxu0 %v4450
  %v4529 = vpop.f32.mrf.mxu0
  %v4530 = vadd.f32 %v4444, %v4529
  %4531 = vdwg.mxu0
  %v4532 = vmax.f32 %v4470, 0.0
  %v4533 = vmax.f32 %v4490, 0.0
  %v4534 = vmax.f32 %v4510, 0.0
  %v4535 = vmax.f32 %v4530, 0.0
  %v4536 = vld [vmem:[%s9] sm:$0xff]
  %v4537 = vld [vmem:[%s9 + $0x8] sm:$0xff]
  %v4538 = vld [vmem:[%s9 + $0x10] sm:$0xff]
  %v4539 = vld [vmem:[%s9 + $0x18] sm:$0xff]
  %v4540 = vld [vmem:[%s9 + $0x20] sm:$0xff]
  %v4541 = vld [vmem:[%s9 + $0x28] sm:$0xff]
  %v4542 = vld [vmem:[%s9 + $0x30] sm:$0xff]
  %v4543 = vld [vmem:[%s9 + $0x38] sm:$0xff]
  %v4544 = vld [vmem:[%s9 + $0x40] sm:$0xff]
  %v4545 = vld [vmem:[%s9 + $0x48] sm:$0xff]
  %v4546 = vld [vmem:[%s9 + $0x50] sm:$0xff]
  %v4547 = vld [vmem:[%s9 + $0x58] sm:$0xff]
  %v4548 = vld [vmem:[%s9 + $0x60] sm:$0xff]
  %v4549 = vld [vmem:[%s9 + $0x68] sm:$0xff]
  %v4550 = vld [vmem:[%s9 + $0x70] sm:$0xff]
  %v4551 = vld [vmem:[%s9 + $0x78] sm:$0xff]
  %v4552 = vld [vmem:[%s9 + $0x80] sm:$0xff]
  %v4553 = vld [vmem:[%s9 + $0x88] sm:$0xff]
  %v4554 = vld [vmem:[%s9 + $0x90] sm:$0xff]
  %v4555 = vld [vmem:[%s9 + $0x98] sm:$0xff]
  %v4556 = vld [vmem:[%s9 + $0xa0] sm:$0xff]
  %v4557 = vld [vmem:[%s9 + $0xa8] sm:$0xff]
  %v4558 = vld [vmem:[%s9 + $0xb0] sm:$0xff]
  %v4559 = vld [vmem:[%s9 + $0xb8] sm:$0xff]
  %v4560 = vld [vmem:[%s9 + $0xc0] sm:$0xff]
  %v4561 = vld [vmem:[%s9 + $0xc8] sm:$0xff]
  %v4562 = vld [vmem:[%s9 + $0xd0] sm:$0xff]
  %v4563 = vld [vmem:[%s9 + $0xd8] sm:$0xff]
  %v4564 = vld [vmem:[%s9 + $0xe0] sm:$0xff]
  %v4565 = vld [vmem:[%s9 + $0xe8] sm:$0xff]
  %v4566 = vld [vmem:[%s9 + $0xf0] sm:$0xff]
  %v4567 = vld [vmem:[%s9 + $0xf8] sm:$0xff]
  %v4568 = vld [vmem:[%s9 + $0x100] sm:$0xff]
  %v4569 = vld [vmem:[%s9 + $0x108] sm:$0xff]
  %v4570 = vld [vmem:[%s9 + $0x110] sm:$0xff]
  %v4571 = vld [vmem:[%s9 + $0x118] sm:$0xff]
  %v4572 = vld [vmem:[%s9 + $0x120] sm:$0xff]
  %v4573 = vld [vmem:[%s9 + $0x128] sm:$0xff]
  %v4574 = vld [vmem:[%s9 + $0x130] sm:$0xff]
  %v4575 = vld [vmem:[%s9 + $0x138] sm:$0xff]
  %v4576 = vld [vmem:[%s9 + $0x140] sm:$0xff]
  %v4577 = vld [vmem:[%s9 + $0x148] sm:$0xff]
  %v4578 = vld [vmem:[%s9 + $0x150] sm:$0xff]
  %v4579 = vld [vmem:[%s9 + $0x158] sm:$0xff]
  %v4580 = vld [vmem:[%s9 + $0x160] sm:$0xff]
  %v4581 = vld [vmem:[%s9 + $0x168] sm:$0xff]
  %v4582 = vld [vmem:[%s9 + $0x170] sm:$0xff]
  %v4583 = vld [vmem:[%s9 + $0x178] sm:$0xff]
  %v4584 = vld [vmem:[%s9 + $0x180] sm:$0xff]
  %v4585 = vld [vmem:[%s9 + $0x188] sm:$0xff]
  %v4586 = vld [vmem:[%s9 + $0x190] sm:$0xff]
  %v4587 = vld [vmem:[%s9 + $0x198] sm:$0xff]
  %v4588 = vld [vmem:[%s9 + $0x1a0] sm:$0xff]
  %v4589 = vld [vmem:[%s9 + $0x1a8] sm:$0xff]
  %v4590 = vld [vmem:[%s9 + $0x1b0] sm:$0xff]
  %v4591 = vld [vmem:[%s9 + $0x1b8] sm:$0xff]
  %v4592 = vld [vmem:[%s9 + $0x1c0] sm:$0xff]
  %v4593 = vld [vmem:[%s9 + $0x1c8] sm:$0xff]
  %v4594 = vld [vmem:[%s9 + $0x1d0] sm:$0xff]
  %v4595 = vld [vmem:[%s9 + $0x1d8] sm:$0xff]
  %v4596 = vld [vmem:[%s9 + $0x1e0] sm:$0xff]
  %v4597 = vld [vmem:[%s9 + $0x1e8] sm:$0xff]
  %v4598 = vld [vmem:[%s9 + $0x1f0] sm:$0xff]
  %v4599 = vld [vmem:[%s9 + $0x1f8] sm:$0xff]
  %v4600 = vld [vmem:[%s10] sm:$0x1]
  %v4602 = vperm.slane %v4600, 0
  %4604 = vmatpush.msra.mxu0 %v4551
  %4605 = vmatpush.msra.mxu0 %v4550
  %4606 = vmatpush.msra.mxu0 %v4549
  %4607 = vmatpush.msra.mxu0 %v4548
  %4608 = vmatpush.msra.mxu0 %v4547
  %4609 = vmatpush.msra.mxu0 %v4546
  %4610 = vmatpush.msra.mxu0 %v4545
  %4611 = vmatpush.msra.mxu0 %v4544
  %4612 = vmatpush.msra.mxu0 %v4543
  %4613 = vmatpush.msra.mxu0 %v4542
  %4614 = vmatpush.msra.mxu0 %v4541
  %4615 = vmatpush.msra.mxu0 %v4540
  %4616 = vmatpush.msra.mxu0 %v4539
  %4617 = vmatpush.msra.mxu0 %v4538
  %4618 = vmatpush.msra.mxu0 %v4537
  %4619 = vmatpush.msra.mxu0 %v4536
  %4620 = vmatmul.f32.gmra.mxu0 %v4532
  %v4621 = vpop.f32.mrf.mxu0
  %v4622 = vadd.f32 %v4602, %v4621
  %4623 = vdwg.mxu0
  %4624 = vmatpush.msra.mxu0 %v4567
  %4625 = vmatpush.msra.mxu0 %v4566
  %4626 = vmatpush.msra.mxu0 %v4565
  %4627 = vmatpush.msra.mxu0 %v4564
  %4628 = vmatpush.msra.mxu0 %v4563
  %4629 = vmatpush.msra.mxu0 %v4562
  %4630 = vmatpush.msra.mxu0 %v4561
  %4631 = vmatpush.msra.mxu0 %v4560
  %4632 = vmatpush.msra.mxu0 %v4559
  %4633 = vmatpush.msra.mxu0 %v4558
  %4634 = vmatpush.msra.mxu0 %v4557
  %4635 = vmatpush.msra.mxu0 %v4556
  %4636 = vmatpush.msra.mxu0 %v4555
  %4637 = vmatpush.msra.mxu0 %v4554
  %4638 = vmatpush.msra.mxu0 %v4553
  %4639 = vmatpush.msra.mxu0 %v4552
  %4640 = vmatmul.f32.gmra.mxu0 %v4533
  %v4641 = vpop.f32.mrf.mxu0
  %v4642 = vadd.f32 %v4622, %v4641
  %4643 = vdwg.mxu0
  %4644 = vmatpush.msra.mxu0 %v4583
  %4645 = vmatpush.msra.mxu0 %v4582
  %4646 = vmatpush.msra.mxu0 %v4581
  %4647 = vmatpush.msra.mxu0 %v4580
  %4648 = vmatpush.msra.mxu0 %v4579
  %4649 = vmatpush.msra.mxu0 %v4578
  %4650 = vmatpush.msra.mxu0 %v4577
  %4651 = vmatpush.msra.mxu0 %v4576
  %4652 = vmatpush.msra.mxu0 %v4575
  %4653 = vmatpush.msra.mxu0 %v4574
  %4654 = vmatpush.msra.mxu0 %v4573
  %4655 = vmatpush.msra.mxu0 %v4572
  %4656 = vmatpush.msra.mxu0 %v4571
  %4657 = vmatpush.msra.mxu0 %v4570
  %4658 = vmatpush.msra.mxu0 %v4569
  %4659 = vmatpush.msra.mxu0 %v4568
  %4660 = vmatmul.f32.gmra.mxu0 %v4534
  %v4661 = vpop.f32.mrf.mxu0
  %v4662 = vadd.f32 %v4642, %v4661
  %4663 = vdwg.mxu0
  %4664 = vmatpush.msra.mxu0 %v4599
  %4665 = vmatpush.msra.mxu0 %v4598
  %4666 = vmatpush.msra.mxu0 %v4597
  %4667 = vmatpush.msra.mxu0 %v4596
  %4668 = vmatpush.msra.mxu0 %v4595
  %4669 = vmatpush.msra.mxu0 %v4594
  %4670 = vmatpush.msra.mxu0 %v4593
  %4671 = vmatpush.msra.mxu0 %v4592
  %4672 = vmatpush.msra.mxu0 %v4591
  %4673 = vmatpush.msra.mxu0 %v4590
  %4674 = vmatpush.msra.mxu0 %v4589
  %4675 = vmatpush.msra.mxu0 %v4588
  %4676 = vmatpush.msra.mxu0 %v4587
  %4677 = vmatpush.msra.mxu0 %v4586
  %4678 = vmatpush.msra.mxu0 %v4585
  %4679 = vmatpush.msra.mxu0 %v4584
  %4680 = vmatmul.f32.gmra.mxu0 %v4535
  %v4681 = vpop.f32.mrf.mxu0
  %v4682 = vadd.f32 %v4662, %v4681
  %4683 = vdwg.mxu0
  %4684 = vst [vmem:[%s11] sm:$0xff] %v4682
  // Predicated region
  $region46: #{dqn_forward.1} parent=0 // pred_check
    _
  $region47: #{dqn_forward.1} parent=0 // pred_check_branch
    %4686 = sbr.rel (0) target = $region49
  $region48: #{dqn_forward.1} parent=0 // pred_region
    _
  $region49: #{dqn_forward.1} parent=0 // pred_fallthru
    _
  // Predicated region
  $region50: #{dqn_forward.1} parent=0 // pred_check
    _
  $region51: #{dqn_forward.1} parent=0 // pred_check_branch
    %4688 = sbr.rel (0) target = $region53
  $region52: #{dqn_forward.1} parent=0 // pred_region
    _
  $region53: #{dqn_forward.1} parent=0 // pred_fallthru
    _

</llo_original>
